<compile_context>
chip_gen: v5e
topology: v5e:2x2
jax: 0.10.0
libtpu: 0.0.40
codegen_flags: <defaults>
</compile_context>

<pallas_src>
import jax
import jax.numpy as jnp
from jax.experimental import pallas as pl
from jax.experimental.pallas import tpu as pltpu

BERT_HIDDEN = 1024          # bert-large-uncased
NUM_OFFSETS = 3
HID = 512
OUT = 3
OUT_PAD = 128               # lane-dense final projection; real outputs = [:, :OUT]
EPS = 1e-5
MAX_TB = 8                  # batch rows per grid step


def head_kernel(offsets_ref,   # SMEM (B*3,) int32   (scalar prefetch)
                bert_hbm,      # ANY  (B, S, H) f32  (stays in HBM; rows DMA'd)
                w1_ref,        # VMEM (3, H, 512) bf16   (BN1 folded into W1)
                b1_ref,        # VMEM (1, 512) f32       (BN1 folded into bias)
                w2_ref,        # VMEM (512, 128) f32     (BN2 folded, zero-padded N)
                b2_ref,        # VMEM (1, 128) f32
                out_ref,       # VMEM (TB, 128) f32
                x_scr,         # VMEM (3, TB, H) f32 gather buffer
                copy_sem):     # DMA semaphores (3, TB)
    i = pl.program_id(0)
    B = bert_hbm.shape[0]
    TB = out_ref.shape[0]

    # ---- gather: DMA the 3 requested token rows per example straight from HBM ----
    copies = []
    for t in range(TB):
        b = jnp.minimum(i * TB + t, B - 1)           # clamp padded batch rows
        for j in range(NUM_OFFSETS):
            off = offsets_ref[b * NUM_OFFSETS + j]
            cp = pltpu.make_async_copy(
                bert_hbm.at[b, pl.ds(off, 1), :],    # (1, H) row in HBM
                x_scr.at[j, pl.ds(t, 1), :],         # (1, H) row in VMEM
                copy_sem.at[j, t])
            cp.start()
            copies.append(cp)
    for cp in copies:
        cp.wait()

    # ---- Linear(3H, 512) (+ folded BN1) as a sum of 3 (TB,H)@(H,512) matmuls ----
    acc = jnp.zeros((TB, HID), jnp.float32)
    for j in range(NUM_OFFSETS):
        xj = x_scr[j].astype(jnp.bfloat16)           # (TB, H) bf16 for the MXU
        acc = acc + jnp.dot(xj, w1_ref[j], preferred_element_type=jnp.float32)
    h = jnp.maximum(acc + b1_ref[...], 0.0)          # ReLU  (Dropout = identity, eval)

    # ---- Linear(512, 3) (+ folded BN2), lane-padded to 128 output columns ----
    out = jnp.dot(h, w2_ref[...], preferred_element_type=jnp.float32) + b2_ref[...]
    out_ref[...] = out.astype(out_ref.dtype)


def fold_head_params(params):
    """Fold eval-mode BatchNorms into the adjacent Linear layers and pack for TPU."""
    (g1, b1, m1, v1, w1, bb1, g2, b2, m2, v2, w2, bb2) = params
    s1 = g1 * jax.lax.rsqrt(v1 + EPS)                         # (1, 3H)
    w1f = w1 * s1.reshape(-1, 1)                              # (3H, 512)
    b1f = bb1 + (b1 - m1 * s1) @ w1                           # (1, 512)
    s2 = g2 * jax.lax.rsqrt(v2 + EPS)                         # (1, 512)
    w2f = w2 * s2.reshape(-1, 1)                              # (512, 3)
    b2f = bb2 + (b2 - m2 * s2) @ w2                           # (1, 3)

    w1p = w1f.reshape(NUM_OFFSETS, BERT_HIDDEN, HID).astype(jnp.bfloat16)
    w2p = jnp.zeros((HID, OUT_PAD), jnp.float32).at[:, :OUT].set(w2f)
    b2p = jnp.zeros((1, OUT_PAD), jnp.float32).at[:, :OUT].set(b2f)
    return w1p, b1f.astype(jnp.float32), w2p, b2p


@jax.jit
def gap_head_forward(bert_outputs, offsets, folded_params):
    B, S, H = bert_outputs.shape
    assert H == BERT_HIDDEN
    w1p, b1f, w2p, b2p = folded_params

    TB = B if B <= MAX_TB else MAX_TB
    B_pad = ((B + TB - 1) // TB) * TB

    # flat 1-D offsets (SMEM friendly), bounds-clamped so no OOB gather is possible
    offs = jnp.clip(offsets.astype(jnp.int32), 0, S - 1).reshape(-1)

    out_padded = pl.pallas_call(
        head_kernel,
        out_shape=jax.ShapeDtypeStruct((B_pad, OUT_PAD), jnp.float32),
        grid_spec=pltpu.PrefetchScalarGridSpec(
            num_scalar_prefetch=1,
            grid=(B_pad // TB,),
            in_specs=[
                pl.BlockSpec(memory_space=pl.ANY),                        # bert in HBM
                pl.BlockSpec((NUM_OFFSETS, H, HID), lambda i, off: (0, 0, 0)),
                pl.BlockSpec((1, HID), lambda i, off: (0, 0)),
                pl.BlockSpec((HID, OUT_PAD), lambda i, off: (0, 0)),
                pl.BlockSpec((1, OUT_PAD), lambda i, off: (0, 0)),
            ],
            out_specs=pl.BlockSpec((TB, OUT_PAD), lambda i, off: (i, 0)),
            scratch_shapes=[
                pltpu.VMEM((NUM_OFFSETS, TB, H), jnp.float32),
                pltpu.SemaphoreType.DMA((NUM_OFFSETS, TB)),
            ],
        ),
        compiler_params=pltpu.CompilerParams(
            dimension_semantics=("parallel",),
            vmem_limit_bytes=32 * 1024 * 1024,
        ),
    )(offs, bert_outputs, w1p, b1f, w2p, b2p)

    return out_padded[:B, :OUT]


def init_params(key):
    """Deterministic init matching Head.__init__ (inference-mode params)."""
    k1, k2 = jax.random.split(key)
    d_in = NUM_OFFSETS * BERT_HIDDEN

    # BatchNorm1d(3H): weight=1, bias=0, running_mean=0, running_var=1
    g1 = jnp.ones((1, d_in), jnp.float32)
    b1 = jnp.zeros((1, d_in), jnp.float32)
    m1 = jnp.zeros((1, d_in), jnp.float32)
    v1 = jnp.ones((1, d_in), jnp.float32)

    # Linear(3H, 512): kaiming_normal_ (fan_in, gain=sqrt(2)), bias=0.
    # Stored transposed -> (3H, 512) so the kernel does x @ W directly.
    w1 = jax.random.normal(k1, (d_in, HID), jnp.float32) * jnp.sqrt(2.0 / d_in)
    bb1 = jnp.zeros((1, HID), jnp.float32)

    # BatchNorm1d(512)
    g2 = jnp.ones((1, HID), jnp.float32)
    b2 = jnp.zeros((1, HID), jnp.float32)
    m2 = jnp.zeros((1, HID), jnp.float32)
    v2 = jnp.ones((1, HID), jnp.float32)

    # Linear(512, 3): kaiming_normal_, stored transposed -> (512, 3)
    w2 = jax.random.normal(k2, (HID, OUT), jnp.float32) * jnp.sqrt(2.0 / HID)
    bb2 = jnp.zeros((1, OUT), jnp.float32)

    return (g1, b1, m1, v1, w1, bb1, g2, b2, m2, v2, w2, bb2)


def reference_forward(bert_outputs, offsets, params):
    """Plain-JAX f32 reference of the same eval-mode Head (unfused BN)."""
    (g1, b1, m1, v1, w1, bb1, g2, b2, m2, v2, w2, bb2) = params
    B = bert_outputs.shape[0]
    gathered = jnp.take_along_axis(
        bert_outputs, offsets[:, :, None].astype(jnp.int32), axis=1)
    x = gathered.reshape(B, -1)
    y = (x - m1) * jax.lax.rsqrt(v1 + EPS) * g1 + b1
    h = jnp.maximum(y @ w1 + bb1, 0.0)
    h = (h - m2) * jax.lax.rsqrt(v2 + EPS) * g2 + b2
    return h @ w2 + bb2


if __name__ == "__main__":
    key = jax.random.PRNGKey(0)
    k_bert, k_off, k_param = jax.random.split(key, 3)

    B, S = 2, 16
    bert_outputs = jax.random.normal(k_bert, (B, S, BERT_HIDDEN), jnp.float32)
    offsets = jax.random.randint(k_off, (B, NUM_OFFSETS), 0, S, dtype=jnp.int32)
    params = init_params(k_param)
    folded = fold_head_params(params)

    out = gap_head_forward(bert_outputs, offsets, folded)
    out = jax.block_until_ready(out)

    ref = reference_forward(bert_outputs, offsets, params)
    assert out.shape == (B, OUT)
    # Linear1 runs in bf16 on the MXU (f32 accumulation) -> tolerance reflects that.
    assert jnp.allclose(out, ref, atol=5e-2, rtol=5e-2), \
        float(jnp.max(jnp.abs(out - ref)))

    print("KERNEL_OK")
</pallas_src>

<mosaic_0001>
module attributes {stable_mosaic.version = 11 : i64} {
  func.func @head_kernel(%arg0: i32, %arg1: memref<6xi32, #tpu.memory_space<smem>>, %arg2: memref<2x16x1024xf32, #tpu.memory_space<any>>, %arg3: memref<3x1024x512xbf16, #tpu.memory_space<vmem>>, %arg4: memref<1x512xf32, #tpu.memory_space<vmem>>, %arg5: memref<512x128xf32, #tpu.memory_space<vmem>>, %arg6: memref<1x128xf32, #tpu.memory_space<vmem>>, %arg7: memref<2x128xf32, #tpu.memory_space<vmem>>, %arg8: memref<3x2x1024xf32, #tpu.memory_space<vmem>>, %arg9: memref<3x2x!tpu.dma_semaphore, #tpu.memory_space<semaphore_mem>>) attributes {dimension_semantics = [#tpu.dimension_semantics<parallel>], iteration_bounds = array<i64: 1>, scalar_prefetch = 1 : i64, scratch_operands = 2 : i64, tpu.core_type = #tpu.core_type<tc>, window_params = [{}, {pipeline_mode = #tpu.pipeline_mode<synchronous>, transform_indices = @transform_1, window_bounds = array<i64: 3, 1024, 512>}, {pipeline_mode = #tpu.pipeline_mode<synchronous>, transform_indices = @transform_2, window_bounds = array<i64: 1, 512>}, {pipeline_mode = #tpu.pipeline_mode<synchronous>, transform_indices = @transform_3, window_bounds = array<i64: 512, 128>}, {pipeline_mode = #tpu.pipeline_mode<synchronous>, transform_indices = @transform_4, window_bounds = array<i64: 1, 128>}, {transform_indices = @transform_5, window_bounds = array<i64: 2, 128>}]} {
    %c2_i32 = arith.constant 2 : i32
    %0 = arith.muli %arg0, %c2_i32 : i32
    %c0_i32 = arith.constant 0 : i32
    %1 = arith.addi %0, %c0_i32 : i32
    %c1_i32 = arith.constant 1 : i32
    %2 = arith.minsi %1, %c1_i32 : i32
    %c3_i32 = arith.constant 3 : i32
    %3 = arith.muli %2, %c3_i32 : i32
    %c0_i32_0 = arith.constant 0 : i32
    %4 = arith.addi %3, %c0_i32_0 : i32
    %5 = arith.index_cast %4 : i32 to index
    %6 = memref.load %arg1[%5] : memref<6xi32, #tpu.memory_space<smem>>
    %c0_i32_1 = arith.constant 0 : i32
    %c0_i32_2 = arith.constant 0 : i32
    %c0_i32_3 = arith.constant 0 : i32
    %c0_i32_4 = arith.constant 0 : i32
    %7 = tpu.memref_slice %arg2[%2, %6, %c0_i32_4] : memref<2x16x1024xf32, #tpu.memory_space<any>> -> memref<1x1x1024xf32, #tpu.memory_space<any>>
    %8 = tpu.memref_squeeze %7 : memref<1x1x1024xf32, #tpu.memory_space<any>> -> memref<1x1024xf32, #tpu.memory_space<any>>
    %c0_i32_5 = arith.constant 0 : i32
    %c0_i32_6 = arith.constant 0 : i32
    %9 = tpu.memref_slice %arg8[%c0_i32_1, %c0_i32_5, %c0_i32_6] : memref<3x2x1024xf32, #tpu.memory_space<vmem>> -> memref<1x1x1024xf32, #tpu.memory_space<vmem>>
    %10 = tpu.memref_squeeze %9 : memref<1x1x1024xf32, #tpu.memory_space<vmem>> -> memref<1x1024xf32, #tpu.memory_space<vmem>>
    %11 = tpu.memref_slice %arg9[%c0_i32_2, %c0_i32_3] : memref<3x2x!tpu.dma_semaphore, #tpu.memory_space<semaphore_mem>> -> memref<1x1x!tpu.dma_semaphore, #tpu.memory_space<semaphore_mem>>
    %12 = tpu.memref_squeeze %11 : memref<1x1x!tpu.dma_semaphore, #tpu.memory_space<semaphore_mem>> -> memref<!tpu.dma_semaphore, #tpu.memory_space<semaphore_mem>>
    tpu.enqueue_dma source(%8 : memref<1x1024xf32, #tpu.memory_space<any>>) target(%10 : memref<1x1024xf32, #tpu.memory_space<vmem>>) target_semaphore(%12 : memref<!tpu.dma_semaphore, #tpu.memory_space<semaphore_mem>>)
    %c3_i32_7 = arith.constant 3 : i32
    %13 = arith.muli %2, %c3_i32_7 : i32
    %c1_i32_8 = arith.constant 1 : i32
    %14 = arith.addi %13, %c1_i32_8 : i32
    %15 = arith.index_cast %14 : i32 to index
    %16 = memref.load %arg1[%15] : memref<6xi32, #tpu.memory_space<smem>>
    %c1_i32_9 = arith.constant 1 : i32
    %c1_i32_10 = arith.constant 1 : i32
    %c0_i32_11 = arith.constant 0 : i32
    %c0_i32_12 = arith.constant 0 : i32
    %17 = tpu.memref_slice %arg2[%2, %16, %c0_i32_12] : memref<2x16x1024xf32, #tpu.memory_space<any>> -> memref<1x1x1024xf32, #tpu.memory_space<any>>
    %18 = tpu.memref_squeeze %17 : memref<1x1x1024xf32, #tpu.memory_space<any>> -> memref<1x1024xf32, #tpu.memory_space<any>>
    %c0_i32_13 = arith.constant 0 : i32
    %c0_i32_14 = arith.constant 0 : i32
    %19 = tpu.memref_slice %arg8[%c1_i32_9, %c0_i32_13, %c0_i32_14] : memref<3x2x1024xf32, #tpu.memory_space<vmem>> -> memref<1x1x1024xf32, #tpu.memory_space<vmem>>
    %20 = tpu.memref_squeeze %19 : memref<1x1x1024xf32, #tpu.memory_space<vmem>> -> memref<1x1024xf32, #tpu.memory_space<vmem>>
    %21 = tpu.memref_slice %arg9[%c1_i32_10, %c0_i32_11] : memref<3x2x!tpu.dma_semaphore, #tpu.memory_space<semaphore_mem>> -> memref<1x1x!tpu.dma_semaphore, #tpu.memory_space<semaphore_mem>>
    %22 = tpu.memref_squeeze %21 : memref<1x1x!tpu.dma_semaphore, #tpu.memory_space<semaphore_mem>> -> memref<!tpu.dma_semaphore, #tpu.memory_space<semaphore_mem>>
    tpu.enqueue_dma source(%18 : memref<1x1024xf32, #tpu.memory_space<any>>) target(%20 : memref<1x1024xf32, #tpu.memory_space<vmem>>) target_semaphore(%22 : memref<!tpu.dma_semaphore, #tpu.memory_space<semaphore_mem>>)
    %c3_i32_15 = arith.constant 3 : i32
    %23 = arith.muli %2, %c3_i32_15 : i32
    %c2_i32_16 = arith.constant 2 : i32
    %24 = arith.addi %23, %c2_i32_16 : i32
    %25 = arith.index_cast %24 : i32 to index
    %26 = memref.load %arg1[%25] : memref<6xi32, #tpu.memory_space<smem>>
    %c2_i32_17 = arith.constant 2 : i32
    %c2_i32_18 = arith.constant 2 : i32
    %c0_i32_19 = arith.constant 0 : i32
    %c0_i32_20 = arith.constant 0 : i32
    %27 = tpu.memref_slice %arg2[%2, %26, %c0_i32_20] : memref<2x16x1024xf32, #tpu.memory_space<any>> -> memref<1x1x1024xf32, #tpu.memory_space<any>>
    %28 = tpu.memref_squeeze %27 : memref<1x1x1024xf32, #tpu.memory_space<any>> -> memref<1x1024xf32, #tpu.memory_space<any>>
    %c0_i32_21 = arith.constant 0 : i32
    %c0_i32_22 = arith.constant 0 : i32
    %29 = tpu.memref_slice %arg8[%c2_i32_17, %c0_i32_21, %c0_i32_22] : memref<3x2x1024xf32, #tpu.memory_space<vmem>> -> memref<1x1x1024xf32, #tpu.memory_space<vmem>>
    %30 = tpu.memref_squeeze %29 : memref<1x1x1024xf32, #tpu.memory_space<vmem>> -> memref<1x1024xf32, #tpu.memory_space<vmem>>
    %31 = tpu.memref_slice %arg9[%c2_i32_18, %c0_i32_19] : memref<3x2x!tpu.dma_semaphore, #tpu.memory_space<semaphore_mem>> -> memref<1x1x!tpu.dma_semaphore, #tpu.memory_space<semaphore_mem>>
    %32 = tpu.memref_squeeze %31 : memref<1x1x!tpu.dma_semaphore, #tpu.memory_space<semaphore_mem>> -> memref<!tpu.dma_semaphore, #tpu.memory_space<semaphore_mem>>
    tpu.enqueue_dma source(%28 : memref<1x1024xf32, #tpu.memory_space<any>>) target(%30 : memref<1x1024xf32, #tpu.memory_space<vmem>>) target_semaphore(%32 : memref<!tpu.dma_semaphore, #tpu.memory_space<semaphore_mem>>)
    %c2_i32_23 = arith.constant 2 : i32
    %33 = arith.muli %arg0, %c2_i32_23 : i32
    %c1_i32_24 = arith.constant 1 : i32
    %34 = arith.addi %33, %c1_i32_24 : i32
    %c1_i32_25 = arith.constant 1 : i32
    %35 = arith.minsi %34, %c1_i32_25 : i32
    %c3_i32_26 = arith.constant 3 : i32
    %36 = arith.muli %35, %c3_i32_26 : i32
    %c0_i32_27 = arith.constant 0 : i32
    %37 = arith.addi %36, %c0_i32_27 : i32
    %38 = arith.index_cast %37 : i32 to index
    %39 = memref.load %arg1[%38] : memref<6xi32, #tpu.memory_space<smem>>
    %c0_i32_28 = arith.constant 0 : i32
    %c0_i32_29 = arith.constant 0 : i32
    %c1_i32_30 = arith.constant 1 : i32
    %c0_i32_31 = arith.constant 0 : i32
    %40 = tpu.memref_slice %arg2[%35, %39, %c0_i32_31] : memref<2x16x1024xf32, #tpu.memory_space<any>> -> memref<1x1x1024xf32, #tpu.memory_space<any>>
    %41 = tpu.memref_squeeze %40 : memref<1x1x1024xf32, #tpu.memory_space<any>> -> memref<1x1024xf32, #tpu.memory_space<any>>
    %c1_i32_32 = arith.constant 1 : i32
    %c0_i32_33 = arith.constant 0 : i32
    %42 = tpu.memref_slice %arg8[%c0_i32_28, %c1_i32_32, %c0_i32_33] : memref<3x2x1024xf32, #tpu.memory_space<vmem>> -> memref<1x1x1024xf32, #tpu.memory_space<vmem>>
    %43 = tpu.memref_squeeze %42 : memref<1x1x1024xf32, #tpu.memory_space<vmem>> -> memref<1x1024xf32, #tpu.memory_space<vmem>>
    %44 = tpu.memref_slice %arg9[%c0_i32_29, %c1_i32_30] : memref<3x2x!tpu.dma_semaphore, #tpu.memory_space<semaphore_mem>> -> memref<1x1x!tpu.dma_semaphore, #tpu.memory_space<semaphore_mem>>
    %45 = tpu.memref_squeeze %44 : memref<1x1x!tpu.dma_semaphore, #tpu.memory_space<semaphore_mem>> -> memref<!tpu.dma_semaphore, #tpu.memory_space<semaphore_mem>>
    tpu.enqueue_dma source(%41 : memref<1x1024xf32, #tpu.memory_space<any>>) target(%43 : memref<1x1024xf32, #tpu.memory_space<vmem>>) target_semaphore(%45 : memref<!tpu.dma_semaphore, #tpu.memory_space<semaphore_mem>>)
    %c3_i32_34 = arith.constant 3 : i32
    %46 = arith.muli %35, %c3_i32_34 : i32
    %c1_i32_35 = arith.constant 1 : i32
    %47 = arith.addi %46, %c1_i32_35 : i32
    %48 = arith.index_cast %47 : i32 to index
    %49 = memref.load %arg1[%48] : memref<6xi32, #tpu.memory_space<smem>>
    %c1_i32_36 = arith.constant 1 : i32
    %c1_i32_37 = arith.constant 1 : i32
    %c1_i32_38 = arith.constant 1 : i32
    %c0_i32_39 = arith.constant 0 : i32
    %50 = tpu.memref_slice %arg2[%35, %49, %c0_i32_39] : memref<2x16x1024xf32, #tpu.memory_space<any>> -> memref<1x1x1024xf32, #tpu.memory_space<any>>
    %51 = tpu.memref_squeeze %50 : memref<1x1x1024xf32, #tpu.memory_space<any>> -> memref<1x1024xf32, #tpu.memory_space<any>>
    %c1_i32_40 = arith.constant 1 : i32
    %c0_i32_41 = arith.constant 0 : i32
    %52 = tpu.memref_slice %arg8[%c1_i32_36, %c1_i32_40, %c0_i32_41] : memref<3x2x1024xf32, #tpu.memory_space<vmem>> -> memref<1x1x1024xf32, #tpu.memory_space<vmem>>
    %53 = tpu.memref_squeeze %52 : memref<1x1x1024xf32, #tpu.memory_space<vmem>> -> memref<1x1024xf32, #tpu.memory_space<vmem>>
    %54 = tpu.memref_slice %arg9[%c1_i32_37, %c1_i32_38] : memref<3x2x!tpu.dma_semaphore, #tpu.memory_space<semaphore_mem>> -> memref<1x1x!tpu.dma_semaphore, #tpu.memory_space<semaphore_mem>>
    %55 = tpu.memref_squeeze %54 : memref<1x1x!tpu.dma_semaphore, #tpu.memory_space<semaphore_mem>> -> memref<!tpu.dma_semaphore, #tpu.memory_space<semaphore_mem>>
    tpu.enqueue_dma source(%51 : memref<1x1024xf32, #tpu.memory_space<any>>) target(%53 : memref<1x1024xf32, #tpu.memory_space<vmem>>) target_semaphore(%55 : memref<!tpu.dma_semaphore, #tpu.memory_space<semaphore_mem>>)
    %c3_i32_42 = arith.constant 3 : i32
    %56 = arith.muli %35, %c3_i32_42 : i32
    %c2_i32_43 = arith.constant 2 : i32
    %57 = arith.addi %56, %c2_i32_43 : i32
    %58 = arith.index_cast %57 : i32 to index
    %59 = memref.load %arg1[%58] : memref<6xi32, #tpu.memory_space<smem>>
    %c2_i32_44 = arith.constant 2 : i32
    %c2_i32_45 = arith.constant 2 : i32
    %c1_i32_46 = arith.constant 1 : i32
    %c0_i32_47 = arith.constant 0 : i32
    %60 = tpu.memref_slice %arg2[%35, %59, %c0_i32_47] : memref<2x16x1024xf32, #tpu.memory_space<any>> -> memref<1x1x1024xf32, #tpu.memory_space<any>>
    %61 = tpu.memref_squeeze %60 : memref<1x1x1024xf32, #tpu.memory_space<any>> -> memref<1x1024xf32, #tpu.memory_space<any>>
    %c1_i32_48 = arith.constant 1 : i32
    %c0_i32_49 = arith.constant 0 : i32
    %62 = tpu.memref_slice %arg8[%c2_i32_44, %c1_i32_48, %c0_i32_49] : memref<3x2x1024xf32, #tpu.memory_space<vmem>> -> memref<1x1x1024xf32, #tpu.memory_space<vmem>>
    %63 = tpu.memref_squeeze %62 : memref<1x1x1024xf32, #tpu.memory_space<vmem>> -> memref<1x1024xf32, #tpu.memory_space<vmem>>
    %64 = tpu.memref_slice %arg9[%c2_i32_45, %c1_i32_46] : memref<3x2x!tpu.dma_semaphore, #tpu.memory_space<semaphore_mem>> -> memref<1x1x!tpu.dma_semaphore, #tpu.memory_space<semaphore_mem>>
    %65 = tpu.memref_squeeze %64 : memref<1x1x!tpu.dma_semaphore, #tpu.memory_space<semaphore_mem>> -> memref<!tpu.dma_semaphore, #tpu.memory_space<semaphore_mem>>
    tpu.enqueue_dma source(%61 : memref<1x1024xf32, #tpu.memory_space<any>>) target(%63 : memref<1x1024xf32, #tpu.memory_space<vmem>>) target_semaphore(%65 : memref<!tpu.dma_semaphore, #tpu.memory_space<semaphore_mem>>)
    %c0_i32_50 = arith.constant 0 : i32
    %c0_i32_51 = arith.constant 0 : i32
    %c0_i32_52 = arith.constant 0 : i32
    %c0_i32_53 = arith.constant 0 : i32
    %66 = tpu.memref_slice %arg2[%2, %6, %c0_i32_53] : memref<2x16x1024xf32, #tpu.memory_space<any>> -> memref<1x1x1024xf32, #tpu.memory_space<any>>
    %67 = tpu.memref_squeeze %66 : memref<1x1x1024xf32, #tpu.memory_space<any>> -> memref<1x1024xf32, #tpu.memory_space<any>>
    %c0_i32_54 = arith.constant 0 : i32
    %c0_i32_55 = arith.constant 0 : i32
    %68 = tpu.memref_slice %arg8[%c0_i32_50, %c0_i32_54, %c0_i32_55] : memref<3x2x1024xf32, #tpu.memory_space<vmem>> -> memref<1x1x1024xf32, #tpu.memory_space<vmem>>
    %69 = tpu.memref_squeeze %68 : memref<1x1x1024xf32, #tpu.memory_space<vmem>> -> memref<1x1024xf32, #tpu.memory_space<vmem>>
    %70 = tpu.memref_slice %arg9[%c0_i32_51, %c0_i32_52] : memref<3x2x!tpu.dma_semaphore, #tpu.memory_space<semaphore_mem>> -> memref<1x1x!tpu.dma_semaphore, #tpu.memory_space<semaphore_mem>>
    %71 = tpu.memref_squeeze %70 : memref<1x1x!tpu.dma_semaphore, #tpu.memory_space<semaphore_mem>> -> memref<!tpu.dma_semaphore, #tpu.memory_space<semaphore_mem>>
    tpu.wait_dma2 semaphore(%71 : memref<!tpu.dma_semaphore, #tpu.memory_space<semaphore_mem>>) src(%67 : memref<1x1024xf32, #tpu.memory_space<any>>) dst(%69 : memref<1x1024xf32, #tpu.memory_space<vmem>>)
    %c1_i32_56 = arith.constant 1 : i32
    %c1_i32_57 = arith.constant 1 : i32
    %c0_i32_58 = arith.constant 0 : i32
    %c0_i32_59 = arith.constant 0 : i32
    %72 = tpu.memref_slice %arg2[%2, %16, %c0_i32_59] : memref<2x16x1024xf32, #tpu.memory_space<any>> -> memref<1x1x1024xf32, #tpu.memory_space<any>>
    %73 = tpu.memref_squeeze %72 : memref<1x1x1024xf32, #tpu.memory_space<any>> -> memref<1x1024xf32, #tpu.memory_space<any>>
    %c0_i32_60 = arith.constant 0 : i32
    %c0_i32_61 = arith.constant 0 : i32
    %74 = tpu.memref_slice %arg8[%c1_i32_56, %c0_i32_60, %c0_i32_61] : memref<3x2x1024xf32, #tpu.memory_space<vmem>> -> memref<1x1x1024xf32, #tpu.memory_space<vmem>>
    %75 = tpu.memref_squeeze %74 : memref<1x1x1024xf32, #tpu.memory_space<vmem>> -> memref<1x1024xf32, #tpu.memory_space<vmem>>
    %76 = tpu.memref_slice %arg9[%c1_i32_57, %c0_i32_58] : memref<3x2x!tpu.dma_semaphore, #tpu.memory_space<semaphore_mem>> -> memref<1x1x!tpu.dma_semaphore, #tpu.memory_space<semaphore_mem>>
    %77 = tpu.memref_squeeze %76 : memref<1x1x!tpu.dma_semaphore, #tpu.memory_space<semaphore_mem>> -> memref<!tpu.dma_semaphore, #tpu.memory_space<semaphore_mem>>
    tpu.wait_dma2 semaphore(%77 : memref<!tpu.dma_semaphore, #tpu.memory_space<semaphore_mem>>) src(%73 : memref<1x1024xf32, #tpu.memory_space<any>>) dst(%75 : memref<1x1024xf32, #tpu.memory_space<vmem>>)
    %c2_i32_62 = arith.constant 2 : i32
    %c2_i32_63 = arith.constant 2 : i32
    %c0_i32_64 = arith.constant 0 : i32
    %c0_i32_65 = arith.constant 0 : i32
    %78 = tpu.memref_slice %arg2[%2, %26, %c0_i32_65] : memref<2x16x1024xf32, #tpu.memory_space<any>> -> memref<1x1x1024xf32, #tpu.memory_space<any>>
    %79 = tpu.memref_squeeze %78 : memref<1x1x1024xf32, #tpu.memory_space<any>> -> memref<1x1024xf32, #tpu.memory_space<any>>
    %c0_i32_66 = arith.constant 0 : i32
    %c0_i32_67 = arith.constant 0 : i32
    %80 = tpu.memref_slice %arg8[%c2_i32_62, %c0_i32_66, %c0_i32_67] : memref<3x2x1024xf32, #tpu.memory_space<vmem>> -> memref<1x1x1024xf32, #tpu.memory_space<vmem>>
    %81 = tpu.memref_squeeze %80 : memref<1x1x1024xf32, #tpu.memory_space<vmem>> -> memref<1x1024xf32, #tpu.memory_space<vmem>>
    %82 = tpu.memref_slice %arg9[%c2_i32_63, %c0_i32_64] : memref<3x2x!tpu.dma_semaphore, #tpu.memory_space<semaphore_mem>> -> memref<1x1x!tpu.dma_semaphore, #tpu.memory_space<semaphore_mem>>
    %83 = tpu.memref_squeeze %82 : memref<1x1x!tpu.dma_semaphore, #tpu.memory_space<semaphore_mem>> -> memref<!tpu.dma_semaphore, #tpu.memory_space<semaphore_mem>>
    tpu.wait_dma2 semaphore(%83 : memref<!tpu.dma_semaphore, #tpu.memory_space<semaphore_mem>>) src(%79 : memref<1x1024xf32, #tpu.memory_space<any>>) dst(%81 : memref<1x1024xf32, #tpu.memory_space<vmem>>)
    %c0_i32_68 = arith.constant 0 : i32
    %c0_i32_69 = arith.constant 0 : i32
    %c1_i32_70 = arith.constant 1 : i32
    %c0_i32_71 = arith.constant 0 : i32
    %84 = tpu.memref_slice %arg2[%35, %39, %c0_i32_71] : memref<2x16x1024xf32, #tpu.memory_space<any>> -> memref<1x1x1024xf32, #tpu.memory_space<any>>
    %85 = tpu.memref_squeeze %84 : memref<1x1x1024xf32, #tpu.memory_space<any>> -> memref<1x1024xf32, #tpu.memory_space<any>>
    %c1_i32_72 = arith.constant 1 : i32
    %c0_i32_73 = arith.constant 0 : i32
    %86 = tpu.memref_slice %arg8[%c0_i32_68, %c1_i32_72, %c0_i32_73] : memref<3x2x1024xf32, #tpu.memory_space<vmem>> -> memref<1x1x1024xf32, #tpu.memory_space<vmem>>
    %87 = tpu.memref_squeeze %86 : memref<1x1x1024xf32, #tpu.memory_space<vmem>> -> memref<1x1024xf32, #tpu.memory_space<vmem>>
    %88 = tpu.memref_slice %arg9[%c0_i32_69, %c1_i32_70] : memref<3x2x!tpu.dma_semaphore, #tpu.memory_space<semaphore_mem>> -> memref<1x1x!tpu.dma_semaphore, #tpu.memory_space<semaphore_mem>>
    %89 = tpu.memref_squeeze %88 : memref<1x1x!tpu.dma_semaphore, #tpu.memory_space<semaphore_mem>> -> memref<!tpu.dma_semaphore, #tpu.memory_space<semaphore_mem>>
    tpu.wait_dma2 semaphore(%89 : memref<!tpu.dma_semaphore, #tpu.memory_space<semaphore_mem>>) src(%85 : memref<1x1024xf32, #tpu.memory_space<any>>) dst(%87 : memref<1x1024xf32, #tpu.memory_space<vmem>>)
    %c1_i32_74 = arith.constant 1 : i32
    %c1_i32_75 = arith.constant 1 : i32
    %c1_i32_76 = arith.constant 1 : i32
    %c0_i32_77 = arith.constant 0 : i32
    %90 = tpu.memref_slice %arg2[%35, %49, %c0_i32_77] : memref<2x16x1024xf32, #tpu.memory_space<any>> -> memref<1x1x1024xf32, #tpu.memory_space<any>>
    %91 = tpu.memref_squeeze %90 : memref<1x1x1024xf32, #tpu.memory_space<any>> -> memref<1x1024xf32, #tpu.memory_space<any>>
    %c1_i32_78 = arith.constant 1 : i32
    %c0_i32_79 = arith.constant 0 : i32
    %92 = tpu.memref_slice %arg8[%c1_i32_74, %c1_i32_78, %c0_i32_79] : memref<3x2x1024xf32, #tpu.memory_space<vmem>> -> memref<1x1x1024xf32, #tpu.memory_space<vmem>>
    %93 = tpu.memref_squeeze %92 : memref<1x1x1024xf32, #tpu.memory_space<vmem>> -> memref<1x1024xf32, #tpu.memory_space<vmem>>
    %94 = tpu.memref_slice %arg9[%c1_i32_75, %c1_i32_76] : memref<3x2x!tpu.dma_semaphore, #tpu.memory_space<semaphore_mem>> -> memref<1x1x!tpu.dma_semaphore, #tpu.memory_space<semaphore_mem>>
    %95 = tpu.memref_squeeze %94 : memref<1x1x!tpu.dma_semaphore, #tpu.memory_space<semaphore_mem>> -> memref<!tpu.dma_semaphore, #tpu.memory_space<semaphore_mem>>
    tpu.wait_dma2 semaphore(%95 : memref<!tpu.dma_semaphore, #tpu.memory_space<semaphore_mem>>) src(%91 : memref<1x1024xf32, #tpu.memory_space<any>>) dst(%93 : memref<1x1024xf32, #tpu.memory_space<vmem>>)
    %c2_i32_80 = arith.constant 2 : i32
    %c2_i32_81 = arith.constant 2 : i32
    %c1_i32_82 = arith.constant 1 : i32
    %c0_i32_83 = arith.constant 0 : i32
    %96 = tpu.memref_slice %arg2[%35, %59, %c0_i32_83] : memref<2x16x1024xf32, #tpu.memory_space<any>> -> memref<1x1x1024xf32, #tpu.memory_space<any>>
    %97 = tpu.memref_squeeze %96 : memref<1x1x1024xf32, #tpu.memory_space<any>> -> memref<1x1024xf32, #tpu.memory_space<any>>
    %c1_i32_84 = arith.constant 1 : i32
    %c0_i32_85 = arith.constant 0 : i32
    %98 = tpu.memref_slice %arg8[%c2_i32_80, %c1_i32_84, %c0_i32_85] : memref<3x2x1024xf32, #tpu.memory_space<vmem>> -> memref<1x1x1024xf32, #tpu.memory_space<vmem>>
    %99 = tpu.memref_squeeze %98 : memref<1x1x1024xf32, #tpu.memory_space<vmem>> -> memref<1x1024xf32, #tpu.memory_space<vmem>>
    %100 = tpu.memref_slice %arg9[%c2_i32_81, %c1_i32_82] : memref<3x2x!tpu.dma_semaphore, #tpu.memory_space<semaphore_mem>> -> memref<1x1x!tpu.dma_semaphore, #tpu.memory_space<semaphore_mem>>
    %101 = tpu.memref_squeeze %100 : memref<1x1x!tpu.dma_semaphore, #tpu.memory_space<semaphore_mem>> -> memref<!tpu.dma_semaphore, #tpu.memory_space<semaphore_mem>>
    tpu.wait_dma2 semaphore(%101 : memref<!tpu.dma_semaphore, #tpu.memory_space<semaphore_mem>>) src(%97 : memref<1x1024xf32, #tpu.memory_space<any>>) dst(%99 : memref<1x1024xf32, #tpu.memory_space<vmem>>)
    %cst = arith.constant 0.000000e+00 : f32
    %102 = vector.broadcast %cst : f32 to vector<2x512xf32>
    %c0 = arith.constant 0 : index
    %c0_86 = arith.constant 0 : index
    %c0_87 = arith.constant 0 : index
    %103 = vector.load %arg8[%c0, %c0_86, %c0_87] : memref<3x2x1024xf32, #tpu.memory_space<vmem>>, vector<1x2x1024xf32>
    %104 = vector.shape_cast %103 : vector<1x2x1024xf32> to vector<2x1024xf32>
    %105 = arith.truncf %104 : vector<2x1024xf32> to vector<2x1024xbf16>
    %c0_88 = arith.constant 0 : index
    %c0_89 = arith.constant 0 : index
    %c0_90 = arith.constant 0 : index
    %106 = vector.load %arg3[%c0_88, %c0_89, %c0_90] : memref<3x1024x512xbf16, #tpu.memory_space<vmem>>, vector<1x1024x512xbf16>
    %107 = vector.shape_cast %106 : vector<1x1024x512xbf16> to vector<1024x512xbf16>
    %cst_91 = arith.constant dense<0.000000e+00> : vector<2x512xf32>
    %108 = tpu.matmul %105, %107, %cst_91 {dimension_numbers = #tpu.dot_dimension_numbers<[1], [0], [0], [1], [0, 0, 1, 1], [], []>} : vector<2x1024xbf16>, vector<1024x512xbf16>, vector<2x512xf32> -> vector<2x512xf32>
    %109 = arith.addf %102, %108 : vector<2x512xf32>
    %c1 = arith.constant 1 : index
    %c0_92 = arith.constant 0 : index
    %c0_93 = arith.constant 0 : index
    %110 = vector.load %arg8[%c1, %c0_92, %c0_93] : memref<3x2x1024xf32, #tpu.memory_space<vmem>>, vector<1x2x1024xf32>
    %111 = vector.shape_cast %110 : vector<1x2x1024xf32> to vector<2x1024xf32>
    %112 = arith.truncf %111 : vector<2x1024xf32> to vector<2x1024xbf16>
    %c1_94 = arith.constant 1 : index
    %c0_95 = arith.constant 0 : index
    %c0_96 = arith.constant 0 : index
    %113 = vector.load %arg3[%c1_94, %c0_95, %c0_96] : memref<3x1024x512xbf16, #tpu.memory_space<vmem>>, vector<1x1024x512xbf16>
    %114 = vector.shape_cast %113 : vector<1x1024x512xbf16> to vector<1024x512xbf16>
    %cst_97 = arith.constant dense<0.000000e+00> : vector<2x512xf32>
    %115 = tpu.matmul %112, %114, %cst_97 {dimension_numbers = #tpu.dot_dimension_numbers<[1], [0], [0], [1], [0, 0, 1, 1], [], []>} : vector<2x1024xbf16>, vector<1024x512xbf16>, vector<2x512xf32> -> vector<2x512xf32>
    %116 = arith.addf %109, %115 : vector<2x512xf32>
    %c2 = arith.constant 2 : index
    %c0_98 = arith.constant 0 : index
    %c0_99 = arith.constant 0 : index
    %117 = vector.load %arg8[%c2, %c0_98, %c0_99] : memref<3x2x1024xf32, #tpu.memory_space<vmem>>, vector<1x2x1024xf32>
    %118 = vector.shape_cast %117 : vector<1x2x1024xf32> to vector<2x1024xf32>
    %119 = arith.truncf %118 : vector<2x1024xf32> to vector<2x1024xbf16>
    %c2_100 = arith.constant 2 : index
    %c0_101 = arith.constant 0 : index
    %c0_102 = arith.constant 0 : index
    %120 = vector.load %arg3[%c2_100, %c0_101, %c0_102] : memref<3x1024x512xbf16, #tpu.memory_space<vmem>>, vector<1x1024x512xbf16>
    %121 = vector.shape_cast %120 : vector<1x1024x512xbf16> to vector<1024x512xbf16>
    %cst_103 = arith.constant dense<0.000000e+00> : vector<2x512xf32>
    %122 = tpu.matmul %119, %121, %cst_103 {dimension_numbers = #tpu.dot_dimension_numbers<[1], [0], [0], [1], [0, 0, 1, 1], [], []>} : vector<2x1024xbf16>, vector<1024x512xbf16>, vector<2x512xf32> -> vector<2x512xf32>
    %123 = arith.addf %116, %122 : vector<2x512xf32>
    %c0_104 = arith.constant 0 : index
    %c0_105 = arith.constant 0 : index
    %124 = vector.load %arg4[%c0_104, %c0_105] : memref<1x512xf32, #tpu.memory_space<vmem>>, vector<1x512xf32>
    %125 = vector.broadcast %124 : vector<1x512xf32> to vector<2x512xf32>
    %126 = arith.addf %123, %125 : vector<2x512xf32>
    %cst_106 = arith.constant 0.000000e+00 : f32
    %127 = vector.broadcast %cst_106 : f32 to vector<2x512xf32>
    %128 = arith.maximumf %126, %127 : vector<2x512xf32>
    %c0_107 = arith.constant 0 : index
    %c0_108 = arith.constant 0 : index
    %129 = vector.load %arg5[%c0_107, %c0_108] : memref<512x128xf32, #tpu.memory_space<vmem>>, vector<512x128xf32>
    %cst_109 = arith.constant dense<0.000000e+00> : vector<2x128xf32>
    %130 = tpu.matmul %128, %129, %cst_109 {dimension_numbers = #tpu.dot_dimension_numbers<[1], [0], [0], [1], [0, 0, 1, 1], [], []>} : vector<2x512xf32>, vector<512x128xf32>, vector<2x128xf32> -> vector<2x128xf32>
    %c0_110 = arith.constant 0 : index
    %c0_111 = arith.constant 0 : index
    %131 = vector.load %arg6[%c0_110, %c0_111] : memref<1x128xf32, #tpu.memory_space<vmem>>, vector<1x128xf32>
    %132 = vector.broadcast %131 : vector<1x128xf32> to vector<2x128xf32>
    %133 = arith.addf %130, %132 : vector<2x128xf32>
    %c0_112 = arith.constant 0 : index
    %c0_113 = arith.constant 0 : index
    %134 = vector.load %arg7[%c0_112, %c0_113] : memref<2x128xf32, #tpu.memory_space<vmem>>, vector<2x128xf32>
    tpu.vector_store %arg7[%c0_112, %c0_113], %133 {strides = array<i32>} : memref<2x128xf32, #tpu.memory_space<vmem>>, vector<2x128xf32>,
    return
  }
  func.func @transform_1(%arg0: i32, %arg1: memref<6xi32, #tpu.memory_space<smem>>) -> (i32, i32, i32) {
    %c0_i32 = arith.constant 0 : i32
    %c0_i32_0 = arith.constant 0 : i32
    %c0_i32_1 = arith.constant 0 : i32
    %c0_i32_2 = arith.constant 0 : i32
    return %c0_i32, %c0_i32_0, %c0_i32_1 : i32, i32, i32
  }
  func.func @transform_2(%arg0: i32, %arg1: memref<6xi32, #tpu.memory_space<smem>>) -> (i32, i32) {
    %c0_i32 = arith.constant 0 : i32
    %c0_i32_0 = arith.constant 0 : i32
    %c0_i32_1 = arith.constant 0 : i32
    return %c0_i32, %c0_i32_0 : i32, i32
  }
  func.func @transform_3(%arg0: i32, %arg1: memref<6xi32, #tpu.memory_space<smem>>) -> (i32, i32) {
    %c0_i32 = arith.constant 0 : i32
    %c0_i32_0 = arith.constant 0 : i32
    %c0_i32_1 = arith.constant 0 : i32
    return %c0_i32, %c0_i32_0 : i32, i32
  }
  func.func @transform_4(%arg0: i32, %arg1: memref<6xi32, #tpu.memory_space<smem>>) -> (i32, i32) {
    %c0_i32 = arith.constant 0 : i32
    %c0_i32_0 = arith.constant 0 : i32
    %c0_i32_1 = arith.constant 0 : i32
    return %c0_i32, %c0_i32_0 : i32, i32
  }
  func.func @transform_5(%arg0: i32, %arg1: memref<6xi32, #tpu.memory_space<smem>>) -> (i32, i32) {
    %c0_i32 = arith.constant 0 : i32
    %c0_i32_0 = arith.constant 0 : i32
    return %arg0, %c0_i32 : i32, i32
  }
}

</mosaic_0001>

<llo_original>
// kernel: gap_head_forward.1
$region0: #{gap_head_forward.1}
  #allocation0 [shape = 'u32[]', space=smem, size = 0x4, offset = 0x4, fixed_abs, tag = 'smem constant byte address 0x4 - core index']
  #allocation1 [shape = 'u32[72,128]{1,0:T(1,128)}', space=vmem, size = 0x9000, scoped, tag = 'internal scratch']
  #allocation2 [shape = 'f32[3,2,1024]{2,1,0:T(2,128)}', space=vmem, size = 0x6000, scoped, tag = 'scratch operand']
  #allocation3 [shape = 's32[6]{0}', space=sflag, size = 0x18, scoped, tag = 'scratch operand']
  #allocation4 [shape = 's32[1]{0}', space=sflag, size = 0x4, scoped, tag = 'scoped memory for gap_head_forward.1']
  #allocation5 [shape = 'u8[512]{0}', space=smem, size = 0x200, scoped, tag = 'prefetched SMEM operand 0']
  #allocation15 [shape = 's32[]', space=sflag, size = 0x4, offset = 0, fixed_abs, tag = 'sflag constant byte address 0x0 - dummy sync flag']
  #allocation16 [shape = 's32[]', space=sflag, size = 0x4, offset = 0, fixed_abs, tag = 'sflag constant byte address 0x0 - dummy sync flag']
  #allocation17 [shape = 's32[]', space=sflag, size = 0x4, offset = 0, fixed_abs, tag = 'sflag constant byte address 0x0 - dummy sync flag']
  #allocation18 [shape = 's32[]', space=sflag, size = 0x4, offset = 0, fixed_abs, tag = 'sflag constant byte address 0x0 - dummy sync flag']
  #allocation19 [shape = 's32[]', space=sflag, size = 0x4, offset = 0, fixed_abs, tag = 'sflag constant byte address 0x0 - dummy sync flag']
  #allocation20 [shape = 's32[]', space=sflag, size = 0x4, offset = 0, fixed_abs, tag = 'sflag constant byte address 0x0 - dummy sync flag']
  %s0 = inlined_call_operand.vmem [shape: s32[6], index: 0, kind: input, shape index: {}]
  %s1 = inlined_call_operand.hbm [shape: f32[2,16,1024], index: 1, kind: input, shape index: {}]
  %s2 = inlined_call_operand.hbm [shape: bf16[3,1024,512], index: 2, kind: input, shape index: {}]
  %s3 = inlined_call_operand.hbm [shape: f32[1,512], index: 3, kind: input, shape index: {}]
  %s4 = inlined_call_operand.hbm [shape: f32[512,128], index: 4, kind: input, shape index: {}]
  %s5 = inlined_call_operand.hbm [shape: f32[1,128], index: 5, kind: input, shape index: {}]
  %s6 = inlined_call_operand.hbm [shape: f32[2,128], index: 6, kind: output, shape index: {}]
  %s7 = sld [smem:[#allocation0]]
  $region42: #{gap_head_forward.1} parent=0
    _
  %s9 = ssub.s32 1, %s7
  %s10 = scalar_select 0, %s9, %s7
  %s12 = sshll.u32 %s0, 4
  %s13 = int_to_ptr.vmem [resolvable:$true] %s12
  %15 = dma.vmem_to_smem %s13, 16, [#allocation5], [#allocation4]
  %17 = dma.done [#allocation4], 16
  %18 = sfence
  $region1: #{gap_head_forward.1} parent=0
    #allocation6 [shape = 'u8[3145728]{0}', space=vmem, size = 0x300000, scoped, tag = 'input window, operand 2, single buffered']
    #allocation7 [shape = 's32[1]{0}', space=sflag, size = 0x4, scoped, tag = 'scoped memory for gap_head_forward.1']
    #allocation8 [shape = 's32[1]{0}', space=sflag, size = 0x4, scoped, tag = 'scoped memory for gap_head_forward.1']
    #allocation9 [shape = 'u8[2048]{0}', space=vmem, size = 0x800, scoped, tag = 'input window, operand 3, single buffered']
    #allocation10 [shape = 's32[1]{0}', space=sflag, size = 0x4, scoped, tag = 'scoped memory for gap_head_forward.1']
    #allocation11 [shape = 'u8[262144]{0}', space=vmem, size = 0x40000, scoped, tag = 'input window, operand 4, single buffered']
    #allocation12 [shape = 'u8[512]{0}', space=vmem, size = 0x400, scoped, tag = 'input window, operand 5, single buffered']
    #allocation13 [shape = 's32[1]{0}', space=sflag, size = 0x4, scoped, tag = 'scoped memory for gap_head_forward.1']
    #allocation14 [shape = 'u8[1024]{0}', space=vmem, size = 0x400, scoped, tag = 'output window, operand 0, single buffered']
    %19 = vsyncpa [#allocation7], 0
    %20 = vsyncpa [#allocation10], 0
    %21 = vsyncpa [#allocation13], 0
    %22 = vsyncpa [#allocation8], 0
    // Predicated region
    $region2: #{gap_head_forward.1} parent=1 // pred_check
      _
    $region3: #{gap_head_forward.1} parent=1 // pred_check_branch
      %24 = sbr.rel (0) target = $region5
    $region4: #{gap_head_forward.1} parent=1 // pred_region
      %26 = vsyncadd [#allocation7], 0
      %s27 = sshll.u32 %s2, 4
      %s28 = int_to_ptr.hbm [resolvable:$true] %s27
      %s29 = sshll.u32 [#allocation6], 4
      %s30 = int_to_ptr.vmem [resolvable:$true] %s29
      %35 = dma.hbm_to_vmem [thread:$0]  %s28, 98304, %s30, [#allocation7], 256, 256, 16
    $region5: #{gap_head_forward.1} parent=1 // pred_fallthru
      _
    // Predicated region
    $region6: #{gap_head_forward.1} parent=1 // pred_check
      _
    $region7: #{gap_head_forward.1} parent=1 // pred_check_branch
      %37 = sbr.rel (0) target = $region9
    $region8: #{gap_head_forward.1} parent=1 // pred_region
      %39 = vsyncadd [#allocation10], 0
      %s41 = sshll.u32 %s3, 4
      %s42 = int_to_ptr.hbm [resolvable:$true] %s41
      %s43 = sshll.u32 [#allocation9], 4
      %s44 = int_to_ptr.vmem [resolvable:$true] %s43
      %46 = dma.hbm_to_vmem [thread:$0]  %s42, 64, %s44, [#allocation10]
    $region9: #{gap_head_forward.1} parent=1 // pred_fallthru
      _
    // Predicated region
    $region10: #{gap_head_forward.1} parent=1 // pred_check
      _
    $region11: #{gap_head_forward.1} parent=1 // pred_check_branch
      %48 = sbr.rel (0) target = $region13
    $region12: #{gap_head_forward.1} parent=1 // pred_region
      %50 = vsyncadd [#allocation10], 0
      %s51 = sshll.u32 %s4, 4
      %s52 = int_to_ptr.hbm [resolvable:$true] %s51
      %s53 = sshll.u32 [#allocation11], 4
      %s54 = int_to_ptr.vmem [resolvable:$true] %s53
      %59 = dma.hbm_to_vmem [thread:$0]  %s52, 8192, %s54, [#allocation10], 128, 128, 8
    $region13: #{gap_head_forward.1} parent=1 // pred_fallthru
      _
    // Predicated region
    $region14: #{gap_head_forward.1} parent=1 // pred_check
      _
    $region15: #{gap_head_forward.1} parent=1 // pred_check_branch
      %61 = sbr.rel (0) target = $region17
    $region16: #{gap_head_forward.1} parent=1 // pred_region
      %63 = vsyncadd [#allocation13], 0
      %s65 = sshll.u32 %s5, 4
      %s66 = int_to_ptr.hbm [resolvable:$true] %s65
      %s67 = sshll.u32 [#allocation12], 4
      %s68 = int_to_ptr.vmem [resolvable:$true] %s67
      %70 = dma.hbm_to_vmem [thread:$0]  %s66, 16, %s68, [#allocation13]
    $region17: #{gap_head_forward.1} parent=1 // pred_fallthru
      _
    // Predicated region
    $region18: #{gap_head_forward.1} parent=1 // pred_check
      _
    $region19: #{gap_head_forward.1} parent=1 // pred_check_branch
      %72 = sbr.rel (0) target = $region21
    $region20: #{gap_head_forward.1} parent=1 // pred_region
      %74 = dma.done [#allocation7], 98304
    $region21: #{gap_head_forward.1} parent=1 // pred_fallthru
      _
    // Predicated region
    $region22: #{gap_head_forward.1} parent=1 // pred_check
      _
    $region23: #{gap_head_forward.1} parent=1 // pred_check_branch
      %76 = sbr.rel (0) target = $region25
    $region24: #{gap_head_forward.1} parent=1 // pred_region
      %78 = dma.done [#allocation10], 64
    $region25: #{gap_head_forward.1} parent=1 // pred_fallthru
      _
    // Predicated region
    $region26: #{gap_head_forward.1} parent=1 // pred_check
      _
    $region27: #{gap_head_forward.1} parent=1 // pred_check_branch
      %80 = sbr.rel (0) target = $region29
    $region28: #{gap_head_forward.1} parent=1 // pred_region
      %82 = dma.done [#allocation10], 8192
    $region29: #{gap_head_forward.1} parent=1 // pred_fallthru
      _
    // Predicated region
    $region30: #{gap_head_forward.1} parent=1 // pred_check
      _
    $region31: #{gap_head_forward.1} parent=1 // pred_check_branch
      %84 = sbr.rel (0) target = $region33
    $region32: #{gap_head_forward.1} parent=1 // pred_region
      %86 = dma.done [#allocation13], 16
    $region33: #{gap_head_forward.1} parent=1 // pred_fallthru
      _
    %s87 = smul.u32 0, 2
    %p88 = scmp.lt.s32.totalorder %s87, 1
    %s89 = scalar_select %p88, %s87, 1
    %s90 = smul.u32 %s89, 3
    %s91 = sld [smem:[#allocation5 + %s90]]
    %s92 = sshrl.u32 %s91, 3
    %s93 = sand.u32 %s91, 7
    %s94 = smul.u32 %s92, 64
    %s95 = sadd.s32 %s93, %s94
    %s96 = smul.u32 %s89, 128
    %s97 = sadd.s32 %s95, %s96
    %s98 = scalar_lea.hbm %s1, %s97
    %s99 = sshll.u32 %s98, 4
    %s100 = int_to_ptr.hbm [resolvable:$true] %s99
    %s101 = sshll.u32 [#allocation2], 4
    %s102 = int_to_ptr.vmem [resolvable:$true] %s101
    %106 = dma.hbm_to_vmem [thread:$0]  %s100, 128, %s102, [#allocation3], 128, 32, 1
    %s107 = sadd.s32 %s90, 1
    %s108 = sld [smem:[#allocation5 + %s107]]
    %s109 = sshrl.u32 %s108, 3
    %s110 = sand.u32 %s108, 7
    %s111 = smul.u32 %s109, 64
    %s112 = sadd.s32 %s110, %s111
    %s113 = sadd.s32 %s112, %s96
    %s114 = scalar_lea.hbm %s1, %s113
    %s115 = scalar_lea.vmem [#allocation2], 16
    %s116 = scalar_lea.sflag [#allocation3], 2
    %s117 = sshll.u32 %s114, 4
    %s118 = int_to_ptr.hbm [resolvable:$true] %s117
    %s119 = sshll.u32 %s115, 4
    %s120 = int_to_ptr.vmem [resolvable:$true] %s119
    %124 = dma.hbm_to_vmem [thread:$0]  %s118, 128, %s120, %s116, 128, 32, 1
    %s125 = sadd.s32 %s90, 2
    %s126 = sld [smem:[#allocation5 + %s125]]
    %s127 = sshrl.u32 %s126, 3
    %s128 = sand.u32 %s126, 7
    %s129 = smul.u32 %s127, 64
    %s130 = sadd.s32 %s128, %s129
    %s131 = sadd.s32 %s130, %s96
    %s132 = scalar_lea.hbm %s1, %s131
    %s133 = scalar_lea.vmem [#allocation2], 32
    %s134 = scalar_lea.sflag [#allocation3], 4
    %s135 = sshll.u32 %s132, 4
    %s136 = int_to_ptr.hbm [resolvable:$true] %s135
    %s137 = sshll.u32 %s133, 4
    %s138 = int_to_ptr.vmem [resolvable:$true] %s137
    %142 = dma.hbm_to_vmem [thread:$0]  %s136, 128, %s138, %s134, 128, 32, 1
    %s143 = sadd.s32 %s87, 1
    %p144 = scmp.lt.s32.totalorder %s143, 1
    %s145 = scalar_select %p144, %s143, 1
    %s146 = smul.u32 %s145, 3
    %s147 = sld [smem:[#allocation5 + %s146]]
    %s148 = sshrl.u32 %s147, 3
    %s149 = sand.u32 %s147, 7
    %s150 = smul.u32 %s148, 64
    %s151 = sadd.s32 %s149, %s150
    %s152 = smul.u32 %s145, 128
    %s153 = sadd.s32 %s151, %s152
    %s154 = scalar_lea.hbm %s1, %s153
    %s155 = scalar_lea.vmem [#allocation2], 1
    %s156 = scalar_lea.sflag [#allocation3], 1
    %s157 = sshll.u32 %s154, 4
    %s158 = int_to_ptr.hbm [resolvable:$true] %s157
    %s159 = sshll.u32 %s155, 4
    %s160 = int_to_ptr.vmem [resolvable:$true] %s159
    %164 = dma.hbm_to_vmem [thread:$0]  %s158, 128, %s160, %s156, 128, 32, 1
    %s165 = sadd.s32 %s146, 1
    %s166 = sld [smem:[#allocation5 + %s165]]
    %s167 = sshrl.u32 %s166, 3
    %s168 = sand.u32 %s166, 7
    %s169 = smul.u32 %s167, 64
    %s170 = sadd.s32 %s168, %s169
    %s171 = sadd.s32 %s170, %s152
    %s172 = scalar_lea.hbm %s1, %s171
    %s173 = scalar_lea.vmem [#allocation2], 17
    %s174 = scalar_lea.sflag [#allocation3], 3
    %s175 = sshll.u32 %s172, 4
    %s176 = int_to_ptr.hbm [resolvable:$true] %s175
    %s177 = sshll.u32 %s173, 4
    %s178 = int_to_ptr.vmem [resolvable:$true] %s177
    %182 = dma.hbm_to_vmem [thread:$0]  %s176, 128, %s178, %s174, 128, 32, 1
    %s183 = sadd.s32 %s146, 2
    %s184 = sld [smem:[#allocation5 + %s183]]
    %s185 = sshrl.u32 %s184, 3
    %s186 = sand.u32 %s184, 7
    %s187 = smul.u32 %s185, 64
    %s188 = sadd.s32 %s186, %s187
    %s189 = sadd.s32 %s188, %s152
    %s190 = scalar_lea.hbm %s1, %s189
    %s191 = scalar_lea.vmem [#allocation2], 33
    %s192 = scalar_lea.sflag [#allocation3], 5
    %s193 = sshll.u32 %s190, 4
    %s194 = int_to_ptr.hbm [resolvable:$true] %s193
    %s195 = sshll.u32 %s191, 4
    %s196 = int_to_ptr.vmem [resolvable:$true] %s195
    %200 = dma.hbm_to_vmem [thread:$0]  %s194, 128, %s196, %s192, 128, 32, 1
    %s201 = smul.u32 1, 8
    %s202 = sshll.u32 %s201, 4
    %203 = dma.done [#allocation3], %s202
    %s204 = sshll.u32 %s201, 4
    %205 = dma.done %s116, %s204
    %s206 = sshll.u32 %s201, 4
    %207 = dma.done %s134, %s206
    %s208 = sshll.u32 %s201, 4
    %209 = dma.done %s156, %s208
    %s210 = sshll.u32 %s201, 4
    %211 = dma.done %s174, %s210
    %s212 = sshll.u32 %s201, 4
    %213 = dma.done %s192, %s212
    %v214 = vld [vmem:[#allocation2] sm:$0xff]
    %v215 = vld [vmem:[#allocation2 + $0x8] sm:$0xff]
    %218 = vst [vmem:[#allocation1] ss:$4 sm:$0xff] %v214
    %s219 = scalar_lea.vmem [#allocation1], 32
    %220 = vst [vmem:[%s219] ss:$4 sm:$0xff] %v215
    %v221 = vld.sshfl [vmem:[#allocation1] sm:$0xff pattern:$0x73625140]
    %v222 = vld.sshfl [vmem:[#allocation1 + $0x8] sm:$0xff pattern:$0x73625140]
    %v223 = vld.sshfl [vmem:[#allocation1 + $0x10] sm:$0xff pattern:$0x73625140]
    %v224 = vld.sshfl [vmem:[#allocation1 + $0x18] sm:$0xff pattern:$0x73625140]
    %v225 = vld.sshfl [vmem:[#allocation1 + $0x20] sm:$0xff pattern:$0x73625140]
    %v226 = vld.sshfl [vmem:[#allocation1 + $0x28] sm:$0xff pattern:$0x73625140]
    %v227 = vld.sshfl [vmem:[#allocation1 + $0x30] sm:$0xff pattern:$0x73625140]
    %v228 = vld.sshfl [vmem:[#allocation1 + $0x38] sm:$0xff pattern:$0x73625140]
    %v237 = vpack.c.bf16 %v221, %v221
    %v238 = vpack.c.bf16 %v222, %v222
    %v239 = vpack.c.bf16 %v223, %v223
    %v240 = vpack.c.bf16 %v224, %v224
    %v241 = vpack.c.bf16 %v225, %v225
    %v242 = vpack.c.bf16 %v226, %v226
    %v243 = vpack.c.bf16 %v227, %v227
    %v244 = vpack.c.bf16 %v228, %v228
    %v245 = vld [vmem:[#allocation6] sm:$0xff]
    %v246 = vld [vmem:[#allocation6 + $0x8] sm:$0xff]
    %v247 = vld [vmem:[#allocation6 + $0x10] sm:$0xff]
    %v248 = vld [vmem:[#allocation6 + $0x18] sm:$0xff]
    %v249 = vld [vmem:[#allocation6 + $0x20] sm:$0xff]
    %v250 = vld [vmem:[#allocation6 + $0x28] sm:$0xff]
    %v251 = vld [vmem:[#allocation6 + $0x30] sm:$0xff]
    %v252 = vld [vmem:[#allocation6 + $0x38] sm:$0xff]
    %v253 = vld [vmem:[#allocation6 + $0x40] sm:$0xff]
    %v254 = vld [vmem:[#allocation6 + $0x48] sm:$0xff]
    %v255 = vld [vmem:[#allocation6 + $0x50] sm:$0xff]
    %v256 = vld [vmem:[#allocation6 + $0x58] sm:$0xff]
    %v257 = vld [vmem:[#allocation6 + $0x60] sm:$0xff]
    %v258 = vld [vmem:[#allocation6 + $0x68] sm:$0xff]
    %v259 = vld [vmem:[#allocation6 + $0x70] sm:$0xff]
    %v260 = vld [vmem:[#allocation6 + $0x78] sm:$0xff]
    %v261 = vld [vmem:[#allocation6 + $0x80] sm:$0xff]
    %v262 = vld [vmem:[#allocation6 + $0x88] sm:$0xff]
    %v263 = vld [vmem:[#allocation6 + $0x90] sm:$0xff]
    %v264 = vld [vmem:[#allocation6 + $0x98] sm:$0xff]
    %v265 = vld [vmem:[#allocation6 + $0xa0] sm:$0xff]
    %v266 = vld [vmem:[#allocation6 + $0xa8] sm:$0xff]
    %v267 = vld [vmem:[#allocation6 + $0xb0] sm:$0xff]
    %v268 = vld [vmem:[#allocation6 + $0xb8] sm:$0xff]
    %v269 = vld [vmem:[#allocation6 + $0xc0] sm:$0xff]
    %v270 = vld [vmem:[#allocation6 + $0xc8] sm:$0xff]
    %v271 = vld [vmem:[#allocation6 + $0xd0] sm:$0xff]
    %v272 = vld [vmem:[#allocation6 + $0xd8] sm:$0xff]
    %v273 = vld [vmem:[#allocation6 + $0xe0] sm:$0xff]
    %v274 = vld [vmem:[#allocation6 + $0xe8] sm:$0xff]
    %v275 = vld [vmem:[#allocation6 + $0xf0] sm:$0xff]
    %v276 = vld [vmem:[#allocation6 + $0xf8] sm:$0xff]
    %v277 = vld [vmem:[#allocation6 + $0x100] sm:$0xff]
    %v278 = vld [vmem:[#allocation6 + $0x108] sm:$0xff]
    %v279 = vld [vmem:[#allocation6 + $0x110] sm:$0xff]
    %v280 = vld [vmem:[#allocation6 + $0x118] sm:$0xff]
    %v281 = vld [vmem:[#allocation6 + $0x120] sm:$0xff]
    %v282 = vld [vmem:[#allocation6 + $0x128] sm:$0xff]
    %v283 = vld [vmem:[#allocation6 + $0x130] sm:$0xff]
    %v284 = vld [vmem:[#allocation6 + $0x138] sm:$0xff]
    %v285 = vld [vmem:[#allocation6 + $0x140] sm:$0xff]
    %v286 = vld [vmem:[#allocation6 + $0x148] sm:$0xff]
    %v287 = vld [vmem:[#allocation6 + $0x150] sm:$0xff]
    %v288 = vld [vmem:[#allocation6 + $0x158] sm:$0xff]
    %v289 = vld [vmem:[#allocation6 + $0x160] sm:$0xff]
    %v290 = vld [vmem:[#allocation6 + $0x168] sm:$0xff]
    %v291 = vld [vmem:[#allocation6 + $0x170] sm:$0xff]
    %v292 = vld [vmem:[#allocation6 + $0x178] sm:$0xff]
    %v293 = vld [vmem:[#allocation6 + $0x180] sm:$0xff]
    %v294 = vld [vmem:[#allocation6 + $0x188] sm:$0xff]
    %v295 = vld [vmem:[#allocation6 + $0x190] sm:$0xff]
    %v296 = vld [vmem:[#allocation6 + $0x198] sm:$0xff]
    %v297 = vld [vmem:[#allocation6 + $0x1a0] sm:$0xff]
    %v298 = vld [vmem:[#allocation6 + $0x1a8] sm:$0xff]
    %v299 = vld [vmem:[#allocation6 + $0x1b0] sm:$0xff]
    %v300 = vld [vmem:[#allocation6 + $0x1b8] sm:$0xff]
    %v301 = vld [vmem:[#allocation6 + $0x1c0] sm:$0xff]
    %v302 = vld [vmem:[#allocation6 + $0x1c8] sm:$0xff]
    %v303 = vld [vmem:[#allocation6 + $0x1d0] sm:$0xff]
    %v304 = vld [vmem:[#allocation6 + $0x1d8] sm:$0xff]
    %v305 = vld [vmem:[#allocation6 + $0x1e0] sm:$0xff]
    %v306 = vld [vmem:[#allocation6 + $0x1e8] sm:$0xff]
    %v307 = vld [vmem:[#allocation6 + $0x1f0] sm:$0xff]
    %v308 = vld [vmem:[#allocation6 + $0x1f8] sm:$0xff]
    %v309 = vld [vmem:[#allocation6 + $0x200] sm:$0xff]
    %v310 = vld [vmem:[#allocation6 + $0x208] sm:$0xff]
    %v311 = vld [vmem:[#allocation6 + $0x210] sm:$0xff]
    %v312 = vld [vmem:[#allocation6 + $0x218] sm:$0xff]
    %v313 = vld [vmem:[#allocation6 + $0x220] sm:$0xff]
    %v314 = vld [vmem:[#allocation6 + $0x228] sm:$0xff]
    %v315 = vld [vmem:[#allocation6 + $0x230] sm:$0xff]
    %v316 = vld [vmem:[#allocation6 + $0x238] sm:$0xff]
    %v317 = vld [vmem:[#allocation6 + $0x240] sm:$0xff]
    %v318 = vld [vmem:[#allocation6 + $0x248] sm:$0xff]
    %v319 = vld [vmem:[#allocation6 + $0x250] sm:$0xff]
    %v320 = vld [vmem:[#allocation6 + $0x258] sm:$0xff]
    %v321 = vld [vmem:[#allocation6 + $0x260] sm:$0xff]
    %v322 = vld [vmem:[#allocation6 + $0x268] sm:$0xff]
    %v323 = vld [vmem:[#allocation6 + $0x270] sm:$0xff]
    %v324 = vld [vmem:[#allocation6 + $0x278] sm:$0xff]
    %v325 = vld [vmem:[#allocation6 + $0x280] sm:$0xff]
    %v326 = vld [vmem:[#allocation6 + $0x288] sm:$0xff]
    %v327 = vld [vmem:[#allocation6 + $0x290] sm:$0xff]
    %v328 = vld [vmem:[#allocation6 + $0x298] sm:$0xff]
    %v329 = vld [vmem:[#allocation6 + $0x2a0] sm:$0xff]
    %v330 = vld [vmem:[#allocation6 + $0x2a8] sm:$0xff]
    %v331 = vld [vmem:[#allocation6 + $0x2b0] sm:$0xff]
    %v332 = vld [vmem:[#allocation6 + $0x2b8] sm:$0xff]
    %v333 = vld [vmem:[#allocation6 + $0x2c0] sm:$0xff]
    %v334 = vld [vmem:[#allocation6 + $0x2c8] sm:$0xff]
    %v335 = vld [vmem:[#allocation6 + $0x2d0] sm:$0xff]
    %v336 = vld [vmem:[#allocation6 + $0x2d8] sm:$0xff]
    %v337 = vld [vmem:[#allocation6 + $0x2e0] sm:$0xff]
    %v338 = vld [vmem:[#allocation6 + $0x2e8] sm:$0xff]
    %v339 = vld [vmem:[#allocation6 + $0x2f0] sm:$0xff]
    %v340 = vld [vmem:[#allocation6 + $0x2f8] sm:$0xff]
    %v341 = vld [vmem:[#allocation6 + $0x300] sm:$0xff]
    %v342 = vld [vmem:[#allocation6 + $0x308] sm:$0xff]
    %v343 = vld [vmem:[#allocation6 + $0x310] sm:$0xff]
    %v344 = vld [vmem:[#allocation6 + $0x318] sm:$0xff]
    %v345 = vld [vmem:[#allocation6 + $0x320] sm:$0xff]
    %v346 = vld [vmem:[#allocation6 + $0x328] sm:$0xff]
    %v347 = vld [vmem:[#allocation6 + $0x330] sm:$0xff]
    %v348 = vld [vmem:[#allocation6 + $0x338] sm:$0xff]
    %v349 = vld [vmem:[#allocation6 + $0x340] sm:$0xff]
    %v350 = vld [vmem:[#allocation6 + $0x348] sm:$0xff]
    %v351 = vld [vmem:[#allocation6 + $0x350] sm:$0xff]
    %v352 = vld [vmem:[#allocation6 + $0x358] sm:$0xff]
    %v353 = vld [vmem:[#allocation6 + $0x360] sm:$0xff]
    %v354 = vld [vmem:[#allocation6 + $0x368] sm:$0xff]
    %v355 = vld [vmem:[#allocation6 + $0x370] sm:$0xff]
    %v356 = vld [vmem:[#allocation6 + $0x378] sm:$0xff]
    %v357 = vld [vmem:[#allocation6 + $0x380] sm:$0xff]
    %v358 = vld [vmem:[#allocation6 + $0x388] sm:$0xff]
    %v359 = vld [vmem:[#allocation6 + $0x390] sm:$0xff]
    %v360 = vld [vmem:[#allocation6 + $0x398] sm:$0xff]
    %v361 = vld [vmem:[#allocation6 + $0x3a0] sm:$0xff]
    %v362 = vld [vmem:[#allocation6 + $0x3a8] sm:$0xff]
    %v363 = vld [vmem:[#allocation6 + $0x3b0] sm:$0xff]
    %v364 = vld [vmem:[#allocation6 + $0x3b8] sm:$0xff]
    %v365 = vld [vmem:[#allocation6 + $0x3c0] sm:$0xff]
    %v366 = vld [vmem:[#allocation6 + $0x3c8] sm:$0xff]
    %v367 = vld [vmem:[#allocation6 + $0x3d0] sm:$0xff]
    %v368 = vld [vmem:[#allocation6 + $0x3d8] sm:$0xff]
    %v369 = vld [vmem:[#allocation6 + $0x3e0] sm:$0xff]
    %v370 = vld [vmem:[#allocation6 + $0x3e8] sm:$0xff]
    %v371 = vld [vmem:[#allocation6 + $0x3f0] sm:$0xff]
    %v372 = vld [vmem:[#allocation6 + $0x3f8] sm:$0xff]
    %v373 = vld [vmem:[#allocation6 + $0x400] sm:$0xff]
    %v374 = vld [vmem:[#allocation6 + $0x408] sm:$0xff]
    %v375 = vld [vmem:[#allocation6 + $0x410] sm:$0xff]
    %v376 = vld [vmem:[#allocation6 + $0x418] sm:$0xff]
    %v377 = vld [vmem:[#allocation6 + $0x420] sm:$0xff]
    %v378 = vld [vmem:[#allocation6 + $0x428] sm:$0xff]
    %v379 = vld [vmem:[#allocation6 + $0x430] sm:$0xff]
    %v380 = vld [vmem:[#allocation6 + $0x438] sm:$0xff]
    %v381 = vld [vmem:[#allocation6 + $0x440] sm:$0xff]
    %v382 = vld [vmem:[#allocation6 + $0x448] sm:$0xff]
    %v383 = vld [vmem:[#allocation6 + $0x450] sm:$0xff]
    %v384 = vld [vmem:[#allocation6 + $0x458] sm:$0xff]
    %v385 = vld [vmem:[#allocation6 + $0x460] sm:$0xff]
    %v386 = vld [vmem:[#allocation6 + $0x468] sm:$0xff]
    %v387 = vld [vmem:[#allocation6 + $0x470] sm:$0xff]
    %v388 = vld [vmem:[#allocation6 + $0x478] sm:$0xff]
    %v389 = vld [vmem:[#allocation6 + $0x480] sm:$0xff]
    %v390 = vld [vmem:[#allocation6 + $0x488] sm:$0xff]
    %v391 = vld [vmem:[#allocation6 + $0x490] sm:$0xff]
    %v392 = vld [vmem:[#allocation6 + $0x498] sm:$0xff]
    %v393 = vld [vmem:[#allocation6 + $0x4a0] sm:$0xff]
    %v394 = vld [vmem:[#allocation6 + $0x4a8] sm:$0xff]
    %v395 = vld [vmem:[#allocation6 + $0x4b0] sm:$0xff]
    %v396 = vld [vmem:[#allocation6 + $0x4b8] sm:$0xff]
    %v397 = vld [vmem:[#allocation6 + $0x4c0] sm:$0xff]
    %v398 = vld [vmem:[#allocation6 + $0x4c8] sm:$0xff]
    %v399 = vld [vmem:[#allocation6 + $0x4d0] sm:$0xff]
    %v400 = vld [vmem:[#allocation6 + $0x4d8] sm:$0xff]
    %v401 = vld [vmem:[#allocation6 + $0x4e0] sm:$0xff]
    %v402 = vld [vmem:[#allocation6 + $0x4e8] sm:$0xff]
    %v403 = vld [vmem:[#allocation6 + $0x4f0] sm:$0xff]
    %v404 = vld [vmem:[#allocation6 + $0x4f8] sm:$0xff]
    %v405 = vld [vmem:[#allocation6 + $0x500] sm:$0xff]
    %v406 = vld [vmem:[#allocation6 + $0x508] sm:$0xff]
    %v407 = vld [vmem:[#allocation6 + $0x510] sm:$0xff]
    %v408 = vld [vmem:[#allocation6 + $0x518] sm:$0xff]
    %v409 = vld [vmem:[#allocation6 + $0x520] sm:$0xff]
    %v410 = vld [vmem:[#allocation6 + $0x528] sm:$0xff]
    %v411 = vld [vmem:[#allocation6 + $0x530] sm:$0xff]
    %v412 = vld [vmem:[#allocation6 + $0x538] sm:$0xff]
    %v413 = vld [vmem:[#allocation6 + $0x540] sm:$0xff]
    %v414 = vld [vmem:[#allocation6 + $0x548] sm:$0xff]
    %v415 = vld [vmem:[#allocation6 + $0x550] sm:$0xff]
    %v416 = vld [vmem:[#allocation6 + $0x558] sm:$0xff]
    %v417 = vld [vmem:[#allocation6 + $0x560] sm:$0xff]
    %v418 = vld [vmem:[#allocation6 + $0x568] sm:$0xff]
    %v419 = vld [vmem:[#allocation6 + $0x570] sm:$0xff]
    %v420 = vld [vmem:[#allocation6 + $0x578] sm:$0xff]
    %v421 = vld [vmem:[#allocation6 + $0x580] sm:$0xff]
    %v422 = vld [vmem:[#allocation6 + $0x588] sm:$0xff]
    %v423 = vld [vmem:[#allocation6 + $0x590] sm:$0xff]
    %v424 = vld [vmem:[#allocation6 + $0x598] sm:$0xff]
    %v425 = vld [vmem:[#allocation6 + $0x5a0] sm:$0xff]
    %v426 = vld [vmem:[#allocation6 + $0x5a8] sm:$0xff]
    %v427 = vld [vmem:[#allocation6 + $0x5b0] sm:$0xff]
    %v428 = vld [vmem:[#allocation6 + $0x5b8] sm:$0xff]
    %v429 = vld [vmem:[#allocation6 + $0x5c0] sm:$0xff]
    %v430 = vld [vmem:[#allocation6 + $0x5c8] sm:$0xff]
    %v431 = vld [vmem:[#allocation6 + $0x5d0] sm:$0xff]
    %v432 = vld [vmem:[#allocation6 + $0x5d8] sm:$0xff]
    %v433 = vld [vmem:[#allocation6 + $0x5e0] sm:$0xff]
    %v434 = vld [vmem:[#allocation6 + $0x5e8] sm:$0xff]
    %v435 = vld [vmem:[#allocation6 + $0x5f0] sm:$0xff]
    %v436 = vld [vmem:[#allocation6 + $0x5f8] sm:$0xff]
    %v437 = vld [vmem:[#allocation6 + $0x600] sm:$0xff]
    %v438 = vld [vmem:[#allocation6 + $0x608] sm:$0xff]
    %v439 = vld [vmem:[#allocation6 + $0x610] sm:$0xff]
    %v440 = vld [vmem:[#allocation6 + $0x618] sm:$0xff]
    %v441 = vld [vmem:[#allocation6 + $0x620] sm:$0xff]
    %v442 = vld [vmem:[#allocation6 + $0x628] sm:$0xff]
    %v443 = vld [vmem:[#allocation6 + $0x630] sm:$0xff]
    %v444 = vld [vmem:[#allocation6 + $0x638] sm:$0xff]
    %v445 = vld [vmem:[#allocation6 + $0x640] sm:$0xff]
    %v446 = vld [vmem:[#allocation6 + $0x648] sm:$0xff]
    %v447 = vld [vmem:[#allocation6 + $0x650] sm:$0xff]
    %v448 = vld [vmem:[#allocation6 + $0x658] sm:$0xff]
    %v449 = vld [vmem:[#allocation6 + $0x660] sm:$0xff]
    %v450 = vld [vmem:[#allocation6 + $0x668] sm:$0xff]
    %v451 = vld [vmem:[#allocation6 + $0x670] sm:$0xff]
    %v452 = vld [vmem:[#allocation6 + $0x678] sm:$0xff]
    %v453 = vld [vmem:[#allocation6 + $0x680] sm:$0xff]
    %v454 = vld [vmem:[#allocation6 + $0x688] sm:$0xff]
    %v455 = vld [vmem:[#allocation6 + $0x690] sm:$0xff]
    %v456 = vld [vmem:[#allocation6 + $0x698] sm:$0xff]
    %v457 = vld [vmem:[#allocation6 + $0x6a0] sm:$0xff]
    %v458 = vld [vmem:[#allocation6 + $0x6a8] sm:$0xff]
    %v459 = vld [vmem:[#allocation6 + $0x6b0] sm:$0xff]
    %v460 = vld [vmem:[#allocation6 + $0x6b8] sm:$0xff]
    %v461 = vld [vmem:[#allocation6 + $0x6c0] sm:$0xff]
    %v462 = vld [vmem:[#allocation6 + $0x6c8] sm:$0xff]
    %v463 = vld [vmem:[#allocation6 + $0x6d0] sm:$0xff]
    %v464 = vld [vmem:[#allocation6 + $0x6d8] sm:$0xff]
    %v465 = vld [vmem:[#allocation6 + $0x6e0] sm:$0xff]
    %v466 = vld [vmem:[#allocation6 + $0x6e8] sm:$0xff]
    %v467 = vld [vmem:[#allocation6 + $0x6f0] sm:$0xff]
    %v468 = vld [vmem:[#allocation6 + $0x6f8] sm:$0xff]
    %v469 = vld [vmem:[#allocation6 + $0x700] sm:$0xff]
    %v470 = vld [vmem:[#allocation6 + $0x708] sm:$0xff]
    %v471 = vld [vmem:[#allocation6 + $0x710] sm:$0xff]
    %v472 = vld [vmem:[#allocation6 + $0x718] sm:$0xff]
    %v473 = vld [vmem:[#allocation6 + $0x720] sm:$0xff]
    %v474 = vld [vmem:[#allocation6 + $0x728] sm:$0xff]
    %v475 = vld [vmem:[#allocation6 + $0x730] sm:$0xff]
    %v476 = vld [vmem:[#allocation6 + $0x738] sm:$0xff]
    %v477 = vld [vmem:[#allocation6 + $0x740] sm:$0xff]
    %v478 = vld [vmem:[#allocation6 + $0x748] sm:$0xff]
    %v479 = vld [vmem:[#allocation6 + $0x750] sm:$0xff]
    %v480 = vld [vmem:[#allocation6 + $0x758] sm:$0xff]
    %v481 = vld [vmem:[#allocation6 + $0x760] sm:$0xff]
    %v482 = vld [vmem:[#allocation6 + $0x768] sm:$0xff]
    %v483 = vld [vmem:[#allocation6 + $0x770] sm:$0xff]
    %v484 = vld [vmem:[#allocation6 + $0x778] sm:$0xff]
    %v485 = vld [vmem:[#allocation6 + $0x780] sm:$0xff]
    %v486 = vld [vmem:[#allocation6 + $0x788] sm:$0xff]
    %v487 = vld [vmem:[#allocation6 + $0x790] sm:$0xff]
    %v488 = vld [vmem:[#allocation6 + $0x798] sm:$0xff]
    %v489 = vld [vmem:[#allocation6 + $0x7a0] sm:$0xff]
    %v490 = vld [vmem:[#allocation6 + $0x7a8] sm:$0xff]
    %v491 = vld [vmem:[#allocation6 + $0x7b0] sm:$0xff]
    %v492 = vld [vmem:[#allocation6 + $0x7b8] sm:$0xff]
    %v493 = vld [vmem:[#allocation6 + $0x7c0] sm:$0xff]
    %v494 = vld [vmem:[#allocation6 + $0x7c8] sm:$0xff]
    %v495 = vld [vmem:[#allocation6 + $0x7d0] sm:$0xff]
    %v496 = vld [vmem:[#allocation6 + $0x7d8] sm:$0xff]
    %v497 = vld [vmem:[#allocation6 + $0x7e0] sm:$0xff]
    %v498 = vld [vmem:[#allocation6 + $0x7e8] sm:$0xff]
    %v499 = vld [vmem:[#allocation6 + $0x7f0] sm:$0xff]
    %v500 = vld [vmem:[#allocation6 + $0x7f8] sm:$0xff]
    %s501 = scalar_lea.vmem [#allocation2], 16
    %v502 = vld [vmem:[%s501] sm:$0xff]
    %v503 = vld [vmem:[%s501 + $0x8] sm:$0xff]
    %506 = vst [vmem:[#allocation1] ss:$4 sm:$0xff] %v502
    %s507 = scalar_lea.vmem [#allocation1], 32
    %508 = vst [vmem:[%s507] ss:$4 sm:$0xff] %v503
    %v509 = vld.sshfl [vmem:[#allocation1] sm:$0xff pattern:$0x73625140]
    %v510 = vld.sshfl [vmem:[#allocation1 + $0x8] sm:$0xff pattern:$0x73625140]
    %v511 = vld.sshfl [vmem:[#allocation1 + $0x10] sm:$0xff pattern:$0x73625140]
    %v512 = vld.sshfl [vmem:[#allocation1 + $0x18] sm:$0xff pattern:$0x73625140]
    %v513 = vld.sshfl [vmem:[#allocation1 + $0x20] sm:$0xff pattern:$0x73625140]
    %v514 = vld.sshfl [vmem:[#allocation1 + $0x28] sm:$0xff pattern:$0x73625140]
    %v515 = vld.sshfl [vmem:[#allocation1 + $0x30] sm:$0xff pattern:$0x73625140]
    %v516 = vld.sshfl [vmem:[#allocation1 + $0x38] sm:$0xff pattern:$0x73625140]
    %v525 = vpack.c.bf16 %v509, %v509
    %v526 = vpack.c.bf16 %v510, %v510
    %v527 = vpack.c.bf16 %v511, %v511
    %v528 = vpack.c.bf16 %v512, %v512
    %v529 = vpack.c.bf16 %v513, %v513
    %v530 = vpack.c.bf16 %v514, %v514
    %v531 = vpack.c.bf16 %v515, %v515
    %v532 = vpack.c.bf16 %v516, %v516
    %s533 = scalar_lea.vmem [#allocation6], 2048
    %v534 = vld [vmem:[%s533] sm:$0xff]
    %v535 = vld [vmem:[%s533 + $0x8] sm:$0xff]
    %v536 = vld [vmem:[%s533 + $0x10] sm:$0xff]
    %v537 = vld [vmem:[%s533 + $0x18] sm:$0xff]
    %v538 = vld [vmem:[%s533 + $0x20] sm:$0xff]
    %v539 = vld [vmem:[%s533 + $0x28] sm:$0xff]
    %v540 = vld [vmem:[%s533 + $0x30] sm:$0xff]
    %v541 = vld [vmem:[%s533 + $0x38] sm:$0xff]
    %v542 = vld [vmem:[%s533 + $0x40] sm:$0xff]
    %v543 = vld [vmem:[%s533 + $0x48] sm:$0xff]
    %v544 = vld [vmem:[%s533 + $0x50] sm:$0xff]
    %v545 = vld [vmem:[%s533 + $0x58] sm:$0xff]
    %v546 = vld [vmem:[%s533 + $0x60] sm:$0xff]
    %v547 = vld [vmem:[%s533 + $0x68] sm:$0xff]
    %v548 = vld [vmem:[%s533 + $0x70] sm:$0xff]
    %v549 = vld [vmem:[%s533 + $0x78] sm:$0xff]
    %v550 = vld [vmem:[%s533 + $0x80] sm:$0xff]
    %v551 = vld [vmem:[%s533 + $0x88] sm:$0xff]
    %v552 = vld [vmem:[%s533 + $0x90] sm:$0xff]
    %v553 = vld [vmem:[%s533 + $0x98] sm:$0xff]
    %v554 = vld [vmem:[%s533 + $0xa0] sm:$0xff]
    %v555 = vld [vmem:[%s533 + $0xa8] sm:$0xff]
    %v556 = vld [vmem:[%s533 + $0xb0] sm:$0xff]
    %v557 = vld [vmem:[%s533 + $0xb8] sm:$0xff]
    %v558 = vld [vmem:[%s533 + $0xc0] sm:$0xff]
    %v559 = vld [vmem:[%s533 + $0xc8] sm:$0xff]
    %v560 = vld [vmem:[%s533 + $0xd0] sm:$0xff]
    %v561 = vld [vmem:[%s533 + $0xd8] sm:$0xff]
    %v562 = vld [vmem:[%s533 + $0xe0] sm:$0xff]
    %v563 = vld [vmem:[%s533 + $0xe8] sm:$0xff]
    %v564 = vld [vmem:[%s533 + $0xf0] sm:$0xff]
    %v565 = vld [vmem:[%s533 + $0xf8] sm:$0xff]
    %v566 = vld [vmem:[%s533 + $0x100] sm:$0xff]
    %v567 = vld [vmem:[%s533 + $0x108] sm:$0xff]
    %v568 = vld [vmem:[%s533 + $0x110] sm:$0xff]
    %v569 = vld [vmem:[%s533 + $0x118] sm:$0xff]
    %v570 = vld [vmem:[%s533 + $0x120] sm:$0xff]
    %v571 = vld [vmem:[%s533 + $0x128] sm:$0xff]
    %v572 = vld [vmem:[%s533 + $0x130] sm:$0xff]
    %v573 = vld [vmem:[%s533 + $0x138] sm:$0xff]
    %v574 = vld [vmem:[%s533 + $0x140] sm:$0xff]
    %v575 = vld [vmem:[%s533 + $0x148] sm:$0xff]
    %v576 = vld [vmem:[%s533 + $0x150] sm:$0xff]
    %v577 = vld [vmem:[%s533 + $0x158] sm:$0xff]
    %v578 = vld [vmem:[%s533 + $0x160] sm:$0xff]
    %v579 = vld [vmem:[%s533 + $0x168] sm:$0xff]
    %v580 = vld [vmem:[%s533 + $0x170] sm:$0xff]
    %v581 = vld [vmem:[%s533 + $0x178] sm:$0xff]
    %v582 = vld [vmem:[%s533 + $0x180] sm:$0xff]
    %v583 = vld [vmem:[%s533 + $0x188] sm:$0xff]
    %v584 = vld [vmem:[%s533 + $0x190] sm:$0xff]
    %v585 = vld [vmem:[%s533 + $0x198] sm:$0xff]
    %v586 = vld [vmem:[%s533 + $0x1a0] sm:$0xff]
    %v587 = vld [vmem:[%s533 + $0x1a8] sm:$0xff]
    %v588 = vld [vmem:[%s533 + $0x1b0] sm:$0xff]
    %v589 = vld [vmem:[%s533 + $0x1b8] sm:$0xff]
    %v590 = vld [vmem:[%s533 + $0x1c0] sm:$0xff]
    %v591 = vld [vmem:[%s533 + $0x1c8] sm:$0xff]
    %v592 = vld [vmem:[%s533 + $0x1d0] sm:$0xff]
    %v593 = vld [vmem:[%s533 + $0x1d8] sm:$0xff]
    %v594 = vld [vmem:[%s533 + $0x1e0] sm:$0xff]
    %v595 = vld [vmem:[%s533 + $0x1e8] sm:$0xff]
    %v596 = vld [vmem:[%s533 + $0x1f0] sm:$0xff]
    %v597 = vld [vmem:[%s533 + $0x1f8] sm:$0xff]
    %v598 = vld [vmem:[%s533 + $0x200] sm:$0xff]
    %v599 = vld [vmem:[%s533 + $0x208] sm:$0xff]
    %v600 = vld [vmem:[%s533 + $0x210] sm:$0xff]
    %v601 = vld [vmem:[%s533 + $0x218] sm:$0xff]
    %v602 = vld [vmem:[%s533 + $0x220] sm:$0xff]
    %v603 = vld [vmem:[%s533 + $0x228] sm:$0xff]
    %v604 = vld [vmem:[%s533 + $0x230] sm:$0xff]
    %v605 = vld [vmem:[%s533 + $0x238] sm:$0xff]
    %v606 = vld [vmem:[%s533 + $0x240] sm:$0xff]
    %v607 = vld [vmem:[%s533 + $0x248] sm:$0xff]
    %v608 = vld [vmem:[%s533 + $0x250] sm:$0xff]
    %v609 = vld [vmem:[%s533 + $0x258] sm:$0xff]
    %v610 = vld [vmem:[%s533 + $0x260] sm:$0xff]
    %v611 = vld [vmem:[%s533 + $0x268] sm:$0xff]
    %v612 = vld [vmem:[%s533 + $0x270] sm:$0xff]
    %v613 = vld [vmem:[%s533 + $0x278] sm:$0xff]
    %v614 = vld [vmem:[%s533 + $0x280] sm:$0xff]
    %v615 = vld [vmem:[%s533 + $0x288] sm:$0xff]
    %v616 = vld [vmem:[%s533 + $0x290] sm:$0xff]
    %v617 = vld [vmem:[%s533 + $0x298] sm:$0xff]
    %v618 = vld [vmem:[%s533 + $0x2a0] sm:$0xff]
    %v619 = vld [vmem:[%s533 + $0x2a8] sm:$0xff]
    %v620 = vld [vmem:[%s533 + $0x2b0] sm:$0xff]
    %v621 = vld [vmem:[%s533 + $0x2b8] sm:$0xff]
    %v622 = vld [vmem:[%s533 + $0x2c0] sm:$0xff]
    %v623 = vld [vmem:[%s533 + $0x2c8] sm:$0xff]
    %v624 = vld [vmem:[%s533 + $0x2d0] sm:$0xff]
    %v625 = vld [vmem:[%s533 + $0x2d8] sm:$0xff]
    %v626 = vld [vmem:[%s533 + $0x2e0] sm:$0xff]
    %v627 = vld [vmem:[%s533 + $0x2e8] sm:$0xff]
    %v628 = vld [vmem:[%s533 + $0x2f0] sm:$0xff]
    %v629 = vld [vmem:[%s533 + $0x2f8] sm:$0xff]
    %v630 = vld [vmem:[%s533 + $0x300] sm:$0xff]
    %v631 = vld [vmem:[%s533 + $0x308] sm:$0xff]
    %v632 = vld [vmem:[%s533 + $0x310] sm:$0xff]
    %v633 = vld [vmem:[%s533 + $0x318] sm:$0xff]
    %v634 = vld [vmem:[%s533 + $0x320] sm:$0xff]
    %v635 = vld [vmem:[%s533 + $0x328] sm:$0xff]
    %v636 = vld [vmem:[%s533 + $0x330] sm:$0xff]
    %v637 = vld [vmem:[%s533 + $0x338] sm:$0xff]
    %v638 = vld [vmem:[%s533 + $0x340] sm:$0xff]
    %v639 = vld [vmem:[%s533 + $0x348] sm:$0xff]
    %v640 = vld [vmem:[%s533 + $0x350] sm:$0xff]
    %v641 = vld [vmem:[%s533 + $0x358] sm:$0xff]
    %v642 = vld [vmem:[%s533 + $0x360] sm:$0xff]
    %v643 = vld [vmem:[%s533 + $0x368] sm:$0xff]
    %v644 = vld [vmem:[%s533 + $0x370] sm:$0xff]
    %v645 = vld [vmem:[%s533 + $0x378] sm:$0xff]
    %v646 = vld [vmem:[%s533 + $0x380] sm:$0xff]
    %v647 = vld [vmem:[%s533 + $0x388] sm:$0xff]
    %v648 = vld [vmem:[%s533 + $0x390] sm:$0xff]
    %v649 = vld [vmem:[%s533 + $0x398] sm:$0xff]
    %v650 = vld [vmem:[%s533 + $0x3a0] sm:$0xff]
    %v651 = vld [vmem:[%s533 + $0x3a8] sm:$0xff]
    %v652 = vld [vmem:[%s533 + $0x3b0] sm:$0xff]
    %v653 = vld [vmem:[%s533 + $0x3b8] sm:$0xff]
    %v654 = vld [vmem:[%s533 + $0x3c0] sm:$0xff]
    %v655 = vld [vmem:[%s533 + $0x3c8] sm:$0xff]
    %v656 = vld [vmem:[%s533 + $0x3d0] sm:$0xff]
    %v657 = vld [vmem:[%s533 + $0x3d8] sm:$0xff]
    %v658 = vld [vmem:[%s533 + $0x3e0] sm:$0xff]
    %v659 = vld [vmem:[%s533 + $0x3e8] sm:$0xff]
    %v660 = vld [vmem:[%s533 + $0x3f0] sm:$0xff]
    %v661 = vld [vmem:[%s533 + $0x3f8] sm:$0xff]
    %v662 = vld [vmem:[%s533 + $0x400] sm:$0xff]
    %v663 = vld [vmem:[%s533 + $0x408] sm:$0xff]
    %v664 = vld [vmem:[%s533 + $0x410] sm:$0xff]
    %v665 = vld [vmem:[%s533 + $0x418] sm:$0xff]
    %v666 = vld [vmem:[%s533 + $0x420] sm:$0xff]
    %v667 = vld [vmem:[%s533 + $0x428] sm:$0xff]
    %v668 = vld [vmem:[%s533 + $0x430] sm:$0xff]
    %v669 = vld [vmem:[%s533 + $0x438] sm:$0xff]
    %v670 = vld [vmem:[%s533 + $0x440] sm:$0xff]
    %v671 = vld [vmem:[%s533 + $0x448] sm:$0xff]
    %v672 = vld [vmem:[%s533 + $0x450] sm:$0xff]
    %v673 = vld [vmem:[%s533 + $0x458] sm:$0xff]
    %v674 = vld [vmem:[%s533 + $0x460] sm:$0xff]
    %v675 = vld [vmem:[%s533 + $0x468] sm:$0xff]
    %v676 = vld [vmem:[%s533 + $0x470] sm:$0xff]
    %v677 = vld [vmem:[%s533 + $0x478] sm:$0xff]
    %v678 = vld [vmem:[%s533 + $0x480] sm:$0xff]
    %v679 = vld [vmem:[%s533 + $0x488] sm:$0xff]
    %v680 = vld [vmem:[%s533 + $0x490] sm:$0xff]
    %v681 = vld [vmem:[%s533 + $0x498] sm:$0xff]
    %v682 = vld [vmem:[%s533 + $0x4a0] sm:$0xff]
    %v683 = vld [vmem:[%s533 + $0x4a8] sm:$0xff]
    %v684 = vld [vmem:[%s533 + $0x4b0] sm:$0xff]
    %v685 = vld [vmem:[%s533 + $0x4b8] sm:$0xff]
    %v686 = vld [vmem:[%s533 + $0x4c0] sm:$0xff]
    %v687 = vld [vmem:[%s533 + $0x4c8] sm:$0xff]
    %v688 = vld [vmem:[%s533 + $0x4d0] sm:$0xff]
    %v689 = vld [vmem:[%s533 + $0x4d8] sm:$0xff]
    %v690 = vld [vmem:[%s533 + $0x4e0] sm:$0xff]
    %v691 = vld [vmem:[%s533 + $0x4e8] sm:$0xff]
    %v692 = vld [vmem:[%s533 + $0x4f0] sm:$0xff]
    %v693 = vld [vmem:[%s533 + $0x4f8] sm:$0xff]
    %v694 = vld [vmem:[%s533 + $0x500] sm:$0xff]
    %v695 = vld [vmem:[%s533 + $0x508] sm:$0xff]
    %v696 = vld [vmem:[%s533 + $0x510] sm:$0xff]
    %v697 = vld [vmem:[%s533 + $0x518] sm:$0xff]
    %v698 = vld [vmem:[%s533 + $0x520] sm:$0xff]
    %v699 = vld [vmem:[%s533 + $0x528] sm:$0xff]
    %v700 = vld [vmem:[%s533 + $0x530] sm:$0xff]
    %v701 = vld [vmem:[%s533 + $0x538] sm:$0xff]
    %v702 = vld [vmem:[%s533 + $0x540] sm:$0xff]
    %v703 = vld [vmem:[%s533 + $0x548] sm:$0xff]
    %v704 = vld [vmem:[%s533 + $0x550] sm:$0xff]
    %v705 = vld [vmem:[%s533 + $0x558] sm:$0xff]
    %v706 = vld [vmem:[%s533 + $0x560] sm:$0xff]
    %v707 = vld [vmem:[%s533 + $0x568] sm:$0xff]
    %v708 = vld [vmem:[%s533 + $0x570] sm:$0xff]
    %v709 = vld [vmem:[%s533 + $0x578] sm:$0xff]
    %v710 = vld [vmem:[%s533 + $0x580] sm:$0xff]
    %v711 = vld [vmem:[%s533 + $0x588] sm:$0xff]
    %v712 = vld [vmem:[%s533 + $0x590] sm:$0xff]
    %v713 = vld [vmem:[%s533 + $0x598] sm:$0xff]
    %v714 = vld [vmem:[%s533 + $0x5a0] sm:$0xff]
    %v715 = vld [vmem:[%s533 + $0x5a8] sm:$0xff]
    %v716 = vld [vmem:[%s533 + $0x5b0] sm:$0xff]
    %v717 = vld [vmem:[%s533 + $0x5b8] sm:$0xff]
    %v718 = vld [vmem:[%s533 + $0x5c0] sm:$0xff]
    %v719 = vld [vmem:[%s533 + $0x5c8] sm:$0xff]
    %v720 = vld [vmem:[%s533 + $0x5d0] sm:$0xff]
    %v721 = vld [vmem:[%s533 + $0x5d8] sm:$0xff]
    %v722 = vld [vmem:[%s533 + $0x5e0] sm:$0xff]
    %v723 = vld [vmem:[%s533 + $0x5e8] sm:$0xff]
    %v724 = vld [vmem:[%s533 + $0x5f0] sm:$0xff]
    %v725 = vld [vmem:[%s533 + $0x5f8] sm:$0xff]
    %v726 = vld [vmem:[%s533 + $0x600] sm:$0xff]
    %v727 = vld [vmem:[%s533 + $0x608] sm:$0xff]
    %v728 = vld [vmem:[%s533 + $0x610] sm:$0xff]
    %v729 = vld [vmem:[%s533 + $0x618] sm:$0xff]
    %v730 = vld [vmem:[%s533 + $0x620] sm:$0xff]
    %v731 = vld [vmem:[%s533 + $0x628] sm:$0xff]
    %v732 = vld [vmem:[%s533 + $0x630] sm:$0xff]
    %v733 = vld [vmem:[%s533 + $0x638] sm:$0xff]
    %v734 = vld [vmem:[%s533 + $0x640] sm:$0xff]
    %v735 = vld [vmem:[%s533 + $0x648] sm:$0xff]
    %v736 = vld [vmem:[%s533 + $0x650] sm:$0xff]
    %v737 = vld [vmem:[%s533 + $0x658] sm:$0xff]
    %v738 = vld [vmem:[%s533 + $0x660] sm:$0xff]
    %v739 = vld [vmem:[%s533 + $0x668] sm:$0xff]
    %v740 = vld [vmem:[%s533 + $0x670] sm:$0xff]
    %v741 = vld [vmem:[%s533 + $0x678] sm:$0xff]
    %v742 = vld [vmem:[%s533 + $0x680] sm:$0xff]
    %v743 = vld [vmem:[%s533 + $0x688] sm:$0xff]
    %v744 = vld [vmem:[%s533 + $0x690] sm:$0xff]
    %v745 = vld [vmem:[%s533 + $0x698] sm:$0xff]
    %v746 = vld [vmem:[%s533 + $0x6a0] sm:$0xff]
    %v747 = vld [vmem:[%s533 + $0x6a8] sm:$0xff]
    %v748 = vld [vmem:[%s533 + $0x6b0] sm:$0xff]
    %v749 = vld [vmem:[%s533 + $0x6b8] sm:$0xff]
    %v750 = vld [vmem:[%s533 + $0x6c0] sm:$0xff]
    %v751 = vld [vmem:[%s533 + $0x6c8] sm:$0xff]
    %v752 = vld [vmem:[%s533 + $0x6d0] sm:$0xff]
    %v753 = vld [vmem:[%s533 + $0x6d8] sm:$0xff]
    %v754 = vld [vmem:[%s533 + $0x6e0] sm:$0xff]
    %v755 = vld [vmem:[%s533 + $0x6e8] sm:$0xff]
    %v756 = vld [vmem:[%s533 + $0x6f0] sm:$0xff]
    %v757 = vld [vmem:[%s533 + $0x6f8] sm:$0xff]
    %v758 = vld [vmem:[%s533 + $0x700] sm:$0xff]
    %v759 = vld [vmem:[%s533 + $0x708] sm:$0xff]
    %v760 = vld [vmem:[%s533 + $0x710] sm:$0xff]
    %v761 = vld [vmem:[%s533 + $0x718] sm:$0xff]
    %v762 = vld [vmem:[%s533 + $0x720] sm:$0xff]
    %v763 = vld [vmem:[%s533 + $0x728] sm:$0xff]
    %v764 = vld [vmem:[%s533 + $0x730] sm:$0xff]
    %v765 = vld [vmem:[%s533 + $0x738] sm:$0xff]
    %v766 = vld [vmem:[%s533 + $0x740] sm:$0xff]
    %v767 = vld [vmem:[%s533 + $0x748] sm:$0xff]
    %v768 = vld [vmem:[%s533 + $0x750] sm:$0xff]
    %v769 = vld [vmem:[%s533 + $0x758] sm:$0xff]
    %v770 = vld [vmem:[%s533 + $0x760] sm:$0xff]
    %v771 = vld [vmem:[%s533 + $0x768] sm:$0xff]
    %v772 = vld [vmem:[%s533 + $0x770] sm:$0xff]
    %v773 = vld [vmem:[%s533 + $0x778] sm:$0xff]
    %v774 = vld [vmem:[%s533 + $0x780] sm:$0xff]
    %v775 = vld [vmem:[%s533 + $0x788] sm:$0xff]
    %v776 = vld [vmem:[%s533 + $0x790] sm:$0xff]
    %v777 = vld [vmem:[%s533 + $0x798] sm:$0xff]
    %v778 = vld [vmem:[%s533 + $0x7a0] sm:$0xff]
    %v779 = vld [vmem:[%s533 + $0x7a8] sm:$0xff]
    %v780 = vld [vmem:[%s533 + $0x7b0] sm:$0xff]
    %v781 = vld [vmem:[%s533 + $0x7b8] sm:$0xff]
    %v782 = vld [vmem:[%s533 + $0x7c0] sm:$0xff]
    %v783 = vld [vmem:[%s533 + $0x7c8] sm:$0xff]
    %v784 = vld [vmem:[%s533 + $0x7d0] sm:$0xff]
    %v785 = vld [vmem:[%s533 + $0x7d8] sm:$0xff]
    %v786 = vld [vmem:[%s533 + $0x7e0] sm:$0xff]
    %v787 = vld [vmem:[%s533 + $0x7e8] sm:$0xff]
    %v788 = vld [vmem:[%s533 + $0x7f0] sm:$0xff]
    %v789 = vld [vmem:[%s533 + $0x7f8] sm:$0xff]
    %v1046 = vunpack.c.l.b16 %v534
    %v1047 = vunpack.c.h.b16 %v534
    %v1048 = vunpack.c.l.b16 %v535
    %v1049 = vunpack.c.h.b16 %v535
    %v1050 = vunpack.c.l.b16 %v536
    %v1051 = vunpack.c.h.b16 %v536
    %v1052 = vunpack.c.l.b16 %v537
    %v1053 = vunpack.c.h.b16 %v537
    %v1054 = vunpack.c.l.b16 %v538
    %v1055 = vunpack.c.h.b16 %v538
    %v1056 = vunpack.c.l.b16 %v539
    %v1057 = vunpack.c.h.b16 %v539
    %v1058 = vunpack.c.l.b16 %v540
    %v1059 = vunpack.c.h.b16 %v540
    %v1060 = vunpack.c.l.b16 %v541
    %v1061 = vunpack.c.h.b16 %v541
    %v1062 = vunpack.c.l.b16 %v542
    %v1063 = vunpack.c.h.b16 %v542
    %v1064 = vunpack.c.l.b16 %v543
    %v1065 = vunpack.c.h.b16 %v543
    %v1066 = vunpack.c.l.b16 %v544
    %v1067 = vunpack.c.h.b16 %v544
    %v1068 = vunpack.c.l.b16 %v545
    %v1069 = vunpack.c.h.b16 %v545
    %v1070 = vunpack.c.l.b16 %v546
    %v1071 = vunpack.c.h.b16 %v546
    %v1072 = vunpack.c.l.b16 %v547
    %v1073 = vunpack.c.h.b16 %v547
    %v1074 = vunpack.c.l.b16 %v548
    %v1075 = vunpack.c.h.b16 %v548
    %v1076 = vunpack.c.l.b16 %v549
    %v1077 = vunpack.c.h.b16 %v549
    %v1078 = vunpack.c.l.b16 %v550
    %v1079 = vunpack.c.h.b16 %v550
    %v1080 = vunpack.c.l.b16 %v551
    %v1081 = vunpack.c.h.b16 %v551
    %v1082 = vunpack.c.l.b16 %v552
    %v1083 = vunpack.c.h.b16 %v552
    %v1084 = vunpack.c.l.b16 %v553
    %v1085 = vunpack.c.h.b16 %v553
    %v1086 = vunpack.c.l.b16 %v554
    %v1087 = vunpack.c.h.b16 %v554
    %v1088 = vunpack.c.l.b16 %v555
    %v1089 = vunpack.c.h.b16 %v555
    %v1090 = vunpack.c.l.b16 %v556
    %v1091 = vunpack.c.h.b16 %v556
    %v1092 = vunpack.c.l.b16 %v557
    %v1093 = vunpack.c.h.b16 %v557
    %v1094 = vunpack.c.l.b16 %v558
    %v1095 = vunpack.c.h.b16 %v558
    %v1096 = vunpack.c.l.b16 %v559
    %v1097 = vunpack.c.h.b16 %v559
    %v1098 = vunpack.c.l.b16 %v560
    %v1099 = vunpack.c.h.b16 %v560
    %v1100 = vunpack.c.l.b16 %v561
    %v1101 = vunpack.c.h.b16 %v561
    %v1102 = vunpack.c.l.b16 %v562
    %v1103 = vunpack.c.h.b16 %v562
    %v1104 = vunpack.c.l.b16 %v563
    %v1105 = vunpack.c.h.b16 %v563
    %v1106 = vunpack.c.l.b16 %v564
    %v1107 = vunpack.c.h.b16 %v564
    %v1108 = vunpack.c.l.b16 %v565
    %v1109 = vunpack.c.h.b16 %v565
    %v1110 = vunpack.c.l.b16 %v566
    %v1111 = vunpack.c.h.b16 %v566
    %v1112 = vunpack.c.l.b16 %v567
    %v1113 = vunpack.c.h.b16 %v567
    %v1114 = vunpack.c.l.b16 %v568
    %v1115 = vunpack.c.h.b16 %v568
    %v1116 = vunpack.c.l.b16 %v569
    %v1117 = vunpack.c.h.b16 %v569
    %v1118 = vunpack.c.l.b16 %v570
    %v1119 = vunpack.c.h.b16 %v570
    %v1120 = vunpack.c.l.b16 %v571
    %v1121 = vunpack.c.h.b16 %v571
    %v1122 = vunpack.c.l.b16 %v572
    %v1123 = vunpack.c.h.b16 %v572
    %v1124 = vunpack.c.l.b16 %v573
    %v1125 = vunpack.c.h.b16 %v573
    %v1126 = vunpack.c.l.b16 %v574
    %v1127 = vunpack.c.h.b16 %v574
    %v1128 = vunpack.c.l.b16 %v575
    %v1129 = vunpack.c.h.b16 %v575
    %v1130 = vunpack.c.l.b16 %v576
    %v1131 = vunpack.c.h.b16 %v576
    %v1132 = vunpack.c.l.b16 %v577
    %v1133 = vunpack.c.h.b16 %v577
    %v1134 = vunpack.c.l.b16 %v578
    %v1135 = vunpack.c.h.b16 %v578
    %v1136 = vunpack.c.l.b16 %v579
    %v1137 = vunpack.c.h.b16 %v579
    %v1138 = vunpack.c.l.b16 %v580
    %v1139 = vunpack.c.h.b16 %v580
    %v1140 = vunpack.c.l.b16 %v581
    %v1141 = vunpack.c.h.b16 %v581
    %v1142 = vunpack.c.l.b16 %v582
    %v1143 = vunpack.c.h.b16 %v582
    %v1144 = vunpack.c.l.b16 %v583
    %v1145 = vunpack.c.h.b16 %v583
    %v1146 = vunpack.c.l.b16 %v584
    %v1147 = vunpack.c.h.b16 %v584
    %v1148 = vunpack.c.l.b16 %v585
    %v1149 = vunpack.c.h.b16 %v585
    %v1150 = vunpack.c.l.b16 %v586
    %v1151 = vunpack.c.h.b16 %v586
    %v1152 = vunpack.c.l.b16 %v587
    %v1153 = vunpack.c.h.b16 %v587
    %v1154 = vunpack.c.l.b16 %v588
    %v1155 = vunpack.c.h.b16 %v588
    %v1156 = vunpack.c.l.b16 %v589
    %v1157 = vunpack.c.h.b16 %v589
    %v1158 = vunpack.c.l.b16 %v590
    %v1159 = vunpack.c.h.b16 %v590
    %v1160 = vunpack.c.l.b16 %v591
    %v1161 = vunpack.c.h.b16 %v591
    %v1162 = vunpack.c.l.b16 %v592
    %v1163 = vunpack.c.h.b16 %v592
    %v1164 = vunpack.c.l.b16 %v593
    %v1165 = vunpack.c.h.b16 %v593
    %v1166 = vunpack.c.l.b16 %v594
    %v1167 = vunpack.c.h.b16 %v594
    %v1168 = vunpack.c.l.b16 %v595
    %v1169 = vunpack.c.h.b16 %v595
    %v1170 = vunpack.c.l.b16 %v596
    %v1171 = vunpack.c.h.b16 %v596
    %v1172 = vunpack.c.l.b16 %v597
    %v1173 = vunpack.c.h.b16 %v597
    %v1174 = vunpack.c.l.b16 %v598
    %v1175 = vunpack.c.h.b16 %v598
    %v1176 = vunpack.c.l.b16 %v599
    %v1177 = vunpack.c.h.b16 %v599
    %v1178 = vunpack.c.l.b16 %v600
    %v1179 = vunpack.c.h.b16 %v600
    %v1180 = vunpack.c.l.b16 %v601
    %v1181 = vunpack.c.h.b16 %v601
    %v1182 = vunpack.c.l.b16 %v602
    %v1183 = vunpack.c.h.b16 %v602
    %v1184 = vunpack.c.l.b16 %v603
    %v1185 = vunpack.c.h.b16 %v603
    %v1186 = vunpack.c.l.b16 %v604
    %v1187 = vunpack.c.h.b16 %v604
    %v1188 = vunpack.c.l.b16 %v605
    %v1189 = vunpack.c.h.b16 %v605
    %v1190 = vunpack.c.l.b16 %v606
    %v1191 = vunpack.c.h.b16 %v606
    %v1192 = vunpack.c.l.b16 %v607
    %v1193 = vunpack.c.h.b16 %v607
    %v1194 = vunpack.c.l.b16 %v608
    %v1195 = vunpack.c.h.b16 %v608
    %v1196 = vunpack.c.l.b16 %v609
    %v1197 = vunpack.c.h.b16 %v609
    %v1198 = vunpack.c.l.b16 %v610
    %v1199 = vunpack.c.h.b16 %v610
    %v1200 = vunpack.c.l.b16 %v611
    %v1201 = vunpack.c.h.b16 %v611
    %v1202 = vunpack.c.l.b16 %v612
    %v1203 = vunpack.c.h.b16 %v612
    %v1204 = vunpack.c.l.b16 %v613
    %v1205 = vunpack.c.h.b16 %v613
    %v1206 = vunpack.c.l.b16 %v614
    %v1207 = vunpack.c.h.b16 %v614
    %v1208 = vunpack.c.l.b16 %v615
    %v1209 = vunpack.c.h.b16 %v615
    %v1210 = vunpack.c.l.b16 %v616
    %v1211 = vunpack.c.h.b16 %v616
    %v1212 = vunpack.c.l.b16 %v617
    %v1213 = vunpack.c.h.b16 %v617
    %v1214 = vunpack.c.l.b16 %v618
    %v1215 = vunpack.c.h.b16 %v618
    %v1216 = vunpack.c.l.b16 %v619
    %v1217 = vunpack.c.h.b16 %v619
    %v1218 = vunpack.c.l.b16 %v620
    %v1219 = vunpack.c.h.b16 %v620
    %v1220 = vunpack.c.l.b16 %v621
    %v1221 = vunpack.c.h.b16 %v621
    %v1222 = vunpack.c.l.b16 %v622
    %v1223 = vunpack.c.h.b16 %v622
    %v1224 = vunpack.c.l.b16 %v623
    %v1225 = vunpack.c.h.b16 %v623
    %v1226 = vunpack.c.l.b16 %v624
    %v1227 = vunpack.c.h.b16 %v624
    %v1228 = vunpack.c.l.b16 %v625
    %v1229 = vunpack.c.h.b16 %v625
    %v1230 = vunpack.c.l.b16 %v626
    %v1231 = vunpack.c.h.b16 %v626
    %v1232 = vunpack.c.l.b16 %v627
    %v1233 = vunpack.c.h.b16 %v627
    %v1234 = vunpack.c.l.b16 %v628
    %v1235 = vunpack.c.h.b16 %v628
    %v1236 = vunpack.c.l.b16 %v629
    %v1237 = vunpack.c.h.b16 %v629
    %v1238 = vunpack.c.l.b16 %v630
    %v1239 = vunpack.c.h.b16 %v630
    %v1240 = vunpack.c.l.b16 %v631
    %v1241 = vunpack.c.h.b16 %v631
    %v1242 = vunpack.c.l.b16 %v632
    %v1243 = vunpack.c.h.b16 %v632
    %v1244 = vunpack.c.l.b16 %v633
    %v1245 = vunpack.c.h.b16 %v633
    %v1246 = vunpack.c.l.b16 %v634
    %v1247 = vunpack.c.h.b16 %v634
    %v1248 = vunpack.c.l.b16 %v635
    %v1249 = vunpack.c.h.b16 %v635
    %v1250 = vunpack.c.l.b16 %v636
    %v1251 = vunpack.c.h.b16 %v636
    %v1252 = vunpack.c.l.b16 %v637
    %v1253 = vunpack.c.h.b16 %v637
    %v1254 = vunpack.c.l.b16 %v638
    %v1255 = vunpack.c.h.b16 %v638
    %v1256 = vunpack.c.l.b16 %v639
    %v1257 = vunpack.c.h.b16 %v639
    %v1258 = vunpack.c.l.b16 %v640
    %v1259 = vunpack.c.h.b16 %v640
    %v1260 = vunpack.c.l.b16 %v641
    %v1261 = vunpack.c.h.b16 %v641
    %v1262 = vunpack.c.l.b16 %v642
    %v1263 = vunpack.c.h.b16 %v642
    %v1264 = vunpack.c.l.b16 %v643
    %v1265 = vunpack.c.h.b16 %v643
    %v1266 = vunpack.c.l.b16 %v644
    %v1267 = vunpack.c.h.b16 %v644
    %v1268 = vunpack.c.l.b16 %v645
    %v1269 = vunpack.c.h.b16 %v645
    %v1270 = vunpack.c.l.b16 %v646
    %v1271 = vunpack.c.h.b16 %v646
    %v1272 = vunpack.c.l.b16 %v647
    %v1273 = vunpack.c.h.b16 %v647
    %v1274 = vunpack.c.l.b16 %v648
    %v1275 = vunpack.c.h.b16 %v648
    %v1276 = vunpack.c.l.b16 %v649
    %v1277 = vunpack.c.h.b16 %v649
    %v1278 = vunpack.c.l.b16 %v650
    %v1279 = vunpack.c.h.b16 %v650
    %v1280 = vunpack.c.l.b16 %v651
    %v1281 = vunpack.c.h.b16 %v651
    %v1282 = vunpack.c.l.b16 %v652
    %v1283 = vunpack.c.h.b16 %v652
    %v1284 = vunpack.c.l.b16 %v653
    %v1285 = vunpack.c.h.b16 %v653
    %v1286 = vunpack.c.l.b16 %v654
    %v1287 = vunpack.c.h.b16 %v654
    %v1288 = vunpack.c.l.b16 %v655
    %v1289 = vunpack.c.h.b16 %v655
    %v1290 = vunpack.c.l.b16 %v656
    %v1291 = vunpack.c.h.b16 %v656
    %v1292 = vunpack.c.l.b16 %v657
    %v1293 = vunpack.c.h.b16 %v657
    %v1294 = vunpack.c.l.b16 %v658
    %v1295 = vunpack.c.h.b16 %v658
    %v1296 = vunpack.c.l.b16 %v659
    %v1297 = vunpack.c.h.b16 %v659
    %v1298 = vunpack.c.l.b16 %v660
    %v1299 = vunpack.c.h.b16 %v660
    %v1300 = vunpack.c.l.b16 %v661
    %v1301 = vunpack.c.h.b16 %v661
    %v1302 = vunpack.c.l.b16 %v662
    %v1303 = vunpack.c.h.b16 %v662
    %v1304 = vunpack.c.l.b16 %v663
    %v1305 = vunpack.c.h.b16 %v663
    %v1306 = vunpack.c.l.b16 %v664
    %v1307 = vunpack.c.h.b16 %v664
    %v1308 = vunpack.c.l.b16 %v665
    %v1309 = vunpack.c.h.b16 %v665
    %v1310 = vunpack.c.l.b16 %v666
    %v1311 = vunpack.c.h.b16 %v666
    %v1312 = vunpack.c.l.b16 %v667
    %v1313 = vunpack.c.h.b16 %v667
    %v1314 = vunpack.c.l.b16 %v668
    %v1315 = vunpack.c.h.b16 %v668
    %v1316 = vunpack.c.l.b16 %v669
    %v1317 = vunpack.c.h.b16 %v669
    %v1318 = vunpack.c.l.b16 %v670
    %v1319 = vunpack.c.h.b16 %v670
    %v1320 = vunpack.c.l.b16 %v671
    %v1321 = vunpack.c.h.b16 %v671
    %v1322 = vunpack.c.l.b16 %v672
    %v1323 = vunpack.c.h.b16 %v672
    %v1324 = vunpack.c.l.b16 %v673
    %v1325 = vunpack.c.h.b16 %v673
    %v1326 = vunpack.c.l.b16 %v674
    %v1327 = vunpack.c.h.b16 %v674
    %v1328 = vunpack.c.l.b16 %v675
    %v1329 = vunpack.c.h.b16 %v675
    %v1330 = vunpack.c.l.b16 %v676
    %v1331 = vunpack.c.h.b16 %v676
    %v1332 = vunpack.c.l.b16 %v677
    %v1333 = vunpack.c.h.b16 %v677
    %v1334 = vunpack.c.l.b16 %v678
    %v1335 = vunpack.c.h.b16 %v678
    %v1336 = vunpack.c.l.b16 %v679
    %v1337 = vunpack.c.h.b16 %v679
    %v1338 = vunpack.c.l.b16 %v680
    %v1339 = vunpack.c.h.b16 %v680
    %v1340 = vunpack.c.l.b16 %v681
    %v1341 = vunpack.c.h.b16 %v681
    %v1342 = vunpack.c.l.b16 %v682
    %v1343 = vunpack.c.h.b16 %v682
    %v1344 = vunpack.c.l.b16 %v683
    %v1345 = vunpack.c.h.b16 %v683
    %v1346 = vunpack.c.l.b16 %v684
    %v1347 = vunpack.c.h.b16 %v684
    %v1348 = vunpack.c.l.b16 %v685
    %v1349 = vunpack.c.h.b16 %v685
    %v1350 = vunpack.c.l.b16 %v686
    %v1351 = vunpack.c.h.b16 %v686
    %v1352 = vunpack.c.l.b16 %v687
    %v1353 = vunpack.c.h.b16 %v687
    %v1354 = vunpack.c.l.b16 %v688
    %v1355 = vunpack.c.h.b16 %v688
    %v1356 = vunpack.c.l.b16 %v689
    %v1357 = vunpack.c.h.b16 %v689
    %v1358 = vunpack.c.l.b16 %v690
    %v1359 = vunpack.c.h.b16 %v690
    %v1360 = vunpack.c.l.b16 %v691
    %v1361 = vunpack.c.h.b16 %v691
    %v1362 = vunpack.c.l.b16 %v692
    %v1363 = vunpack.c.h.b16 %v692
    %v1364 = vunpack.c.l.b16 %v693
    %v1365 = vunpack.c.h.b16 %v693
    %v1366 = vunpack.c.l.b16 %v694
    %v1367 = vunpack.c.h.b16 %v694
    %v1368 = vunpack.c.l.b16 %v695
    %v1369 = vunpack.c.h.b16 %v695
    %v1370 = vunpack.c.l.b16 %v696
    %v1371 = vunpack.c.h.b16 %v696
    %v1372 = vunpack.c.l.b16 %v697
    %v1373 = vunpack.c.h.b16 %v697
    %v1374 = vunpack.c.l.b16 %v698
    %v1375 = vunpack.c.h.b16 %v698
    %v1376 = vunpack.c.l.b16 %v699
    %v1377 = vunpack.c.h.b16 %v699
    %v1378 = vunpack.c.l.b16 %v700
    %v1379 = vunpack.c.h.b16 %v700
    %v1380 = vunpack.c.l.b16 %v701
    %v1381 = vunpack.c.h.b16 %v701
    %v1382 = vunpack.c.l.b16 %v702
    %v1383 = vunpack.c.h.b16 %v702
    %v1384 = vunpack.c.l.b16 %v703
    %v1385 = vunpack.c.h.b16 %v703
    %v1386 = vunpack.c.l.b16 %v704
    %v1387 = vunpack.c.h.b16 %v704
    %v1388 = vunpack.c.l.b16 %v705
    %v1389 = vunpack.c.h.b16 %v705
    %v1390 = vunpack.c.l.b16 %v706
    %v1391 = vunpack.c.h.b16 %v706
    %v1392 = vunpack.c.l.b16 %v707
    %v1393 = vunpack.c.h.b16 %v707
    %v1394 = vunpack.c.l.b16 %v708
    %v1395 = vunpack.c.h.b16 %v708
    %v1396 = vunpack.c.l.b16 %v709
    %v1397 = vunpack.c.h.b16 %v709
    %v1398 = vunpack.c.l.b16 %v710
    %v1399 = vunpack.c.h.b16 %v710
    %v1400 = vunpack.c.l.b16 %v711
    %v1401 = vunpack.c.h.b16 %v711
    %v1402 = vunpack.c.l.b16 %v712
    %v1403 = vunpack.c.h.b16 %v712
    %v1404 = vunpack.c.l.b16 %v713
    %v1405 = vunpack.c.h.b16 %v713
    %v1406 = vunpack.c.l.b16 %v714
    %v1407 = vunpack.c.h.b16 %v714
    %v1408 = vunpack.c.l.b16 %v715
    %v1409 = vunpack.c.h.b16 %v715
    %v1410 = vunpack.c.l.b16 %v716
    %v1411 = vunpack.c.h.b16 %v716
    %v1412 = vunpack.c.l.b16 %v717
    %v1413 = vunpack.c.h.b16 %v717
    %v1414 = vunpack.c.l.b16 %v718
    %v1415 = vunpack.c.h.b16 %v718
    %v1416 = vunpack.c.l.b16 %v719
    %v1417 = vunpack.c.h.b16 %v719
    %v1418 = vunpack.c.l.b16 %v720
    %v1419 = vunpack.c.h.b16 %v720
    %v1420 = vunpack.c.l.b16 %v721
    %v1421 = vunpack.c.h.b16 %v721
    %v1422 = vunpack.c.l.b16 %v722
    %v1423 = vunpack.c.h.b16 %v722
    %v1424 = vunpack.c.l.b16 %v723
    %v1425 = vunpack.c.h.b16 %v723
    %v1426 = vunpack.c.l.b16 %v724
    %v1427 = vunpack.c.h.b16 %v724
    %v1428 = vunpack.c.l.b16 %v725
    %v1429 = vunpack.c.h.b16 %v725
    %v1430 = vunpack.c.l.b16 %v726
    %v1431 = vunpack.c.h.b16 %v726
    %v1432 = vunpack.c.l.b16 %v727
    %v1433 = vunpack.c.h.b16 %v727
    %v1434 = vunpack.c.l.b16 %v728
    %v1435 = vunpack.c.h.b16 %v728
    %v1436 = vunpack.c.l.b16 %v729
    %v1437 = vunpack.c.h.b16 %v729
    %v1438 = vunpack.c.l.b16 %v730
    %v1439 = vunpack.c.h.b16 %v730
    %v1440 = vunpack.c.l.b16 %v731
    %v1441 = vunpack.c.h.b16 %v731
    %v1442 = vunpack.c.l.b16 %v732
    %v1443 = vunpack.c.h.b16 %v732
    %v1444 = vunpack.c.l.b16 %v733
    %v1445 = vunpack.c.h.b16 %v733
    %v1446 = vunpack.c.l.b16 %v734
    %v1447 = vunpack.c.h.b16 %v734
    %v1448 = vunpack.c.l.b16 %v735
    %v1449 = vunpack.c.h.b16 %v735
    %v1450 = vunpack.c.l.b16 %v736
    %v1451 = vunpack.c.h.b16 %v736
    %v1452 = vunpack.c.l.b16 %v737
    %v1453 = vunpack.c.h.b16 %v737
    %v1454 = vunpack.c.l.b16 %v738
    %v1455 = vunpack.c.h.b16 %v738
    %v1456 = vunpack.c.l.b16 %v739
    %v1457 = vunpack.c.h.b16 %v739
    %v1458 = vunpack.c.l.b16 %v740
    %v1459 = vunpack.c.h.b16 %v740
    %v1460 = vunpack.c.l.b16 %v741
    %v1461 = vunpack.c.h.b16 %v741
    %v1462 = vunpack.c.l.b16 %v742
    %v1463 = vunpack.c.h.b16 %v742
    %v1464 = vunpack.c.l.b16 %v743
    %v1465 = vunpack.c.h.b16 %v743
    %v1466 = vunpack.c.l.b16 %v744
    %v1467 = vunpack.c.h.b16 %v744
    %v1468 = vunpack.c.l.b16 %v745
    %v1469 = vunpack.c.h.b16 %v745
    %v1470 = vunpack.c.l.b16 %v746
    %v1471 = vunpack.c.h.b16 %v746
    %v1472 = vunpack.c.l.b16 %v747
    %v1473 = vunpack.c.h.b16 %v747
    %v1474 = vunpack.c.l.b16 %v748
    %v1475 = vunpack.c.h.b16 %v748
    %v1476 = vunpack.c.l.b16 %v749
    %v1477 = vunpack.c.h.b16 %v749
    %v1478 = vunpack.c.l.b16 %v750
    %v1479 = vunpack.c.h.b16 %v750
    %v1480 = vunpack.c.l.b16 %v751
    %v1481 = vunpack.c.h.b16 %v751
    %v1482 = vunpack.c.l.b16 %v752
    %v1483 = vunpack.c.h.b16 %v752
    %v1484 = vunpack.c.l.b16 %v753
    %v1485 = vunpack.c.h.b16 %v753
    %v1486 = vunpack.c.l.b16 %v754
    %v1487 = vunpack.c.h.b16 %v754
    %v1488 = vunpack.c.l.b16 %v755
    %v1489 = vunpack.c.h.b16 %v755
    %v1490 = vunpack.c.l.b16 %v756
    %v1491 = vunpack.c.h.b16 %v756
    %v1492 = vunpack.c.l.b16 %v757
    %v1493 = vunpack.c.h.b16 %v757
    %v1494 = vunpack.c.l.b16 %v758
    %v1495 = vunpack.c.h.b16 %v758
    %v1496 = vunpack.c.l.b16 %v759
    %v1497 = vunpack.c.h.b16 %v759
    %v1498 = vunpack.c.l.b16 %v760
    %v1499 = vunpack.c.h.b16 %v760
    %v1500 = vunpack.c.l.b16 %v761
    %v1501 = vunpack.c.h.b16 %v761
    %v1502 = vunpack.c.l.b16 %v762
    %v1503 = vunpack.c.h.b16 %v762
    %v1504 = vunpack.c.l.b16 %v763
    %v1505 = vunpack.c.h.b16 %v763
    %v1506 = vunpack.c.l.b16 %v764
    %v1507 = vunpack.c.h.b16 %v764
    %v1508 = vunpack.c.l.b16 %v765
    %v1509 = vunpack.c.h.b16 %v765
    %v1510 = vunpack.c.l.b16 %v766
    %v1511 = vunpack.c.h.b16 %v766
    %v1512 = vunpack.c.l.b16 %v767
    %v1513 = vunpack.c.h.b16 %v767
    %v1514 = vunpack.c.l.b16 %v768
    %v1515 = vunpack.c.h.b16 %v768
    %v1516 = vunpack.c.l.b16 %v769
    %v1517 = vunpack.c.h.b16 %v769
    %v1518 = vunpack.c.l.b16 %v770
    %v1519 = vunpack.c.h.b16 %v770
    %v1520 = vunpack.c.l.b16 %v771
    %v1521 = vunpack.c.h.b16 %v771
    %v1522 = vunpack.c.l.b16 %v772
    %v1523 = vunpack.c.h.b16 %v772
    %v1524 = vunpack.c.l.b16 %v773
    %v1525 = vunpack.c.h.b16 %v773
    %v1526 = vunpack.c.l.b16 %v774
    %v1527 = vunpack.c.h.b16 %v774
    %v1528 = vunpack.c.l.b16 %v775
    %v1529 = vunpack.c.h.b16 %v775
    %v1530 = vunpack.c.l.b16 %v776
    %v1531 = vunpack.c.h.b16 %v776
    %v1532 = vunpack.c.l.b16 %v777
    %v1533 = vunpack.c.h.b16 %v777
    %v1534 = vunpack.c.l.b16 %v778
    %v1535 = vunpack.c.h.b16 %v778
    %v1536 = vunpack.c.l.b16 %v779
    %v1537 = vunpack.c.h.b16 %v779
    %v1538 = vunpack.c.l.b16 %v780
    %v1539 = vunpack.c.h.b16 %v780
    %v1540 = vunpack.c.l.b16 %v781
    %v1541 = vunpack.c.h.b16 %v781
    %v1542 = vunpack.c.l.b16 %v782
    %v1543 = vunpack.c.h.b16 %v782
    %v1544 = vunpack.c.l.b16 %v783
    %v1545 = vunpack.c.h.b16 %v783
    %v1546 = vunpack.c.l.b16 %v784
    %v1547 = vunpack.c.h.b16 %v784
    %v1548 = vunpack.c.l.b16 %v785
    %v1549 = vunpack.c.h.b16 %v785
    %v1550 = vunpack.c.l.b16 %v786
    %v1551 = vunpack.c.h.b16 %v786
    %v1552 = vunpack.c.l.b16 %v787
    %v1553 = vunpack.c.h.b16 %v787
    %v1554 = vunpack.c.l.b16 %v788
    %v1555 = vunpack.c.h.b16 %v788
    %v1556 = vunpack.c.l.b16 %v789
    %v1557 = vunpack.c.h.b16 %v789
    %v1558 = vpack.c.b16 %v1050, %v1046
    %v1559 = vpack.c.b16 %v1051, %v1047
    %v1560 = vpack.c.b16 %v1052, %v1048
    %v1561 = vpack.c.b16 %v1053, %v1049
    %v1562 = vpack.c.b16 %v1058, %v1054
    %v1563 = vpack.c.b16 %v1059, %v1055
    %v1564 = vpack.c.b16 %v1060, %v1056
    %v1565 = vpack.c.b16 %v1061, %v1057
    %v1566 = vpack.c.b16 %v1066, %v1062
    %v1567 = vpack.c.b16 %v1067, %v1063
    %v1568 = vpack.c.b16 %v1068, %v1064
    %v1569 = vpack.c.b16 %v1069, %v1065
    %v1570 = vpack.c.b16 %v1074, %v1070
    %v1571 = vpack.c.b16 %v1075, %v1071
    %v1572 = vpack.c.b16 %v1076, %v1072
    %v1573 = vpack.c.b16 %v1077, %v1073
    %v1574 = vpack.c.b16 %v1082, %v1078
    %v1575 = vpack.c.b16 %v1083, %v1079
    %v1576 = vpack.c.b16 %v1084, %v1080
    %v1577 = vpack.c.b16 %v1085, %v1081
    %v1578 = vpack.c.b16 %v1090, %v1086
    %v1579 = vpack.c.b16 %v1091, %v1087
    %v1580 = vpack.c.b16 %v1092, %v1088
    %v1581 = vpack.c.b16 %v1093, %v1089
    %v1582 = vpack.c.b16 %v1098, %v1094
    %v1583 = vpack.c.b16 %v1099, %v1095
    %v1584 = vpack.c.b16 %v1100, %v1096
    %v1585 = vpack.c.b16 %v1101, %v1097
    %v1586 = vpack.c.b16 %v1106, %v1102
    %v1587 = vpack.c.b16 %v1107, %v1103
    %v1588 = vpack.c.b16 %v1108, %v1104
    %v1589 = vpack.c.b16 %v1109, %v1105
    %v1590 = vpack.c.b16 %v1114, %v1110
    %v1591 = vpack.c.b16 %v1115, %v1111
    %v1592 = vpack.c.b16 %v1116, %v1112
    %v1593 = vpack.c.b16 %v1117, %v1113
    %v1594 = vpack.c.b16 %v1122, %v1118
    %v1595 = vpack.c.b16 %v1123, %v1119
    %v1596 = vpack.c.b16 %v1124, %v1120
    %v1597 = vpack.c.b16 %v1125, %v1121
    %v1598 = vpack.c.b16 %v1130, %v1126
    %v1599 = vpack.c.b16 %v1131, %v1127
    %v1600 = vpack.c.b16 %v1132, %v1128
    %v1601 = vpack.c.b16 %v1133, %v1129
    %v1602 = vpack.c.b16 %v1138, %v1134
    %v1603 = vpack.c.b16 %v1139, %v1135
    %v1604 = vpack.c.b16 %v1140, %v1136
    %v1605 = vpack.c.b16 %v1141, %v1137
    %v1606 = vpack.c.b16 %v1146, %v1142
    %v1607 = vpack.c.b16 %v1147, %v1143
    %v1608 = vpack.c.b16 %v1148, %v1144
    %v1609 = vpack.c.b16 %v1149, %v1145
    %v1610 = vpack.c.b16 %v1154, %v1150
    %v1611 = vpack.c.b16 %v1155, %v1151
    %v1612 = vpack.c.b16 %v1156, %v1152
    %v1613 = vpack.c.b16 %v1157, %v1153
    %v1614 = vpack.c.b16 %v1162, %v1158
    %v1615 = vpack.c.b16 %v1163, %v1159
    %v1616 = vpack.c.b16 %v1164, %v1160
    %v1617 = vpack.c.b16 %v1165, %v1161
    %v1618 = vpack.c.b16 %v1170, %v1166
    %v1619 = vpack.c.b16 %v1171, %v1167
    %v1620 = vpack.c.b16 %v1172, %v1168
    %v1621 = vpack.c.b16 %v1173, %v1169
    %v1622 = vpack.c.b16 %v1178, %v1174
    %v1623 = vpack.c.b16 %v1179, %v1175
    %v1624 = vpack.c.b16 %v1180, %v1176
    %v1625 = vpack.c.b16 %v1181, %v1177
    %v1626 = vpack.c.b16 %v1186, %v1182
    %v1627 = vpack.c.b16 %v1187, %v1183
    %v1628 = vpack.c.b16 %v1188, %v1184
    %v1629 = vpack.c.b16 %v1189, %v1185
    %v1630 = vpack.c.b16 %v1194, %v1190
    %v1631 = vpack.c.b16 %v1195, %v1191
    %v1632 = vpack.c.b16 %v1196, %v1192
    %v1633 = vpack.c.b16 %v1197, %v1193
    %v1634 = vpack.c.b16 %v1202, %v1198
    %v1635 = vpack.c.b16 %v1203, %v1199
    %v1636 = vpack.c.b16 %v1204, %v1200
    %v1637 = vpack.c.b16 %v1205, %v1201
    %v1638 = vpack.c.b16 %v1210, %v1206
    %v1639 = vpack.c.b16 %v1211, %v1207
    %v1640 = vpack.c.b16 %v1212, %v1208
    %v1641 = vpack.c.b16 %v1213, %v1209
    %v1642 = vpack.c.b16 %v1218, %v1214
    %v1643 = vpack.c.b16 %v1219, %v1215
    %v1644 = vpack.c.b16 %v1220, %v1216
    %v1645 = vpack.c.b16 %v1221, %v1217
    %v1646 = vpack.c.b16 %v1226, %v1222
    %v1647 = vpack.c.b16 %v1227, %v1223
    %v1648 = vpack.c.b16 %v1228, %v1224
    %v1649 = vpack.c.b16 %v1229, %v1225
    %v1650 = vpack.c.b16 %v1234, %v1230
    %v1651 = vpack.c.b16 %v1235, %v1231
    %v1652 = vpack.c.b16 %v1236, %v1232
    %v1653 = vpack.c.b16 %v1237, %v1233
    %v1654 = vpack.c.b16 %v1242, %v1238
    %v1655 = vpack.c.b16 %v1243, %v1239
    %v1656 = vpack.c.b16 %v1244, %v1240
    %v1657 = vpack.c.b16 %v1245, %v1241
    %v1658 = vpack.c.b16 %v1250, %v1246
    %v1659 = vpack.c.b16 %v1251, %v1247
    %v1660 = vpack.c.b16 %v1252, %v1248
    %v1661 = vpack.c.b16 %v1253, %v1249
    %v1662 = vpack.c.b16 %v1258, %v1254
    %v1663 = vpack.c.b16 %v1259, %v1255
    %v1664 = vpack.c.b16 %v1260, %v1256
    %v1665 = vpack.c.b16 %v1261, %v1257
    %v1666 = vpack.c.b16 %v1266, %v1262
    %v1667 = vpack.c.b16 %v1267, %v1263
    %v1668 = vpack.c.b16 %v1268, %v1264
    %v1669 = vpack.c.b16 %v1269, %v1265
    %v1670 = vpack.c.b16 %v1274, %v1270
    %v1671 = vpack.c.b16 %v1275, %v1271
    %v1672 = vpack.c.b16 %v1276, %v1272
    %v1673 = vpack.c.b16 %v1277, %v1273
    %v1674 = vpack.c.b16 %v1282, %v1278
    %v1675 = vpack.c.b16 %v1283, %v1279
    %v1676 = vpack.c.b16 %v1284, %v1280
    %v1677 = vpack.c.b16 %v1285, %v1281
    %v1678 = vpack.c.b16 %v1290, %v1286
    %v1679 = vpack.c.b16 %v1291, %v1287
    %v1680 = vpack.c.b16 %v1292, %v1288
    %v1681 = vpack.c.b16 %v1293, %v1289
    %v1682 = vpack.c.b16 %v1298, %v1294
    %v1683 = vpack.c.b16 %v1299, %v1295
    %v1684 = vpack.c.b16 %v1300, %v1296
    %v1685 = vpack.c.b16 %v1301, %v1297
    %v1686 = vpack.c.b16 %v1306, %v1302
    %v1687 = vpack.c.b16 %v1307, %v1303
    %v1688 = vpack.c.b16 %v1308, %v1304
    %v1689 = vpack.c.b16 %v1309, %v1305
    %v1690 = vpack.c.b16 %v1314, %v1310
    %v1691 = vpack.c.b16 %v1315, %v1311
    %v1692 = vpack.c.b16 %v1316, %v1312
    %v1693 = vpack.c.b16 %v1317, %v1313
    %v1694 = vpack.c.b16 %v1322, %v1318
    %v1695 = vpack.c.b16 %v1323, %v1319
    %v1696 = vpack.c.b16 %v1324, %v1320
    %v1697 = vpack.c.b16 %v1325, %v1321
    %v1698 = vpack.c.b16 %v1330, %v1326
    %v1699 = vpack.c.b16 %v1331, %v1327
    %v1700 = vpack.c.b16 %v1332, %v1328
    %v1701 = vpack.c.b16 %v1333, %v1329
    %v1702 = vpack.c.b16 %v1338, %v1334
    %v1703 = vpack.c.b16 %v1339, %v1335
    %v1704 = vpack.c.b16 %v1340, %v1336
    %v1705 = vpack.c.b16 %v1341, %v1337
    %v1706 = vpack.c.b16 %v1346, %v1342
    %v1707 = vpack.c.b16 %v1347, %v1343
    %v1708 = vpack.c.b16 %v1348, %v1344
    %v1709 = vpack.c.b16 %v1349, %v1345
    %v1710 = vpack.c.b16 %v1354, %v1350
    %v1711 = vpack.c.b16 %v1355, %v1351
    %v1712 = vpack.c.b16 %v1356, %v1352
    %v1713 = vpack.c.b16 %v1357, %v1353
    %v1714 = vpack.c.b16 %v1362, %v1358
    %v1715 = vpack.c.b16 %v1363, %v1359
    %v1716 = vpack.c.b16 %v1364, %v1360
    %v1717 = vpack.c.b16 %v1365, %v1361
    %v1718 = vpack.c.b16 %v1370, %v1366
    %v1719 = vpack.c.b16 %v1371, %v1367
    %v1720 = vpack.c.b16 %v1372, %v1368
    %v1721 = vpack.c.b16 %v1373, %v1369
    %v1722 = vpack.c.b16 %v1378, %v1374
    %v1723 = vpack.c.b16 %v1379, %v1375
    %v1724 = vpack.c.b16 %v1380, %v1376
    %v1725 = vpack.c.b16 %v1381, %v1377
    %v1726 = vpack.c.b16 %v1386, %v1382
    %v1727 = vpack.c.b16 %v1387, %v1383
    %v1728 = vpack.c.b16 %v1388, %v1384
    %v1729 = vpack.c.b16 %v1389, %v1385
    %v1730 = vpack.c.b16 %v1394, %v1390
    %v1731 = vpack.c.b16 %v1395, %v1391
    %v1732 = vpack.c.b16 %v1396, %v1392
    %v1733 = vpack.c.b16 %v1397, %v1393
    %v1734 = vpack.c.b16 %v1402, %v1398
    %v1735 = vpack.c.b16 %v1403, %v1399
    %v1736 = vpack.c.b16 %v1404, %v1400
    %v1737 = vpack.c.b16 %v1405, %v1401
    %v1738 = vpack.c.b16 %v1410, %v1406
    %v1739 = vpack.c.b16 %v1411, %v1407
    %v1740 = vpack.c.b16 %v1412, %v1408
    %v1741 = vpack.c.b16 %v1413, %v1409
    %v1742 = vpack.c.b16 %v1418, %v1414
    %v1743 = vpack.c.b16 %v1419, %v1415
    %v1744 = vpack.c.b16 %v1420, %v1416
    %v1745 = vpack.c.b16 %v1421, %v1417
    %v1746 = vpack.c.b16 %v1426, %v1422
    %v1747 = vpack.c.b16 %v1427, %v1423
    %v1748 = vpack.c.b16 %v1428, %v1424
    %v1749 = vpack.c.b16 %v1429, %v1425
    %v1750 = vpack.c.b16 %v1434, %v1430
    %v1751 = vpack.c.b16 %v1435, %v1431
    %v1752 = vpack.c.b16 %v1436, %v1432
    %v1753 = vpack.c.b16 %v1437, %v1433
    %v1754 = vpack.c.b16 %v1442, %v1438
    %v1755 = vpack.c.b16 %v1443, %v1439
    %v1756 = vpack.c.b16 %v1444, %v1440
    %v1757 = vpack.c.b16 %v1445, %v1441
    %v1758 = vpack.c.b16 %v1450, %v1446
    %v1759 = vpack.c.b16 %v1451, %v1447
    %v1760 = vpack.c.b16 %v1452, %v1448
    %v1761 = vpack.c.b16 %v1453, %v1449
    %v1762 = vpack.c.b16 %v1458, %v1454
    %v1763 = vpack.c.b16 %v1459, %v1455
    %v1764 = vpack.c.b16 %v1460, %v1456
    %v1765 = vpack.c.b16 %v1461, %v1457
    %v1766 = vpack.c.b16 %v1466, %v1462
    %v1767 = vpack.c.b16 %v1467, %v1463
    %v1768 = vpack.c.b16 %v1468, %v1464
    %v1769 = vpack.c.b16 %v1469, %v1465
    %v1770 = vpack.c.b16 %v1474, %v1470
    %v1771 = vpack.c.b16 %v1475, %v1471
    %v1772 = vpack.c.b16 %v1476, %v1472
    %v1773 = vpack.c.b16 %v1477, %v1473
    %v1774 = vpack.c.b16 %v1482, %v1478
    %v1775 = vpack.c.b16 %v1483, %v1479
    %v1776 = vpack.c.b16 %v1484, %v1480
    %v1777 = vpack.c.b16 %v1485, %v1481
    %v1778 = vpack.c.b16 %v1490, %v1486
    %v1779 = vpack.c.b16 %v1491, %v1487
    %v1780 = vpack.c.b16 %v1492, %v1488
    %v1781 = vpack.c.b16 %v1493, %v1489
    %v1782 = vpack.c.b16 %v1498, %v1494
    %v1783 = vpack.c.b16 %v1499, %v1495
    %v1784 = vpack.c.b16 %v1500, %v1496
    %v1785 = vpack.c.b16 %v1501, %v1497
    %v1786 = vpack.c.b16 %v1506, %v1502
    %v1787 = vpack.c.b16 %v1507, %v1503
    %v1788 = vpack.c.b16 %v1508, %v1504
    %v1789 = vpack.c.b16 %v1509, %v1505
    %v1790 = vpack.c.b16 %v1514, %v1510
    %v1791 = vpack.c.b16 %v1515, %v1511
    %v1792 = vpack.c.b16 %v1516, %v1512
    %v1793 = vpack.c.b16 %v1517, %v1513
    %v1794 = vpack.c.b16 %v1522, %v1518
    %v1795 = vpack.c.b16 %v1523, %v1519
    %v1796 = vpack.c.b16 %v1524, %v1520
    %v1797 = vpack.c.b16 %v1525, %v1521
    %v1798 = vpack.c.b16 %v1530, %v1526
    %v1799 = vpack.c.b16 %v1531, %v1527
    %v1800 = vpack.c.b16 %v1532, %v1528
    %v1801 = vpack.c.b16 %v1533, %v1529
    %v1802 = vpack.c.b16 %v1538, %v1534
    %v1803 = vpack.c.b16 %v1539, %v1535
    %v1804 = vpack.c.b16 %v1540, %v1536
    %v1805 = vpack.c.b16 %v1541, %v1537
    %v1806 = vpack.c.b16 %v1546, %v1542
    %v1807 = vpack.c.b16 %v1547, %v1543
    %v1808 = vpack.c.b16 %v1548, %v1544
    %v1809 = vpack.c.b16 %v1549, %v1545
    %v1810 = vpack.c.b16 %v1554, %v1550
    %v1811 = vpack.c.b16 %v1555, %v1551
    %v1812 = vpack.c.b16 %v1556, %v1552
    %v1813 = vpack.c.b16 %v1557, %v1553
    %2070 = vmatpush.bf16.msra.mxu0 %v1586
    %2071 = vmatpush.bf16.msra.mxu0 %v1582
    %2072 = vmatpush.bf16.msra.mxu0 %v1578
    %2073 = vmatpush.bf16.msra.mxu0 %v1574
    %2074 = vmatpush.bf16.msra.mxu0 %v1570
    %2075 = vmatpush.bf16.msra.mxu0 %v1566
    %2076 = vmatpush.bf16.msra.mxu0 %v1562
    %2077 = vmatpush.bf16.msra.mxu0 %v1558
    %2078 = vmatmul.bf16.gmra.mxu0 %v525
    %v2079 = vpop.f32.mrf.mxu0
    %v2080 = vadd.f32 0.0, %v2079
    %v2081 = vpop.f32.mrf.mxu0
    %2082 = vdwg.mxu0
    %2083 = vmatpush.bf16.msra.mxu0 %v1618
    %2084 = vmatpush.bf16.msra.mxu0 %v1614
    %2085 = vmatpush.bf16.msra.mxu0 %v1610
    %2086 = vmatpush.bf16.msra.mxu0 %v1606
    %2087 = vmatpush.bf16.msra.mxu0 %v1602
    %2088 = vmatpush.bf16.msra.mxu0 %v1598
    %2089 = vmatpush.bf16.msra.mxu0 %v1594
    %2090 = vmatpush.bf16.msra.mxu0 %v1590
    %2091 = vmatmul.bf16.gmra.mxu0 %v526
    %v2092 = vpop.f32.mrf.mxu0
    %v2093 = vadd.f32 %v2080, %v2092
    %v2094 = vpop.f32.mrf.mxu0
    %2095 = vdwg.mxu0
    %2096 = vmatpush.bf16.msra.mxu0 %v1650
    %2097 = vmatpush.bf16.msra.mxu0 %v1646
    %2098 = vmatpush.bf16.msra.mxu0 %v1642
    %2099 = vmatpush.bf16.msra.mxu0 %v1638
    %2100 = vmatpush.bf16.msra.mxu0 %v1634
    %2101 = vmatpush.bf16.msra.mxu0 %v1630
    %2102 = vmatpush.bf16.msra.mxu0 %v1626
    %2103 = vmatpush.bf16.msra.mxu0 %v1622
    %2104 = vmatmul.bf16.gmra.mxu0 %v527
    %v2105 = vpop.f32.mrf.mxu0
    %v2106 = vadd.f32 %v2093, %v2105
    %v2107 = vpop.f32.mrf.mxu0
    %2108 = vdwg.mxu0
    %2109 = vmatpush.bf16.msra.mxu0 %v1682
    %2110 = vmatpush.bf16.msra.mxu0 %v1678
    %2111 = vmatpush.bf16.msra.mxu0 %v1674
    %2112 = vmatpush.bf16.msra.mxu0 %v1670
    %2113 = vmatpush.bf16.msra.mxu0 %v1666
    %2114 = vmatpush.bf16.msra.mxu0 %v1662
    %2115 = vmatpush.bf16.msra.mxu0 %v1658
    %2116 = vmatpush.bf16.msra.mxu0 %v1654
    %2117 = vmatmul.bf16.gmra.mxu0 %v528
    %v2118 = vpop.f32.mrf.mxu0
    %v2119 = vadd.f32 %v2106, %v2118
    %v2120 = vpop.f32.mrf.mxu0
    %2121 = vdwg.mxu0
    %2122 = vmatpush.bf16.msra.mxu0 %v1714
    %2123 = vmatpush.bf16.msra.mxu0 %v1710
    %2124 = vmatpush.bf16.msra.mxu0 %v1706
    %2125 = vmatpush.bf16.msra.mxu0 %v1702
    %2126 = vmatpush.bf16.msra.mxu0 %v1698
    %2127 = vmatpush.bf16.msra.mxu0 %v1694
    %2128 = vmatpush.bf16.msra.mxu0 %v1690
    %2129 = vmatpush.bf16.msra.mxu0 %v1686
    %2130 = vmatmul.bf16.gmra.mxu0 %v529
    %v2131 = vpop.f32.mrf.mxu0
    %v2132 = vadd.f32 %v2119, %v2131
    %v2133 = vpop.f32.mrf.mxu0
    %2134 = vdwg.mxu0
    %2135 = vmatpush.bf16.msra.mxu0 %v1746
    %2136 = vmatpush.bf16.msra.mxu0 %v1742
    %2137 = vmatpush.bf16.msra.mxu0 %v1738
    %2138 = vmatpush.bf16.msra.mxu0 %v1734
    %2139 = vmatpush.bf16.msra.mxu0 %v1730
    %2140 = vmatpush.bf16.msra.mxu0 %v1726
    %2141 = vmatpush.bf16.msra.mxu0 %v1722
    %2142 = vmatpush.bf16.msra.mxu0 %v1718
    %2143 = vmatmul.bf16.gmra.mxu0 %v530
    %v2144 = vpop.f32.mrf.mxu0
    %v2145 = vadd.f32 %v2132, %v2144
    %v2146 = vpop.f32.mrf.mxu0
    %2147 = vdwg.mxu0
    %2148 = vmatpush.bf16.msra.mxu0 %v1778
    %2149 = vmatpush.bf16.msra.mxu0 %v1774
    %2150 = vmatpush.bf16.msra.mxu0 %v1770
    %2151 = vmatpush.bf16.msra.mxu0 %v1766
    %2152 = vmatpush.bf16.msra.mxu0 %v1762
    %2153 = vmatpush.bf16.msra.mxu0 %v1758
    %2154 = vmatpush.bf16.msra.mxu0 %v1754
    %2155 = vmatpush.bf16.msra.mxu0 %v1750
    %2156 = vmatmul.bf16.gmra.mxu0 %v531
    %v2157 = vpop.f32.mrf.mxu0
    %v2158 = vadd.f32 %v2145, %v2157
    %v2159 = vpop.f32.mrf.mxu0
    %2160 = vdwg.mxu0
    %2161 = vmatpush.bf16.msra.mxu0 %v1810
    %2162 = vmatpush.bf16.msra.mxu0 %v1806
    %2163 = vmatpush.bf16.msra.mxu0 %v1802
    %2164 = vmatpush.bf16.msra.mxu0 %v1798
    %2165 = vmatpush.bf16.msra.mxu0 %v1794
    %2166 = vmatpush.bf16.msra.mxu0 %v1790
    %2167 = vmatpush.bf16.msra.mxu0 %v1786
    %2168 = vmatpush.bf16.msra.mxu0 %v1782
    %2169 = vmatmul.bf16.gmra.mxu0 %v532
    %v2170 = vpop.f32.mrf.mxu0
    %v2171 = vadd.f32 %v2158, %v2170
    %v2172 = vpop.f32.mrf.mxu0
    %2173 = vdwg.mxu0
    %2174 = vmatpush.bf16.msra.mxu0 %v1587
    %2175 = vmatpush.bf16.msra.mxu0 %v1583
    %2176 = vmatpush.bf16.msra.mxu0 %v1579
    %2177 = vmatpush.bf16.msra.mxu0 %v1575
    %2178 = vmatpush.bf16.msra.mxu0 %v1571
    %2179 = vmatpush.bf16.msra.mxu0 %v1567
    %2180 = vmatpush.bf16.msra.mxu0 %v1563
    %2181 = vmatpush.bf16.msra.mxu0 %v1559
    %2182 = vmatmul.bf16.gmra.mxu0 %v525
    %v2183 = vpop.f32.mrf.mxu0
    %v2184 = vadd.f32 0.0, %v2183
    %v2185 = vpop.f32.mrf.mxu0
    %2186 = vdwg.mxu0
    %2187 = vmatpush.bf16.msra.mxu0 %v1619
    %2188 = vmatpush.bf16.msra.mxu0 %v1615
    %2189 = vmatpush.bf16.msra.mxu0 %v1611
    %2190 = vmatpush.bf16.msra.mxu0 %v1607
    %2191 = vmatpush.bf16.msra.mxu0 %v1603
    %2192 = vmatpush.bf16.msra.mxu0 %v1599
    %2193 = vmatpush.bf16.msra.mxu0 %v1595
    %2194 = vmatpush.bf16.msra.mxu0 %v1591
    %2195 = vmatmul.bf16.gmra.mxu0 %v526
    %v2196 = vpop.f32.mrf.mxu0
    %v2197 = vadd.f32 %v2184, %v2196
    %v2198 = vpop.f32.mrf.mxu0
    %2199 = vdwg.mxu0
    %2200 = vmatpush.bf16.msra.mxu0 %v1651
    %2201 = vmatpush.bf16.msra.mxu0 %v1647
    %2202 = vmatpush.bf16.msra.mxu0 %v1643
    %2203 = vmatpush.bf16.msra.mxu0 %v1639
    %2204 = vmatpush.bf16.msra.mxu0 %v1635
    %2205 = vmatpush.bf16.msra.mxu0 %v1631
    %2206 = vmatpush.bf16.msra.mxu0 %v1627
    %2207 = vmatpush.bf16.msra.mxu0 %v1623
    %2208 = vmatmul.bf16.gmra.mxu0 %v527
    %v2209 = vpop.f32.mrf.mxu0
    %v2210 = vadd.f32 %v2197, %v2209
    %v2211 = vpop.f32.mrf.mxu0
    %2212 = vdwg.mxu0
    %2213 = vmatpush.bf16.msra.mxu0 %v1683
    %2214 = vmatpush.bf16.msra.mxu0 %v1679
    %2215 = vmatpush.bf16.msra.mxu0 %v1675
    %2216 = vmatpush.bf16.msra.mxu0 %v1671
    %2217 = vmatpush.bf16.msra.mxu0 %v1667
    %2218 = vmatpush.bf16.msra.mxu0 %v1663
    %2219 = vmatpush.bf16.msra.mxu0 %v1659
    %2220 = vmatpush.bf16.msra.mxu0 %v1655
    %2221 = vmatmul.bf16.gmra.mxu0 %v528
    %v2222 = vpop.f32.mrf.mxu0
    %v2223 = vadd.f32 %v2210, %v2222
    %v2224 = vpop.f32.mrf.mxu0
    %2225 = vdwg.mxu0
    %2226 = vmatpush.bf16.msra.mxu0 %v1715
    %2227 = vmatpush.bf16.msra.mxu0 %v1711
    %2228 = vmatpush.bf16.msra.mxu0 %v1707
    %2229 = vmatpush.bf16.msra.mxu0 %v1703
    %2230 = vmatpush.bf16.msra.mxu0 %v1699
    %2231 = vmatpush.bf16.msra.mxu0 %v1695
    %2232 = vmatpush.bf16.msra.mxu0 %v1691
    %2233 = vmatpush.bf16.msra.mxu0 %v1687
    %2234 = vmatmul.bf16.gmra.mxu0 %v529
    %v2235 = vpop.f32.mrf.mxu0
    %v2236 = vadd.f32 %v2223, %v2235
    %v2237 = vpop.f32.mrf.mxu0
    %2238 = vdwg.mxu0
    %2239 = vmatpush.bf16.msra.mxu0 %v1747
    %2240 = vmatpush.bf16.msra.mxu0 %v1743
    %2241 = vmatpush.bf16.msra.mxu0 %v1739
    %2242 = vmatpush.bf16.msra.mxu0 %v1735
    %2243 = vmatpush.bf16.msra.mxu0 %v1731
    %2244 = vmatpush.bf16.msra.mxu0 %v1727
    %2245 = vmatpush.bf16.msra.mxu0 %v1723
    %2246 = vmatpush.bf16.msra.mxu0 %v1719
    %2247 = vmatmul.bf16.gmra.mxu0 %v530
    %v2248 = vpop.f32.mrf.mxu0
    %v2249 = vadd.f32 %v2236, %v2248
    %v2250 = vpop.f32.mrf.mxu0
    %2251 = vdwg.mxu0
    %2252 = vmatpush.bf16.msra.mxu0 %v1779
    %2253 = vmatpush.bf16.msra.mxu0 %v1775
    %2254 = vmatpush.bf16.msra.mxu0 %v1771
    %2255 = vmatpush.bf16.msra.mxu0 %v1767
    %2256 = vmatpush.bf16.msra.mxu0 %v1763
    %2257 = vmatpush.bf16.msra.mxu0 %v1759
    %2258 = vmatpush.bf16.msra.mxu0 %v1755
    %2259 = vmatpush.bf16.msra.mxu0 %v1751
    %2260 = vmatmul.bf16.gmra.mxu0 %v531
    %v2261 = vpop.f32.mrf.mxu0
    %v2262 = vadd.f32 %v2249, %v2261
    %v2263 = vpop.f32.mrf.mxu0
    %2264 = vdwg.mxu0
    %2265 = vmatpush.bf16.msra.mxu0 %v1811
    %2266 = vmatpush.bf16.msra.mxu0 %v1807
    %2267 = vmatpush.bf16.msra.mxu0 %v1803
    %2268 = vmatpush.bf16.msra.mxu0 %v1799
    %2269 = vmatpush.bf16.msra.mxu0 %v1795
    %2270 = vmatpush.bf16.msra.mxu0 %v1791
    %2271 = vmatpush.bf16.msra.mxu0 %v1787
    %2272 = vmatpush.bf16.msra.mxu0 %v1783
    %2273 = vmatmul.bf16.gmra.mxu0 %v532
    %v2274 = vpop.f32.mrf.mxu0
    %v2275 = vadd.f32 %v2262, %v2274
    %v2276 = vpop.f32.mrf.mxu0
    %2277 = vdwg.mxu0
    %2278 = vmatpush.bf16.msra.mxu0 %v1588
    %2279 = vmatpush.bf16.msra.mxu0 %v1584
    %2280 = vmatpush.bf16.msra.mxu0 %v1580
    %2281 = vmatpush.bf16.msra.mxu0 %v1576
    %2282 = vmatpush.bf16.msra.mxu0 %v1572
    %2283 = vmatpush.bf16.msra.mxu0 %v1568
    %2284 = vmatpush.bf16.msra.mxu0 %v1564
    %2285 = vmatpush.bf16.msra.mxu0 %v1560
    %2286 = vmatmul.bf16.gmra.mxu0 %v525
    %v2287 = vpop.f32.mrf.mxu0
    %v2288 = vadd.f32 0.0, %v2287
    %v2289 = vpop.f32.mrf.mxu0
    %2290 = vdwg.mxu0
    %2291 = vmatpush.bf16.msra.mxu0 %v1620
    %2292 = vmatpush.bf16.msra.mxu0 %v1616
    %2293 = vmatpush.bf16.msra.mxu0 %v1612
    %2294 = vmatpush.bf16.msra.mxu0 %v1608
    %2295 = vmatpush.bf16.msra.mxu0 %v1604
    %2296 = vmatpush.bf16.msra.mxu0 %v1600
    %2297 = vmatpush.bf16.msra.mxu0 %v1596
    %2298 = vmatpush.bf16.msra.mxu0 %v1592
    %2299 = vmatmul.bf16.gmra.mxu0 %v526
    %v2300 = vpop.f32.mrf.mxu0
    %v2301 = vadd.f32 %v2288, %v2300
    %v2302 = vpop.f32.mrf.mxu0
    %2303 = vdwg.mxu0
    %2304 = vmatpush.bf16.msra.mxu0 %v1652
    %2305 = vmatpush.bf16.msra.mxu0 %v1648
    %2306 = vmatpush.bf16.msra.mxu0 %v1644
    %2307 = vmatpush.bf16.msra.mxu0 %v1640
    %2308 = vmatpush.bf16.msra.mxu0 %v1636
    %2309 = vmatpush.bf16.msra.mxu0 %v1632
    %2310 = vmatpush.bf16.msra.mxu0 %v1628
    %2311 = vmatpush.bf16.msra.mxu0 %v1624
    %2312 = vmatmul.bf16.gmra.mxu0 %v527
    %v2313 = vpop.f32.mrf.mxu0
    %v2314 = vadd.f32 %v2301, %v2313
    %v2315 = vpop.f32.mrf.mxu0
    %2316 = vdwg.mxu0
    %2317 = vmatpush.bf16.msra.mxu0 %v1684
    %2318 = vmatpush.bf16.msra.mxu0 %v1680
    %2319 = vmatpush.bf16.msra.mxu0 %v1676
    %2320 = vmatpush.bf16.msra.mxu0 %v1672
    %2321 = vmatpush.bf16.msra.mxu0 %v1668
    %2322 = vmatpush.bf16.msra.mxu0 %v1664
    %2323 = vmatpush.bf16.msra.mxu0 %v1660
    %2324 = vmatpush.bf16.msra.mxu0 %v1656
    %2325 = vmatmul.bf16.gmra.mxu0 %v528
    %v2326 = vpop.f32.mrf.mxu0
    %v2327 = vadd.f32 %v2314, %v2326
    %v2328 = vpop.f32.mrf.mxu0
    %2329 = vdwg.mxu0
    %2330 = vmatpush.bf16.msra.mxu0 %v1716
    %2331 = vmatpush.bf16.msra.mxu0 %v1712
    %2332 = vmatpush.bf16.msra.mxu0 %v1708
    %2333 = vmatpush.bf16.msra.mxu0 %v1704
    %2334 = vmatpush.bf16.msra.mxu0 %v1700
    %2335 = vmatpush.bf16.msra.mxu0 %v1696
    %2336 = vmatpush.bf16.msra.mxu0 %v1692
    %2337 = vmatpush.bf16.msra.mxu0 %v1688
    %2338 = vmatmul.bf16.gmra.mxu0 %v529
    %v2339 = vpop.f32.mrf.mxu0
    %v2340 = vadd.f32 %v2327, %v2339
    %v2341 = vpop.f32.mrf.mxu0
    %2342 = vdwg.mxu0
    %2343 = vmatpush.bf16.msra.mxu0 %v1748
    %2344 = vmatpush.bf16.msra.mxu0 %v1744
    %2345 = vmatpush.bf16.msra.mxu0 %v1740
    %2346 = vmatpush.bf16.msra.mxu0 %v1736
    %2347 = vmatpush.bf16.msra.mxu0 %v1732
    %2348 = vmatpush.bf16.msra.mxu0 %v1728
    %2349 = vmatpush.bf16.msra.mxu0 %v1724
    %2350 = vmatpush.bf16.msra.mxu0 %v1720
    %2351 = vmatmul.bf16.gmra.mxu0 %v530
    %v2352 = vpop.f32.mrf.mxu0
    %v2353 = vadd.f32 %v2340, %v2352
    %v2354 = vpop.f32.mrf.mxu0
    %2355 = vdwg.mxu0
    %2356 = vmatpush.bf16.msra.mxu0 %v1780
    %2357 = vmatpush.bf16.msra.mxu0 %v1776
    %2358 = vmatpush.bf16.msra.mxu0 %v1772
    %2359 = vmatpush.bf16.msra.mxu0 %v1768
    %2360 = vmatpush.bf16.msra.mxu0 %v1764
    %2361 = vmatpush.bf16.msra.mxu0 %v1760
    %2362 = vmatpush.bf16.msra.mxu0 %v1756
    %2363 = vmatpush.bf16.msra.mxu0 %v1752
    %2364 = vmatmul.bf16.gmra.mxu0 %v531
    %v2365 = vpop.f32.mrf.mxu0
    %v2366 = vadd.f32 %v2353, %v2365
    %v2367 = vpop.f32.mrf.mxu0
    %2368 = vdwg.mxu0
    %2369 = vmatpush.bf16.msra.mxu0 %v1812
    %2370 = vmatpush.bf16.msra.mxu0 %v1808
    %2371 = vmatpush.bf16.msra.mxu0 %v1804
    %2372 = vmatpush.bf16.msra.mxu0 %v1800
    %2373 = vmatpush.bf16.msra.mxu0 %v1796
    %2374 = vmatpush.bf16.msra.mxu0 %v1792
    %2375 = vmatpush.bf16.msra.mxu0 %v1788
    %2376 = vmatpush.bf16.msra.mxu0 %v1784
    %2377 = vmatmul.bf16.gmra.mxu0 %v532
    %v2378 = vpop.f32.mrf.mxu0
    %v2379 = vadd.f32 %v2366, %v2378
    %v2380 = vpop.f32.mrf.mxu0
    %2381 = vdwg.mxu0
    %2382 = vmatpush.bf16.msra.mxu0 %v1589
    %2383 = vmatpush.bf16.msra.mxu0 %v1585
    %2384 = vmatpush.bf16.msra.mxu0 %v1581
    %2385 = vmatpush.bf16.msra.mxu0 %v1577
    %2386 = vmatpush.bf16.msra.mxu0 %v1573
    %2387 = vmatpush.bf16.msra.mxu0 %v1569
    %2388 = vmatpush.bf16.msra.mxu0 %v1565
    %2389 = vmatpush.bf16.msra.mxu0 %v1561
    %2390 = vmatmul.bf16.gmra.mxu0 %v525
    %v2391 = vpop.f32.mrf.mxu0
    %v2392 = vadd.f32 0.0, %v2391
    %v2393 = vpop.f32.mrf.mxu0
    %2394 = vdwg.mxu0
    %2395 = vmatpush.bf16.msra.mxu0 %v1621
    %2396 = vmatpush.bf16.msra.mxu0 %v1617
    %2397 = vmatpush.bf16.msra.mxu0 %v1613
    %2398 = vmatpush.bf16.msra.mxu0 %v1609
    %2399 = vmatpush.bf16.msra.mxu0 %v1605
    %2400 = vmatpush.bf16.msra.mxu0 %v1601
    %2401 = vmatpush.bf16.msra.mxu0 %v1597
    %2402 = vmatpush.bf16.msra.mxu0 %v1593
    %2403 = vmatmul.bf16.gmra.mxu0 %v526
    %v2404 = vpop.f32.mrf.mxu0
    %v2405 = vadd.f32 %v2392, %v2404
    %v2406 = vpop.f32.mrf.mxu0
    %2407 = vdwg.mxu0
    %2408 = vmatpush.bf16.msra.mxu0 %v1653
    %2409 = vmatpush.bf16.msra.mxu0 %v1649
    %2410 = vmatpush.bf16.msra.mxu0 %v1645
    %2411 = vmatpush.bf16.msra.mxu0 %v1641
    %2412 = vmatpush.bf16.msra.mxu0 %v1637
    %2413 = vmatpush.bf16.msra.mxu0 %v1633
    %2414 = vmatpush.bf16.msra.mxu0 %v1629
    %2415 = vmatpush.bf16.msra.mxu0 %v1625
    %2416 = vmatmul.bf16.gmra.mxu0 %v527
    %v2417 = vpop.f32.mrf.mxu0
    %v2418 = vadd.f32 %v2405, %v2417
    %v2419 = vpop.f32.mrf.mxu0
    %2420 = vdwg.mxu0
    %2421 = vmatpush.bf16.msra.mxu0 %v1685
    %2422 = vmatpush.bf16.msra.mxu0 %v1681
    %2423 = vmatpush.bf16.msra.mxu0 %v1677
    %2424 = vmatpush.bf16.msra.mxu0 %v1673
    %2425 = vmatpush.bf16.msra.mxu0 %v1669
    %2426 = vmatpush.bf16.msra.mxu0 %v1665
    %2427 = vmatpush.bf16.msra.mxu0 %v1661
    %2428 = vmatpush.bf16.msra.mxu0 %v1657
    %2429 = vmatmul.bf16.gmra.mxu0 %v528
    %v2430 = vpop.f32.mrf.mxu0
    %v2431 = vadd.f32 %v2418, %v2430
    %v2432 = vpop.f32.mrf.mxu0
    %2433 = vdwg.mxu0
    %2434 = vmatpush.bf16.msra.mxu0 %v1717
    %2435 = vmatpush.bf16.msra.mxu0 %v1713
    %2436 = vmatpush.bf16.msra.mxu0 %v1709
    %2437 = vmatpush.bf16.msra.mxu0 %v1705
    %2438 = vmatpush.bf16.msra.mxu0 %v1701
    %2439 = vmatpush.bf16.msra.mxu0 %v1697
    %2440 = vmatpush.bf16.msra.mxu0 %v1693
    %2441 = vmatpush.bf16.msra.mxu0 %v1689
    %2442 = vmatmul.bf16.gmra.mxu0 %v529
    %v2443 = vpop.f32.mrf.mxu0
    %v2444 = vadd.f32 %v2431, %v2443
    %v2445 = vpop.f32.mrf.mxu0
    %2446 = vdwg.mxu0
    %2447 = vmatpush.bf16.msra.mxu0 %v1749
    %2448 = vmatpush.bf16.msra.mxu0 %v1745
    %2449 = vmatpush.bf16.msra.mxu0 %v1741
    %2450 = vmatpush.bf16.msra.mxu0 %v1737
    %2451 = vmatpush.bf16.msra.mxu0 %v1733
    %2452 = vmatpush.bf16.msra.mxu0 %v1729
    %2453 = vmatpush.bf16.msra.mxu0 %v1725
    %2454 = vmatpush.bf16.msra.mxu0 %v1721
    %2455 = vmatmul.bf16.gmra.mxu0 %v530
    %v2456 = vpop.f32.mrf.mxu0
    %v2457 = vadd.f32 %v2444, %v2456
    %v2458 = vpop.f32.mrf.mxu0
    %2459 = vdwg.mxu0
    %2460 = vmatpush.bf16.msra.mxu0 %v1781
    %2461 = vmatpush.bf16.msra.mxu0 %v1777
    %2462 = vmatpush.bf16.msra.mxu0 %v1773
    %2463 = vmatpush.bf16.msra.mxu0 %v1769
    %2464 = vmatpush.bf16.msra.mxu0 %v1765
    %2465 = vmatpush.bf16.msra.mxu0 %v1761
    %2466 = vmatpush.bf16.msra.mxu0 %v1757
    %2467 = vmatpush.bf16.msra.mxu0 %v1753
    %2468 = vmatmul.bf16.gmra.mxu0 %v531
    %v2469 = vpop.f32.mrf.mxu0
    %v2470 = vadd.f32 %v2457, %v2469
    %v2471 = vpop.f32.mrf.mxu0
    %2472 = vdwg.mxu0
    %2473 = vmatpush.bf16.msra.mxu0 %v1813
    %2474 = vmatpush.bf16.msra.mxu0 %v1809
    %2475 = vmatpush.bf16.msra.mxu0 %v1805
    %2476 = vmatpush.bf16.msra.mxu0 %v1801
    %2477 = vmatpush.bf16.msra.mxu0 %v1797
    %2478 = vmatpush.bf16.msra.mxu0 %v1793
    %2479 = vmatpush.bf16.msra.mxu0 %v1789
    %2480 = vmatpush.bf16.msra.mxu0 %v1785
    %2481 = vmatmul.bf16.gmra.mxu0 %v532
    %v2482 = vpop.f32.mrf.mxu0
    %v2483 = vadd.f32 %v2470, %v2482
    %v2484 = vpop.f32.mrf.mxu0
    %2485 = vdwg.mxu0
    %v2742 = vunpack.c.l.b16 %v245
    %v2743 = vunpack.c.h.b16 %v245
    %v2744 = vunpack.c.l.b16 %v246
    %v2745 = vunpack.c.h.b16 %v246
    %v2746 = vunpack.c.l.b16 %v247
    %v2747 = vunpack.c.h.b16 %v247
    %v2748 = vunpack.c.l.b16 %v248
    %v2749 = vunpack.c.h.b16 %v248
    %v2750 = vunpack.c.l.b16 %v249
    %v2751 = vunpack.c.h.b16 %v249
    %v2752 = vunpack.c.l.b16 %v250
    %v2753 = vunpack.c.h.b16 %v250
    %v2754 = vunpack.c.l.b16 %v251
    %v2755 = vunpack.c.h.b16 %v251
    %v2756 = vunpack.c.l.b16 %v252
    %v2757 = vunpack.c.h.b16 %v252
    %v2758 = vunpack.c.l.b16 %v253
    %v2759 = vunpack.c.h.b16 %v253
    %v2760 = vunpack.c.l.b16 %v254
    %v2761 = vunpack.c.h.b16 %v254
    %v2762 = vunpack.c.l.b16 %v255
    %v2763 = vunpack.c.h.b16 %v255
    %v2764 = vunpack.c.l.b16 %v256
    %v2765 = vunpack.c.h.b16 %v256
    %v2766 = vunpack.c.l.b16 %v257
    %v2767 = vunpack.c.h.b16 %v257
    %v2768 = vunpack.c.l.b16 %v258
    %v2769 = vunpack.c.h.b16 %v258
    %v2770 = vunpack.c.l.b16 %v259
    %v2771 = vunpack.c.h.b16 %v259
    %v2772 = vunpack.c.l.b16 %v260
    %v2773 = vunpack.c.h.b16 %v260
    %v2774 = vunpack.c.l.b16 %v261
    %v2775 = vunpack.c.h.b16 %v261
    %v2776 = vunpack.c.l.b16 %v262
    %v2777 = vunpack.c.h.b16 %v262
    %v2778 = vunpack.c.l.b16 %v263
    %v2779 = vunpack.c.h.b16 %v263
    %v2780 = vunpack.c.l.b16 %v264
    %v2781 = vunpack.c.h.b16 %v264
    %v2782 = vunpack.c.l.b16 %v265
    %v2783 = vunpack.c.h.b16 %v265
    %v2784 = vunpack.c.l.b16 %v266
    %v2785 = vunpack.c.h.b16 %v266
    %v2786 = vunpack.c.l.b16 %v267
    %v2787 = vunpack.c.h.b16 %v267
    %v2788 = vunpack.c.l.b16 %v268
    %v2789 = vunpack.c.h.b16 %v268
    %v2790 = vunpack.c.l.b16 %v269
    %v2791 = vunpack.c.h.b16 %v269
    %v2792 = vunpack.c.l.b16 %v270
    %v2793 = vunpack.c.h.b16 %v270
    %v2794 = vunpack.c.l.b16 %v271
    %v2795 = vunpack.c.h.b16 %v271
    %v2796 = vunpack.c.l.b16 %v272
    %v2797 = vunpack.c.h.b16 %v272
    %v2798 = vunpack.c.l.b16 %v273
    %v2799 = vunpack.c.h.b16 %v273
    %v2800 = vunpack.c.l.b16 %v274
    %v2801 = vunpack.c.h.b16 %v274
    %v2802 = vunpack.c.l.b16 %v275
    %v2803 = vunpack.c.h.b16 %v275
    %v2804 = vunpack.c.l.b16 %v276
    %v2805 = vunpack.c.h.b16 %v276
    %v2806 = vunpack.c.l.b16 %v277
    %v2807 = vunpack.c.h.b16 %v277
    %v2808 = vunpack.c.l.b16 %v278
    %v2809 = vunpack.c.h.b16 %v278
    %v2810 = vunpack.c.l.b16 %v279
    %v2811 = vunpack.c.h.b16 %v279
    %v2812 = vunpack.c.l.b16 %v280
    %v2813 = vunpack.c.h.b16 %v280
    %v2814 = vunpack.c.l.b16 %v281
    %v2815 = vunpack.c.h.b16 %v281
    %v2816 = vunpack.c.l.b16 %v282
    %v2817 = vunpack.c.h.b16 %v282
    %v2818 = vunpack.c.l.b16 %v283
    %v2819 = vunpack.c.h.b16 %v283
    %v2820 = vunpack.c.l.b16 %v284
    %v2821 = vunpack.c.h.b16 %v284
    %v2822 = vunpack.c.l.b16 %v285
    %v2823 = vunpack.c.h.b16 %v285
    %v2824 = vunpack.c.l.b16 %v286
    %v2825 = vunpack.c.h.b16 %v286
    %v2826 = vunpack.c.l.b16 %v287
    %v2827 = vunpack.c.h.b16 %v287
    %v2828 = vunpack.c.l.b16 %v288
    %v2829 = vunpack.c.h.b16 %v288
    %v2830 = vunpack.c.l.b16 %v289
    %v2831 = vunpack.c.h.b16 %v289
    %v2832 = vunpack.c.l.b16 %v290
    %v2833 = vunpack.c.h.b16 %v290
    %v2834 = vunpack.c.l.b16 %v291
    %v2835 = vunpack.c.h.b16 %v291
    %v2836 = vunpack.c.l.b16 %v292
    %v2837 = vunpack.c.h.b16 %v292
    %v2838 = vunpack.c.l.b16 %v293
    %v2839 = vunpack.c.h.b16 %v293
    %v2840 = vunpack.c.l.b16 %v294
    %v2841 = vunpack.c.h.b16 %v294
    %v2842 = vunpack.c.l.b16 %v295
    %v2843 = vunpack.c.h.b16 %v295
    %v2844 = vunpack.c.l.b16 %v296
    %v2845 = vunpack.c.h.b16 %v296
    %v2846 = vunpack.c.l.b16 %v297
    %v2847 = vunpack.c.h.b16 %v297
    %v2848 = vunpack.c.l.b16 %v298
    %v2849 = vunpack.c.h.b16 %v298
    %v2850 = vunpack.c.l.b16 %v299
    %v2851 = vunpack.c.h.b16 %v299
    %v2852 = vunpack.c.l.b16 %v300
    %v2853 = vunpack.c.h.b16 %v300
    %v2854 = vunpack.c.l.b16 %v301
    %v2855 = vunpack.c.h.b16 %v301
    %v2856 = vunpack.c.l.b16 %v302
    %v2857 = vunpack.c.h.b16 %v302
    %v2858 = vunpack.c.l.b16 %v303
    %v2859 = vunpack.c.h.b16 %v303
    %v2860 = vunpack.c.l.b16 %v304
    %v2861 = vunpack.c.h.b16 %v304
    %v2862 = vunpack.c.l.b16 %v305
    %v2863 = vunpack.c.h.b16 %v305
    %v2864 = vunpack.c.l.b16 %v306
    %v2865 = vunpack.c.h.b16 %v306
    %v2866 = vunpack.c.l.b16 %v307
    %v2867 = vunpack.c.h.b16 %v307
    %v2868 = vunpack.c.l.b16 %v308
    %v2869 = vunpack.c.h.b16 %v308
    %v2870 = vunpack.c.l.b16 %v309
    %v2871 = vunpack.c.h.b16 %v309
    %v2872 = vunpack.c.l.b16 %v310
    %v2873 = vunpack.c.h.b16 %v310
    %v2874 = vunpack.c.l.b16 %v311
    %v2875 = vunpack.c.h.b16 %v311
    %v2876 = vunpack.c.l.b16 %v312
    %v2877 = vunpack.c.h.b16 %v312
    %v2878 = vunpack.c.l.b16 %v313
    %v2879 = vunpack.c.h.b16 %v313
    %v2880 = vunpack.c.l.b16 %v314
    %v2881 = vunpack.c.h.b16 %v314
    %v2882 = vunpack.c.l.b16 %v315
    %v2883 = vunpack.c.h.b16 %v315
    %v2884 = vunpack.c.l.b16 %v316
    %v2885 = vunpack.c.h.b16 %v316
    %v2886 = vunpack.c.l.b16 %v317
    %v2887 = vunpack.c.h.b16 %v317
    %v2888 = vunpack.c.l.b16 %v318
    %v2889 = vunpack.c.h.b16 %v318
    %v2890 = vunpack.c.l.b16 %v319
    %v2891 = vunpack.c.h.b16 %v319
    %v2892 = vunpack.c.l.b16 %v320
    %v2893 = vunpack.c.h.b16 %v320
    %v2894 = vunpack.c.l.b16 %v321
    %v2895 = vunpack.c.h.b16 %v321
    %v2896 = vunpack.c.l.b16 %v322
    %v2897 = vunpack.c.h.b16 %v322
    %v2898 = vunpack.c.l.b16 %v323
    %v2899 = vunpack.c.h.b16 %v323
    %v2900 = vunpack.c.l.b16 %v324
    %v2901 = vunpack.c.h.b16 %v324
    %v2902 = vunpack.c.l.b16 %v325
    %v2903 = vunpack.c.h.b16 %v325
    %v2904 = vunpack.c.l.b16 %v326
    %v2905 = vunpack.c.h.b16 %v326
    %v2906 = vunpack.c.l.b16 %v327
    %v2907 = vunpack.c.h.b16 %v327
    %v2908 = vunpack.c.l.b16 %v328
    %v2909 = vunpack.c.h.b16 %v328
    %v2910 = vunpack.c.l.b16 %v329
    %v2911 = vunpack.c.h.b16 %v329
    %v2912 = vunpack.c.l.b16 %v330
    %v2913 = vunpack.c.h.b16 %v330
    %v2914 = vunpack.c.l.b16 %v331
    %v2915 = vunpack.c.h.b16 %v331
    %v2916 = vunpack.c.l.b16 %v332
    %v2917 = vunpack.c.h.b16 %v332
    %v2918 = vunpack.c.l.b16 %v333
    %v2919 = vunpack.c.h.b16 %v333
    %v2920 = vunpack.c.l.b16 %v334
    %v2921 = vunpack.c.h.b16 %v334
    %v2922 = vunpack.c.l.b16 %v335
    %v2923 = vunpack.c.h.b16 %v335
    %v2924 = vunpack.c.l.b16 %v336
    %v2925 = vunpack.c.h.b16 %v336
    %v2926 = vunpack.c.l.b16 %v337
    %v2927 = vunpack.c.h.b16 %v337
    %v2928 = vunpack.c.l.b16 %v338
    %v2929 = vunpack.c.h.b16 %v338
    %v2930 = vunpack.c.l.b16 %v339
    %v2931 = vunpack.c.h.b16 %v339
    %v2932 = vunpack.c.l.b16 %v340
    %v2933 = vunpack.c.h.b16 %v340
    %v2934 = vunpack.c.l.b16 %v341
    %v2935 = vunpack.c.h.b16 %v341
    %v2936 = vunpack.c.l.b16 %v342
    %v2937 = vunpack.c.h.b16 %v342
    %v2938 = vunpack.c.l.b16 %v343
    %v2939 = vunpack.c.h.b16 %v343
    %v2940 = vunpack.c.l.b16 %v344
    %v2941 = vunpack.c.h.b16 %v344
    %v2942 = vunpack.c.l.b16 %v345
    %v2943 = vunpack.c.h.b16 %v345
    %v2944 = vunpack.c.l.b16 %v346
    %v2945 = vunpack.c.h.b16 %v346
    %v2946 = vunpack.c.l.b16 %v347
    %v2947 = vunpack.c.h.b16 %v347
    %v2948 = vunpack.c.l.b16 %v348
    %v2949 = vunpack.c.h.b16 %v348
    %v2950 = vunpack.c.l.b16 %v349
    %v2951 = vunpack.c.h.b16 %v349
    %v2952 = vunpack.c.l.b16 %v350
    %v2953 = vunpack.c.h.b16 %v350
    %v2954 = vunpack.c.l.b16 %v351
    %v2955 = vunpack.c.h.b16 %v351
    %v2956 = vunpack.c.l.b16 %v352
    %v2957 = vunpack.c.h.b16 %v352
    %v2958 = vunpack.c.l.b16 %v353
    %v2959 = vunpack.c.h.b16 %v353
    %v2960 = vunpack.c.l.b16 %v354
    %v2961 = vunpack.c.h.b16 %v354
    %v2962 = vunpack.c.l.b16 %v355
    %v2963 = vunpack.c.h.b16 %v355
    %v2964 = vunpack.c.l.b16 %v356
    %v2965 = vunpack.c.h.b16 %v356
    %v2966 = vunpack.c.l.b16 %v357
    %v2967 = vunpack.c.h.b16 %v357
    %v2968 = vunpack.c.l.b16 %v358
    %v2969 = vunpack.c.h.b16 %v358
    %v2970 = vunpack.c.l.b16 %v359
    %v2971 = vunpack.c.h.b16 %v359
    %v2972 = vunpack.c.l.b16 %v360
    %v2973 = vunpack.c.h.b16 %v360
    %v2974 = vunpack.c.l.b16 %v361
    %v2975 = vunpack.c.h.b16 %v361
    %v2976 = vunpack.c.l.b16 %v362
    %v2977 = vunpack.c.h.b16 %v362
    %v2978 = vunpack.c.l.b16 %v363
    %v2979 = vunpack.c.h.b16 %v363
    %v2980 = vunpack.c.l.b16 %v364
    %v2981 = vunpack.c.h.b16 %v364
    %v2982 = vunpack.c.l.b16 %v365
    %v2983 = vunpack.c.h.b16 %v365
    %v2984 = vunpack.c.l.b16 %v366
    %v2985 = vunpack.c.h.b16 %v366
    %v2986 = vunpack.c.l.b16 %v367
    %v2987 = vunpack.c.h.b16 %v367
    %v2988 = vunpack.c.l.b16 %v368
    %v2989 = vunpack.c.h.b16 %v368
    %v2990 = vunpack.c.l.b16 %v369
    %v2991 = vunpack.c.h.b16 %v369
    %v2992 = vunpack.c.l.b16 %v370
    %v2993 = vunpack.c.h.b16 %v370
    %v2994 = vunpack.c.l.b16 %v371
    %v2995 = vunpack.c.h.b16 %v371
    %v2996 = vunpack.c.l.b16 %v372
    %v2997 = vunpack.c.h.b16 %v372
    %v2998 = vunpack.c.l.b16 %v373
    %v2999 = vunpack.c.h.b16 %v373
    %v3000 = vunpack.c.l.b16 %v374
    %v3001 = vunpack.c.h.b16 %v374
    %v3002 = vunpack.c.l.b16 %v375
    %v3003 = vunpack.c.h.b16 %v375
    %v3004 = vunpack.c.l.b16 %v376
    %v3005 = vunpack.c.h.b16 %v376
    %v3006 = vunpack.c.l.b16 %v377
    %v3007 = vunpack.c.h.b16 %v377
    %v3008 = vunpack.c.l.b16 %v378
    %v3009 = vunpack.c.h.b16 %v378
    %v3010 = vunpack.c.l.b16 %v379
    %v3011 = vunpack.c.h.b16 %v379
    %v3012 = vunpack.c.l.b16 %v380
    %v3013 = vunpack.c.h.b16 %v380
    %v3014 = vunpack.c.l.b16 %v381
    %v3015 = vunpack.c.h.b16 %v381
    %v3016 = vunpack.c.l.b16 %v382
    %v3017 = vunpack.c.h.b16 %v382
    %v3018 = vunpack.c.l.b16 %v383
    %v3019 = vunpack.c.h.b16 %v383
    %v3020 = vunpack.c.l.b16 %v384
    %v3021 = vunpack.c.h.b16 %v384
    %v3022 = vunpack.c.l.b16 %v385
    %v3023 = vunpack.c.h.b16 %v385
    %v3024 = vunpack.c.l.b16 %v386
    %v3025 = vunpack.c.h.b16 %v386
    %v3026 = vunpack.c.l.b16 %v387
    %v3027 = vunpack.c.h.b16 %v387
    %v3028 = vunpack.c.l.b16 %v388
    %v3029 = vunpack.c.h.b16 %v388
    %v3030 = vunpack.c.l.b16 %v389
    %v3031 = vunpack.c.h.b16 %v389
    %v3032 = vunpack.c.l.b16 %v390
    %v3033 = vunpack.c.h.b16 %v390
    %v3034 = vunpack.c.l.b16 %v391
    %v3035 = vunpack.c.h.b16 %v391
    %v3036 = vunpack.c.l.b16 %v392
    %v3037 = vunpack.c.h.b16 %v392
    %v3038 = vunpack.c.l.b16 %v393
    %v3039 = vunpack.c.h.b16 %v393
    %v3040 = vunpack.c.l.b16 %v394
    %v3041 = vunpack.c.h.b16 %v394
    %v3042 = vunpack.c.l.b16 %v395
    %v3043 = vunpack.c.h.b16 %v395
    %v3044 = vunpack.c.l.b16 %v396
    %v3045 = vunpack.c.h.b16 %v396
    %v3046 = vunpack.c.l.b16 %v397
    %v3047 = vunpack.c.h.b16 %v397
    %v3048 = vunpack.c.l.b16 %v398
    %v3049 = vunpack.c.h.b16 %v398
    %v3050 = vunpack.c.l.b16 %v399
    %v3051 = vunpack.c.h.b16 %v399
    %v3052 = vunpack.c.l.b16 %v400
    %v3053 = vunpack.c.h.b16 %v400
    %v3054 = vunpack.c.l.b16 %v401
    %v3055 = vunpack.c.h.b16 %v401
    %v3056 = vunpack.c.l.b16 %v402
    %v3057 = vunpack.c.h.b16 %v402
    %v3058 = vunpack.c.l.b16 %v403
    %v3059 = vunpack.c.h.b16 %v403
    %v3060 = vunpack.c.l.b16 %v404
    %v3061 = vunpack.c.h.b16 %v404
    %v3062 = vunpack.c.l.b16 %v405
    %v3063 = vunpack.c.h.b16 %v405
    %v3064 = vunpack.c.l.b16 %v406
    %v3065 = vunpack.c.h.b16 %v406
    %v3066 = vunpack.c.l.b16 %v407
    %v3067 = vunpack.c.h.b16 %v407
    %v3068 = vunpack.c.l.b16 %v408
    %v3069 = vunpack.c.h.b16 %v408
    %v3070 = vunpack.c.l.b16 %v409
    %v3071 = vunpack.c.h.b16 %v409
    %v3072 = vunpack.c.l.b16 %v410
    %v3073 = vunpack.c.h.b16 %v410
    %v3074 = vunpack.c.l.b16 %v411
    %v3075 = vunpack.c.h.b16 %v411
    %v3076 = vunpack.c.l.b16 %v412
    %v3077 = vunpack.c.h.b16 %v412
    %v3078 = vunpack.c.l.b16 %v413
    %v3079 = vunpack.c.h.b16 %v413
    %v3080 = vunpack.c.l.b16 %v414
    %v3081 = vunpack.c.h.b16 %v414
    %v3082 = vunpack.c.l.b16 %v415
    %v3083 = vunpack.c.h.b16 %v415
    %v3084 = vunpack.c.l.b16 %v416
    %v3085 = vunpack.c.h.b16 %v416
    %v3086 = vunpack.c.l.b16 %v417
    %v3087 = vunpack.c.h.b16 %v417
    %v3088 = vunpack.c.l.b16 %v418
    %v3089 = vunpack.c.h.b16 %v418
    %v3090 = vunpack.c.l.b16 %v419
    %v3091 = vunpack.c.h.b16 %v419
    %v3092 = vunpack.c.l.b16 %v420
    %v3093 = vunpack.c.h.b16 %v420
    %v3094 = vunpack.c.l.b16 %v421
    %v3095 = vunpack.c.h.b16 %v421
    %v3096 = vunpack.c.l.b16 %v422
    %v3097 = vunpack.c.h.b16 %v422
    %v3098 = vunpack.c.l.b16 %v423
    %v3099 = vunpack.c.h.b16 %v423
    %v3100 = vunpack.c.l.b16 %v424
    %v3101 = vunpack.c.h.b16 %v424
    %v3102 = vunpack.c.l.b16 %v425
    %v3103 = vunpack.c.h.b16 %v425
    %v3104 = vunpack.c.l.b16 %v426
    %v3105 = vunpack.c.h.b16 %v426
    %v3106 = vunpack.c.l.b16 %v427
    %v3107 = vunpack.c.h.b16 %v427
    %v3108 = vunpack.c.l.b16 %v428
    %v3109 = vunpack.c.h.b16 %v428
    %v3110 = vunpack.c.l.b16 %v429
    %v3111 = vunpack.c.h.b16 %v429
    %v3112 = vunpack.c.l.b16 %v430
    %v3113 = vunpack.c.h.b16 %v430
    %v3114 = vunpack.c.l.b16 %v431
    %v3115 = vunpack.c.h.b16 %v431
    %v3116 = vunpack.c.l.b16 %v432
    %v3117 = vunpack.c.h.b16 %v432
    %v3118 = vunpack.c.l.b16 %v433
    %v3119 = vunpack.c.h.b16 %v433
    %v3120 = vunpack.c.l.b16 %v434
    %v3121 = vunpack.c.h.b16 %v434
    %v3122 = vunpack.c.l.b16 %v435
    %v3123 = vunpack.c.h.b16 %v435
    %v3124 = vunpack.c.l.b16 %v436
    %v3125 = vunpack.c.h.b16 %v436
    %v3126 = vunpack.c.l.b16 %v437
    %v3127 = vunpack.c.h.b16 %v437
    %v3128 = vunpack.c.l.b16 %v438
    %v3129 = vunpack.c.h.b16 %v438
    %v3130 = vunpack.c.l.b16 %v439
    %v3131 = vunpack.c.h.b16 %v439
    %v3132 = vunpack.c.l.b16 %v440
    %v3133 = vunpack.c.h.b16 %v440
    %v3134 = vunpack.c.l.b16 %v441
    %v3135 = vunpack.c.h.b16 %v441
    %v3136 = vunpack.c.l.b16 %v442
    %v3137 = vunpack.c.h.b16 %v442
    %v3138 = vunpack.c.l.b16 %v443
    %v3139 = vunpack.c.h.b16 %v443
    %v3140 = vunpack.c.l.b16 %v444
    %v3141 = vunpack.c.h.b16 %v444
    %v3142 = vunpack.c.l.b16 %v445
    %v3143 = vunpack.c.h.b16 %v445
    %v3144 = vunpack.c.l.b16 %v446
    %v3145 = vunpack.c.h.b16 %v446
    %v3146 = vunpack.c.l.b16 %v447
    %v3147 = vunpack.c.h.b16 %v447
    %v3148 = vunpack.c.l.b16 %v448
    %v3149 = vunpack.c.h.b16 %v448
    %v3150 = vunpack.c.l.b16 %v449
    %v3151 = vunpack.c.h.b16 %v449
    %v3152 = vunpack.c.l.b16 %v450
    %v3153 = vunpack.c.h.b16 %v450
    %v3154 = vunpack.c.l.b16 %v451
    %v3155 = vunpack.c.h.b16 %v451
    %v3156 = vunpack.c.l.b16 %v452
    %v3157 = vunpack.c.h.b16 %v452
    %v3158 = vunpack.c.l.b16 %v453
    %v3159 = vunpack.c.h.b16 %v453
    %v3160 = vunpack.c.l.b16 %v454
    %v3161 = vunpack.c.h.b16 %v454
    %v3162 = vunpack.c.l.b16 %v455
    %v3163 = vunpack.c.h.b16 %v455
    %v3164 = vunpack.c.l.b16 %v456
    %v3165 = vunpack.c.h.b16 %v456
    %v3166 = vunpack.c.l.b16 %v457
    %v3167 = vunpack.c.h.b16 %v457
    %v3168 = vunpack.c.l.b16 %v458
    %v3169 = vunpack.c.h.b16 %v458
    %v3170 = vunpack.c.l.b16 %v459
    %v3171 = vunpack.c.h.b16 %v459
    %v3172 = vunpack.c.l.b16 %v460
    %v3173 = vunpack.c.h.b16 %v460
    %v3174 = vunpack.c.l.b16 %v461
    %v3175 = vunpack.c.h.b16 %v461
    %v3176 = vunpack.c.l.b16 %v462
    %v3177 = vunpack.c.h.b16 %v462
    %v3178 = vunpack.c.l.b16 %v463
    %v3179 = vunpack.c.h.b16 %v463
    %v3180 = vunpack.c.l.b16 %v464
    %v3181 = vunpack.c.h.b16 %v464
    %v3182 = vunpack.c.l.b16 %v465
    %v3183 = vunpack.c.h.b16 %v465
    %v3184 = vunpack.c.l.b16 %v466
    %v3185 = vunpack.c.h.b16 %v466
    %v3186 = vunpack.c.l.b16 %v467
    %v3187 = vunpack.c.h.b16 %v467
    %v3188 = vunpack.c.l.b16 %v468
    %v3189 = vunpack.c.h.b16 %v468
    %v3190 = vunpack.c.l.b16 %v469
    %v3191 = vunpack.c.h.b16 %v469
    %v3192 = vunpack.c.l.b16 %v470
    %v3193 = vunpack.c.h.b16 %v470
    %v3194 = vunpack.c.l.b16 %v471
    %v3195 = vunpack.c.h.b16 %v471
    %v3196 = vunpack.c.l.b16 %v472
    %v3197 = vunpack.c.h.b16 %v472
    %v3198 = vunpack.c.l.b16 %v473
    %v3199 = vunpack.c.h.b16 %v473
    %v3200 = vunpack.c.l.b16 %v474
    %v3201 = vunpack.c.h.b16 %v474
    %v3202 = vunpack.c.l.b16 %v475
    %v3203 = vunpack.c.h.b16 %v475
    %v3204 = vunpack.c.l.b16 %v476
    %v3205 = vunpack.c.h.b16 %v476
    %v3206 = vunpack.c.l.b16 %v477
    %v3207 = vunpack.c.h.b16 %v477
    %v3208 = vunpack.c.l.b16 %v478
    %v3209 = vunpack.c.h.b16 %v478
    %v3210 = vunpack.c.l.b16 %v479
    %v3211 = vunpack.c.h.b16 %v479
    %v3212 = vunpack.c.l.b16 %v480
    %v3213 = vunpack.c.h.b16 %v480
    %v3214 = vunpack.c.l.b16 %v481
    %v3215 = vunpack.c.h.b16 %v481
    %v3216 = vunpack.c.l.b16 %v482
    %v3217 = vunpack.c.h.b16 %v482
    %v3218 = vunpack.c.l.b16 %v483
    %v3219 = vunpack.c.h.b16 %v483
    %v3220 = vunpack.c.l.b16 %v484
    %v3221 = vunpack.c.h.b16 %v484
    %v3222 = vunpack.c.l.b16 %v485
    %v3223 = vunpack.c.h.b16 %v485
    %v3224 = vunpack.c.l.b16 %v486
    %v3225 = vunpack.c.h.b16 %v486
    %v3226 = vunpack.c.l.b16 %v487
    %v3227 = vunpack.c.h.b16 %v487
    %v3228 = vunpack.c.l.b16 %v488
    %v3229 = vunpack.c.h.b16 %v488
    %v3230 = vunpack.c.l.b16 %v489
    %v3231 = vunpack.c.h.b16 %v489
    %v3232 = vunpack.c.l.b16 %v490
    %v3233 = vunpack.c.h.b16 %v490
    %v3234 = vunpack.c.l.b16 %v491
    %v3235 = vunpack.c.h.b16 %v491
    %v3236 = vunpack.c.l.b16 %v492
    %v3237 = vunpack.c.h.b16 %v492
    %v3238 = vunpack.c.l.b16 %v493
    %v3239 = vunpack.c.h.b16 %v493
    %v3240 = vunpack.c.l.b16 %v494
    %v3241 = vunpack.c.h.b16 %v494
    %v3242 = vunpack.c.l.b16 %v495
    %v3243 = vunpack.c.h.b16 %v495
    %v3244 = vunpack.c.l.b16 %v496
    %v3245 = vunpack.c.h.b16 %v496
    %v3246 = vunpack.c.l.b16 %v497
    %v3247 = vunpack.c.h.b16 %v497
    %v3248 = vunpack.c.l.b16 %v498
    %v3249 = vunpack.c.h.b16 %v498
    %v3250 = vunpack.c.l.b16 %v499
    %v3251 = vunpack.c.h.b16 %v499
    %v3252 = vunpack.c.l.b16 %v500
    %v3253 = vunpack.c.h.b16 %v500
    %v3254 = vpack.c.b16 %v2746, %v2742
    %v3255 = vpack.c.b16 %v2747, %v2743
    %v3256 = vpack.c.b16 %v2748, %v2744
    %v3257 = vpack.c.b16 %v2749, %v2745
    %v3258 = vpack.c.b16 %v2754, %v2750
    %v3259 = vpack.c.b16 %v2755, %v2751
    %v3260 = vpack.c.b16 %v2756, %v2752
    %v3261 = vpack.c.b16 %v2757, %v2753
    %v3262 = vpack.c.b16 %v2762, %v2758
    %v3263 = vpack.c.b16 %v2763, %v2759
    %v3264 = vpack.c.b16 %v2764, %v2760
    %v3265 = vpack.c.b16 %v2765, %v2761
    %v3266 = vpack.c.b16 %v2770, %v2766
    %v3267 = vpack.c.b16 %v2771, %v2767
    %v3268 = vpack.c.b16 %v2772, %v2768
    %v3269 = vpack.c.b16 %v2773, %v2769
    %v3270 = vpack.c.b16 %v2778, %v2774
    %v3271 = vpack.c.b16 %v2779, %v2775
    %v3272 = vpack.c.b16 %v2780, %v2776
    %v3273 = vpack.c.b16 %v2781, %v2777
    %v3274 = vpack.c.b16 %v2786, %v2782
    %v3275 = vpack.c.b16 %v2787, %v2783
    %v3276 = vpack.c.b16 %v2788, %v2784
    %v3277 = vpack.c.b16 %v2789, %v2785
    %v3278 = vpack.c.b16 %v2794, %v2790
    %v3279 = vpack.c.b16 %v2795, %v2791
    %v3280 = vpack.c.b16 %v2796, %v2792
    %v3281 = vpack.c.b16 %v2797, %v2793
    %v3282 = vpack.c.b16 %v2802, %v2798
    %v3283 = vpack.c.b16 %v2803, %v2799
    %v3284 = vpack.c.b16 %v2804, %v2800
    %v3285 = vpack.c.b16 %v2805, %v2801
    %v3286 = vpack.c.b16 %v2810, %v2806
    %v3287 = vpack.c.b16 %v2811, %v2807
    %v3288 = vpack.c.b16 %v2812, %v2808
    %v3289 = vpack.c.b16 %v2813, %v2809
    %v3290 = vpack.c.b16 %v2818, %v2814
    %v3291 = vpack.c.b16 %v2819, %v2815
    %v3292 = vpack.c.b16 %v2820, %v2816
    %v3293 = vpack.c.b16 %v2821, %v2817
    %v3294 = vpack.c.b16 %v2826, %v2822
    %v3295 = vpack.c.b16 %v2827, %v2823
    %v3296 = vpack.c.b16 %v2828, %v2824
    %v3297 = vpack.c.b16 %v2829, %v2825
    %v3298 = vpack.c.b16 %v2834, %v2830
    %v3299 = vpack.c.b16 %v2835, %v2831
    %v3300 = vpack.c.b16 %v2836, %v2832
    %v3301 = vpack.c.b16 %v2837, %v2833
    %v3302 = vpack.c.b16 %v2842, %v2838
    %v3303 = vpack.c.b16 %v2843, %v2839
    %v3304 = vpack.c.b16 %v2844, %v2840
    %v3305 = vpack.c.b16 %v2845, %v2841
    %v3306 = vpack.c.b16 %v2850, %v2846
    %v3307 = vpack.c.b16 %v2851, %v2847
    %v3308 = vpack.c.b16 %v2852, %v2848
    %v3309 = vpack.c.b16 %v2853, %v2849
    %v3310 = vpack.c.b16 %v2858, %v2854
    %v3311 = vpack.c.b16 %v2859, %v2855
    %v3312 = vpack.c.b16 %v2860, %v2856
    %v3313 = vpack.c.b16 %v2861, %v2857
    %v3314 = vpack.c.b16 %v2866, %v2862
    %v3315 = vpack.c.b16 %v2867, %v2863
    %v3316 = vpack.c.b16 %v2868, %v2864
    %v3317 = vpack.c.b16 %v2869, %v2865
    %v3318 = vpack.c.b16 %v2874, %v2870
    %v3319 = vpack.c.b16 %v2875, %v2871
    %v3320 = vpack.c.b16 %v2876, %v2872
    %v3321 = vpack.c.b16 %v2877, %v2873
    %v3322 = vpack.c.b16 %v2882, %v2878
    %v3323 = vpack.c.b16 %v2883, %v2879
    %v3324 = vpack.c.b16 %v2884, %v2880
    %v3325 = vpack.c.b16 %v2885, %v2881
    %v3326 = vpack.c.b16 %v2890, %v2886
    %v3327 = vpack.c.b16 %v2891, %v2887
    %v3328 = vpack.c.b16 %v2892, %v2888
    %v3329 = vpack.c.b16 %v2893, %v2889
    %v3330 = vpack.c.b16 %v2898, %v2894
    %v3331 = vpack.c.b16 %v2899, %v2895
    %v3332 = vpack.c.b16 %v2900, %v2896
    %v3333 = vpack.c.b16 %v2901, %v2897
    %v3334 = vpack.c.b16 %v2906, %v2902
    %v3335 = vpack.c.b16 %v2907, %v2903
    %v3336 = vpack.c.b16 %v2908, %v2904
    %v3337 = vpack.c.b16 %v2909, %v2905
    %v3338 = vpack.c.b16 %v2914, %v2910
    %v3339 = vpack.c.b16 %v2915, %v2911
    %v3340 = vpack.c.b16 %v2916, %v2912
    %v3341 = vpack.c.b16 %v2917, %v2913
    %v3342 = vpack.c.b16 %v2922, %v2918
    %v3343 = vpack.c.b16 %v2923, %v2919
    %v3344 = vpack.c.b16 %v2924, %v2920
    %v3345 = vpack.c.b16 %v2925, %v2921
    %v3346 = vpack.c.b16 %v2930, %v2926
    %v3347 = vpack.c.b16 %v2931, %v2927
    %v3348 = vpack.c.b16 %v2932, %v2928
    %v3349 = vpack.c.b16 %v2933, %v2929
    %v3350 = vpack.c.b16 %v2938, %v2934
    %v3351 = vpack.c.b16 %v2939, %v2935
    %v3352 = vpack.c.b16 %v2940, %v2936
    %v3353 = vpack.c.b16 %v2941, %v2937
    %v3354 = vpack.c.b16 %v2946, %v2942
    %v3355 = vpack.c.b16 %v2947, %v2943
    %v3356 = vpack.c.b16 %v2948, %v2944
    %v3357 = vpack.c.b16 %v2949, %v2945
    %v3358 = vpack.c.b16 %v2954, %v2950
    %v3359 = vpack.c.b16 %v2955, %v2951
    %v3360 = vpack.c.b16 %v2956, %v2952
    %v3361 = vpack.c.b16 %v2957, %v2953
    %v3362 = vpack.c.b16 %v2962, %v2958
    %v3363 = vpack.c.b16 %v2963, %v2959
    %v3364 = vpack.c.b16 %v2964, %v2960
    %v3365 = vpack.c.b16 %v2965, %v2961
    %v3366 = vpack.c.b16 %v2970, %v2966
    %v3367 = vpack.c.b16 %v2971, %v2967
    %v3368 = vpack.c.b16 %v2972, %v2968
    %v3369 = vpack.c.b16 %v2973, %v2969
    %v3370 = vpack.c.b16 %v2978, %v2974
    %v3371 = vpack.c.b16 %v2979, %v2975
    %v3372 = vpack.c.b16 %v2980, %v2976
    %v3373 = vpack.c.b16 %v2981, %v2977
    %v3374 = vpack.c.b16 %v2986, %v2982
    %v3375 = vpack.c.b16 %v2987, %v2983
    %v3376 = vpack.c.b16 %v2988, %v2984
    %v3377 = vpack.c.b16 %v2989, %v2985
    %v3378 = vpack.c.b16 %v2994, %v2990
    %v3379 = vpack.c.b16 %v2995, %v2991
    %v3380 = vpack.c.b16 %v2996, %v2992
    %v3381 = vpack.c.b16 %v2997, %v2993
    %v3382 = vpack.c.b16 %v3002, %v2998
    %v3383 = vpack.c.b16 %v3003, %v2999
    %v3384 = vpack.c.b16 %v3004, %v3000
    %v3385 = vpack.c.b16 %v3005, %v3001
    %v3386 = vpack.c.b16 %v3010, %v3006
    %v3387 = vpack.c.b16 %v3011, %v3007
    %v3388 = vpack.c.b16 %v3012, %v3008
    %v3389 = vpack.c.b16 %v3013, %v3009
    %v3390 = vpack.c.b16 %v3018, %v3014
    %v3391 = vpack.c.b16 %v3019, %v3015
    %v3392 = vpack.c.b16 %v3020, %v3016
    %v3393 = vpack.c.b16 %v3021, %v3017
    %v3394 = vpack.c.b16 %v3026, %v3022
    %v3395 = vpack.c.b16 %v3027, %v3023
    %v3396 = vpack.c.b16 %v3028, %v3024
    %v3397 = vpack.c.b16 %v3029, %v3025
    %v3398 = vpack.c.b16 %v3034, %v3030
    %v3399 = vpack.c.b16 %v3035, %v3031
    %v3400 = vpack.c.b16 %v3036, %v3032
    %v3401 = vpack.c.b16 %v3037, %v3033
    %v3402 = vpack.c.b16 %v3042, %v3038
    %v3403 = vpack.c.b16 %v3043, %v3039
    %v3404 = vpack.c.b16 %v3044, %v3040
    %v3405 = vpack.c.b16 %v3045, %v3041
    %v3406 = vpack.c.b16 %v3050, %v3046
    %v3407 = vpack.c.b16 %v3051, %v3047
    %v3408 = vpack.c.b16 %v3052, %v3048
    %v3409 = vpack.c.b16 %v3053, %v3049
    %v3410 = vpack.c.b16 %v3058, %v3054
    %v3411 = vpack.c.b16 %v3059, %v3055
    %v3412 = vpack.c.b16 %v3060, %v3056
    %v3413 = vpack.c.b16 %v3061, %v3057
    %v3414 = vpack.c.b16 %v3066, %v3062
    %v3415 = vpack.c.b16 %v3067, %v3063
    %v3416 = vpack.c.b16 %v3068, %v3064
    %v3417 = vpack.c.b16 %v3069, %v3065
    %v3418 = vpack.c.b16 %v3074, %v3070
    %v3419 = vpack.c.b16 %v3075, %v3071
    %v3420 = vpack.c.b16 %v3076, %v3072
    %v3421 = vpack.c.b16 %v3077, %v3073
    %v3422 = vpack.c.b16 %v3082, %v3078
    %v3423 = vpack.c.b16 %v3083, %v3079
    %v3424 = vpack.c.b16 %v3084, %v3080
    %v3425 = vpack.c.b16 %v3085, %v3081
    %v3426 = vpack.c.b16 %v3090, %v3086
    %v3427 = vpack.c.b16 %v3091, %v3087
    %v3428 = vpack.c.b16 %v3092, %v3088
    %v3429 = vpack.c.b16 %v3093, %v3089
    %v3430 = vpack.c.b16 %v3098, %v3094
    %v3431 = vpack.c.b16 %v3099, %v3095
    %v3432 = vpack.c.b16 %v3100, %v3096
    %v3433 = vpack.c.b16 %v3101, %v3097
    %v3434 = vpack.c.b16 %v3106, %v3102
    %v3435 = vpack.c.b16 %v3107, %v3103
    %v3436 = vpack.c.b16 %v3108, %v3104
    %v3437 = vpack.c.b16 %v3109, %v3105
    %v3438 = vpack.c.b16 %v3114, %v3110
    %v3439 = vpack.c.b16 %v3115, %v3111
    %v3440 = vpack.c.b16 %v3116, %v3112
    %v3441 = vpack.c.b16 %v3117, %v3113
    %v3442 = vpack.c.b16 %v3122, %v3118
    %v3443 = vpack.c.b16 %v3123, %v3119
    %v3444 = vpack.c.b16 %v3124, %v3120
    %v3445 = vpack.c.b16 %v3125, %v3121
    %v3446 = vpack.c.b16 %v3130, %v3126
    %v3447 = vpack.c.b16 %v3131, %v3127
    %v3448 = vpack.c.b16 %v3132, %v3128
    %v3449 = vpack.c.b16 %v3133, %v3129
    %v3450 = vpack.c.b16 %v3138, %v3134
    %v3451 = vpack.c.b16 %v3139, %v3135
    %v3452 = vpack.c.b16 %v3140, %v3136
    %v3453 = vpack.c.b16 %v3141, %v3137
    %v3454 = vpack.c.b16 %v3146, %v3142
    %v3455 = vpack.c.b16 %v3147, %v3143
    %v3456 = vpack.c.b16 %v3148, %v3144
    %v3457 = vpack.c.b16 %v3149, %v3145
    %v3458 = vpack.c.b16 %v3154, %v3150
    %v3459 = vpack.c.b16 %v3155, %v3151
    %v3460 = vpack.c.b16 %v3156, %v3152
    %v3461 = vpack.c.b16 %v3157, %v3153
    %v3462 = vpack.c.b16 %v3162, %v3158
    %v3463 = vpack.c.b16 %v3163, %v3159
    %v3464 = vpack.c.b16 %v3164, %v3160
    %v3465 = vpack.c.b16 %v3165, %v3161
    %v3466 = vpack.c.b16 %v3170, %v3166
    %v3467 = vpack.c.b16 %v3171, %v3167
    %v3468 = vpack.c.b16 %v3172, %v3168
    %v3469 = vpack.c.b16 %v3173, %v3169
    %v3470 = vpack.c.b16 %v3178, %v3174
    %v3471 = vpack.c.b16 %v3179, %v3175
    %v3472 = vpack.c.b16 %v3180, %v3176
    %v3473 = vpack.c.b16 %v3181, %v3177
    %v3474 = vpack.c.b16 %v3186, %v3182
    %v3475 = vpack.c.b16 %v3187, %v3183
    %v3476 = vpack.c.b16 %v3188, %v3184
    %v3477 = vpack.c.b16 %v3189, %v3185
    %v3478 = vpack.c.b16 %v3194, %v3190
    %v3479 = vpack.c.b16 %v3195, %v3191
    %v3480 = vpack.c.b16 %v3196, %v3192
    %v3481 = vpack.c.b16 %v3197, %v3193
    %v3482 = vpack.c.b16 %v3202, %v3198
    %v3483 = vpack.c.b16 %v3203, %v3199
    %v3484 = vpack.c.b16 %v3204, %v3200
    %v3485 = vpack.c.b16 %v3205, %v3201
    %v3486 = vpack.c.b16 %v3210, %v3206
    %v3487 = vpack.c.b16 %v3211, %v3207
    %v3488 = vpack.c.b16 %v3212, %v3208
    %v3489 = vpack.c.b16 %v3213, %v3209
    %v3490 = vpack.c.b16 %v3218, %v3214
    %v3491 = vpack.c.b16 %v3219, %v3215
    %v3492 = vpack.c.b16 %v3220, %v3216
    %v3493 = vpack.c.b16 %v3221, %v3217
    %v3494 = vpack.c.b16 %v3226, %v3222
    %v3495 = vpack.c.b16 %v3227, %v3223
    %v3496 = vpack.c.b16 %v3228, %v3224
    %v3497 = vpack.c.b16 %v3229, %v3225
    %v3498 = vpack.c.b16 %v3234, %v3230
    %v3499 = vpack.c.b16 %v3235, %v3231
    %v3500 = vpack.c.b16 %v3236, %v3232
    %v3501 = vpack.c.b16 %v3237, %v3233
    %v3502 = vpack.c.b16 %v3242, %v3238
    %v3503 = vpack.c.b16 %v3243, %v3239
    %v3504 = vpack.c.b16 %v3244, %v3240
    %v3505 = vpack.c.b16 %v3245, %v3241
    %v3506 = vpack.c.b16 %v3250, %v3246
    %v3507 = vpack.c.b16 %v3251, %v3247
    %v3508 = vpack.c.b16 %v3252, %v3248
    %v3509 = vpack.c.b16 %v3253, %v3249
    %3766 = vmatpush.bf16.msra.mxu0 %v3282
    %3767 = vmatpush.bf16.msra.mxu0 %v3278
    %3768 = vmatpush.bf16.msra.mxu0 %v3274
    %3769 = vmatpush.bf16.msra.mxu0 %v3270
    %3770 = vmatpush.bf16.msra.mxu0 %v3266
    %3771 = vmatpush.bf16.msra.mxu0 %v3262
    %3772 = vmatpush.bf16.msra.mxu0 %v3258
    %3773 = vmatpush.bf16.msra.mxu0 %v3254
    %3774 = vmatmul.bf16.gmra.mxu0 %v237
    %v3775 = vpop.f32.mrf.mxu0
    %v3776 = vadd.f32 %v2171, %v3775
    %v3777 = vpop.f32.mrf.mxu0
    %3778 = vdwg.mxu0
    %3779 = vmatpush.bf16.msra.mxu0 %v3314
    %3780 = vmatpush.bf16.msra.mxu0 %v3310
    %3781 = vmatpush.bf16.msra.mxu0 %v3306
    %3782 = vmatpush.bf16.msra.mxu0 %v3302
    %3783 = vmatpush.bf16.msra.mxu0 %v3298
    %3784 = vmatpush.bf16.msra.mxu0 %v3294
    %3785 = vmatpush.bf16.msra.mxu0 %v3290
    %3786 = vmatpush.bf16.msra.mxu0 %v3286
    %3787 = vmatmul.bf16.gmra.mxu0 %v238
    %v3788 = vpop.f32.mrf.mxu0
    %v3789 = vadd.f32 %v3776, %v3788
    %v3790 = vpop.f32.mrf.mxu0
    %3791 = vdwg.mxu0
    %3792 = vmatpush.bf16.msra.mxu0 %v3346
    %3793 = vmatpush.bf16.msra.mxu0 %v3342
    %3794 = vmatpush.bf16.msra.mxu0 %v3338
    %3795 = vmatpush.bf16.msra.mxu0 %v3334
    %3796 = vmatpush.bf16.msra.mxu0 %v3330
    %3797 = vmatpush.bf16.msra.mxu0 %v3326
    %3798 = vmatpush.bf16.msra.mxu0 %v3322
    %3799 = vmatpush.bf16.msra.mxu0 %v3318
    %3800 = vmatmul.bf16.gmra.mxu0 %v239
    %v3801 = vpop.f32.mrf.mxu0
    %v3802 = vadd.f32 %v3789, %v3801
    %v3803 = vpop.f32.mrf.mxu0
    %3804 = vdwg.mxu0
    %3805 = vmatpush.bf16.msra.mxu0 %v3378
    %3806 = vmatpush.bf16.msra.mxu0 %v3374
    %3807 = vmatpush.bf16.msra.mxu0 %v3370
    %3808 = vmatpush.bf16.msra.mxu0 %v3366
    %3809 = vmatpush.bf16.msra.mxu0 %v3362
    %3810 = vmatpush.bf16.msra.mxu0 %v3358
    %3811 = vmatpush.bf16.msra.mxu0 %v3354
    %3812 = vmatpush.bf16.msra.mxu0 %v3350
    %3813 = vmatmul.bf16.gmra.mxu0 %v240
    %v3814 = vpop.f32.mrf.mxu0
    %v3815 = vadd.f32 %v3802, %v3814
    %v3816 = vpop.f32.mrf.mxu0
    %3817 = vdwg.mxu0
    %3818 = vmatpush.bf16.msra.mxu0 %v3410
    %3819 = vmatpush.bf16.msra.mxu0 %v3406
    %3820 = vmatpush.bf16.msra.mxu0 %v3402
    %3821 = vmatpush.bf16.msra.mxu0 %v3398
    %3822 = vmatpush.bf16.msra.mxu0 %v3394
    %3823 = vmatpush.bf16.msra.mxu0 %v3390
    %3824 = vmatpush.bf16.msra.mxu0 %v3386
    %3825 = vmatpush.bf16.msra.mxu0 %v3382
    %3826 = vmatmul.bf16.gmra.mxu0 %v241
    %v3827 = vpop.f32.mrf.mxu0
    %v3828 = vadd.f32 %v3815, %v3827
    %v3829 = vpop.f32.mrf.mxu0
    %3830 = vdwg.mxu0
    %3831 = vmatpush.bf16.msra.mxu0 %v3442
    %3832 = vmatpush.bf16.msra.mxu0 %v3438
    %3833 = vmatpush.bf16.msra.mxu0 %v3434
    %3834 = vmatpush.bf16.msra.mxu0 %v3430
    %3835 = vmatpush.bf16.msra.mxu0 %v3426
    %3836 = vmatpush.bf16.msra.mxu0 %v3422
    %3837 = vmatpush.bf16.msra.mxu0 %v3418
    %3838 = vmatpush.bf16.msra.mxu0 %v3414
    %3839 = vmatmul.bf16.gmra.mxu0 %v242
    %v3840 = vpop.f32.mrf.mxu0
    %v3841 = vadd.f32 %v3828, %v3840
    %v3842 = vpop.f32.mrf.mxu0
    %3843 = vdwg.mxu0
    %3844 = vmatpush.bf16.msra.mxu0 %v3474
    %3845 = vmatpush.bf16.msra.mxu0 %v3470
    %3846 = vmatpush.bf16.msra.mxu0 %v3466
    %3847 = vmatpush.bf16.msra.mxu0 %v3462
    %3848 = vmatpush.bf16.msra.mxu0 %v3458
    %3849 = vmatpush.bf16.msra.mxu0 %v3454
    %3850 = vmatpush.bf16.msra.mxu0 %v3450
    %3851 = vmatpush.bf16.msra.mxu0 %v3446
    %3852 = vmatmul.bf16.gmra.mxu0 %v243
    %v3853 = vpop.f32.mrf.mxu0
    %v3854 = vadd.f32 %v3841, %v3853
    %v3855 = vpop.f32.mrf.mxu0
    %3856 = vdwg.mxu0
    %3857 = vmatpush.bf16.msra.mxu0 %v3506
    %3858 = vmatpush.bf16.msra.mxu0 %v3502
    %3859 = vmatpush.bf16.msra.mxu0 %v3498
    %3860 = vmatpush.bf16.msra.mxu0 %v3494
    %3861 = vmatpush.bf16.msra.mxu0 %v3490
    %3862 = vmatpush.bf16.msra.mxu0 %v3486
    %3863 = vmatpush.bf16.msra.mxu0 %v3482
    %3864 = vmatpush.bf16.msra.mxu0 %v3478
    %3865 = vmatmul.bf16.gmra.mxu0 %v244
    %v3866 = vpop.f32.mrf.mxu0
    %v3867 = vadd.f32 %v3854, %v3866
    %v3868 = vpop.f32.mrf.mxu0
    %3869 = vdwg.mxu0
    %3870 = vmatpush.bf16.msra.mxu0 %v3283
    %3871 = vmatpush.bf16.msra.mxu0 %v3279
    %3872 = vmatpush.bf16.msra.mxu0 %v3275
    %3873 = vmatpush.bf16.msra.mxu0 %v3271
    %3874 = vmatpush.bf16.msra.mxu0 %v3267
    %3875 = vmatpush.bf16.msra.mxu0 %v3263
    %3876 = vmatpush.bf16.msra.mxu0 %v3259
    %3877 = vmatpush.bf16.msra.mxu0 %v3255
    %3878 = vmatmul.bf16.gmra.mxu0 %v237
    %v3879 = vpop.f32.mrf.mxu0
    %v3880 = vadd.f32 %v2275, %v3879
    %v3881 = vpop.f32.mrf.mxu0
    %3882 = vdwg.mxu0
    %3883 = vmatpush.bf16.msra.mxu0 %v3315
    %3884 = vmatpush.bf16.msra.mxu0 %v3311
    %3885 = vmatpush.bf16.msra.mxu0 %v3307
    %3886 = vmatpush.bf16.msra.mxu0 %v3303
    %3887 = vmatpush.bf16.msra.mxu0 %v3299
    %3888 = vmatpush.bf16.msra.mxu0 %v3295
    %3889 = vmatpush.bf16.msra.mxu0 %v3291
    %3890 = vmatpush.bf16.msra.mxu0 %v3287
    %3891 = vmatmul.bf16.gmra.mxu0 %v238
    %v3892 = vpop.f32.mrf.mxu0
    %v3893 = vadd.f32 %v3880, %v3892
    %v3894 = vpop.f32.mrf.mxu0
    %3895 = vdwg.mxu0
    %3896 = vmatpush.bf16.msra.mxu0 %v3347
    %3897 = vmatpush.bf16.msra.mxu0 %v3343
    %3898 = vmatpush.bf16.msra.mxu0 %v3339
    %3899 = vmatpush.bf16.msra.mxu0 %v3335
    %3900 = vmatpush.bf16.msra.mxu0 %v3331
    %3901 = vmatpush.bf16.msra.mxu0 %v3327
    %3902 = vmatpush.bf16.msra.mxu0 %v3323
    %3903 = vmatpush.bf16.msra.mxu0 %v3319
    %3904 = vmatmul.bf16.gmra.mxu0 %v239
    %v3905 = vpop.f32.mrf.mxu0
    %v3906 = vadd.f32 %v3893, %v3905
    %v3907 = vpop.f32.mrf.mxu0
    %3908 = vdwg.mxu0
    %3909 = vmatpush.bf16.msra.mxu0 %v3379
    %3910 = vmatpush.bf16.msra.mxu0 %v3375
    %3911 = vmatpush.bf16.msra.mxu0 %v3371
    %3912 = vmatpush.bf16.msra.mxu0 %v3367
    %3913 = vmatpush.bf16.msra.mxu0 %v3363
    %3914 = vmatpush.bf16.msra.mxu0 %v3359
    %3915 = vmatpush.bf16.msra.mxu0 %v3355
    %3916 = vmatpush.bf16.msra.mxu0 %v3351
    %3917 = vmatmul.bf16.gmra.mxu0 %v240
    %v3918 = vpop.f32.mrf.mxu0
    %v3919 = vadd.f32 %v3906, %v3918
    %v3920 = vpop.f32.mrf.mxu0
    %3921 = vdwg.mxu0
    %3922 = vmatpush.bf16.msra.mxu0 %v3411
    %3923 = vmatpush.bf16.msra.mxu0 %v3407
    %3924 = vmatpush.bf16.msra.mxu0 %v3403
    %3925 = vmatpush.bf16.msra.mxu0 %v3399
    %3926 = vmatpush.bf16.msra.mxu0 %v3395
    %3927 = vmatpush.bf16.msra.mxu0 %v3391
    %3928 = vmatpush.bf16.msra.mxu0 %v3387
    %3929 = vmatpush.bf16.msra.mxu0 %v3383
    %3930 = vmatmul.bf16.gmra.mxu0 %v241
    %v3931 = vpop.f32.mrf.mxu0
    %v3932 = vadd.f32 %v3919, %v3931
    %v3933 = vpop.f32.mrf.mxu0
    %3934 = vdwg.mxu0
    %3935 = vmatpush.bf16.msra.mxu0 %v3443
    %3936 = vmatpush.bf16.msra.mxu0 %v3439
    %3937 = vmatpush.bf16.msra.mxu0 %v3435
    %3938 = vmatpush.bf16.msra.mxu0 %v3431
    %3939 = vmatpush.bf16.msra.mxu0 %v3427
    %3940 = vmatpush.bf16.msra.mxu0 %v3423
    %3941 = vmatpush.bf16.msra.mxu0 %v3419
    %3942 = vmatpush.bf16.msra.mxu0 %v3415
    %3943 = vmatmul.bf16.gmra.mxu0 %v242
    %v3944 = vpop.f32.mrf.mxu0
    %v3945 = vadd.f32 %v3932, %v3944
    %v3946 = vpop.f32.mrf.mxu0
    %3947 = vdwg.mxu0
    %3948 = vmatpush.bf16.msra.mxu0 %v3475
    %3949 = vmatpush.bf16.msra.mxu0 %v3471
    %3950 = vmatpush.bf16.msra.mxu0 %v3467
    %3951 = vmatpush.bf16.msra.mxu0 %v3463
    %3952 = vmatpush.bf16.msra.mxu0 %v3459
    %3953 = vmatpush.bf16.msra.mxu0 %v3455
    %3954 = vmatpush.bf16.msra.mxu0 %v3451
    %3955 = vmatpush.bf16.msra.mxu0 %v3447
    %3956 = vmatmul.bf16.gmra.mxu0 %v243
    %v3957 = vpop.f32.mrf.mxu0
    %v3958 = vadd.f32 %v3945, %v3957
    %v3959 = vpop.f32.mrf.mxu0
    %3960 = vdwg.mxu0
    %3961 = vmatpush.bf16.msra.mxu0 %v3507
    %3962 = vmatpush.bf16.msra.mxu0 %v3503
    %3963 = vmatpush.bf16.msra.mxu0 %v3499
    %3964 = vmatpush.bf16.msra.mxu0 %v3495
    %3965 = vmatpush.bf16.msra.mxu0 %v3491
    %3966 = vmatpush.bf16.msra.mxu0 %v3487
    %3967 = vmatpush.bf16.msra.mxu0 %v3483
    %3968 = vmatpush.bf16.msra.mxu0 %v3479
    %3969 = vmatmul.bf16.gmra.mxu0 %v244
    %v3970 = vpop.f32.mrf.mxu0
    %v3971 = vadd.f32 %v3958, %v3970
    %v3972 = vpop.f32.mrf.mxu0
    %3973 = vdwg.mxu0
    %3974 = vmatpush.bf16.msra.mxu0 %v3284
    %3975 = vmatpush.bf16.msra.mxu0 %v3280
    %3976 = vmatpush.bf16.msra.mxu0 %v3276
    %3977 = vmatpush.bf16.msra.mxu0 %v3272
    %3978 = vmatpush.bf16.msra.mxu0 %v3268
    %3979 = vmatpush.bf16.msra.mxu0 %v3264
    %3980 = vmatpush.bf16.msra.mxu0 %v3260
    %3981 = vmatpush.bf16.msra.mxu0 %v3256
    %3982 = vmatmul.bf16.gmra.mxu0 %v237
    %v3983 = vpop.f32.mrf.mxu0
    %v3984 = vadd.f32 %v2379, %v3983
    %v3985 = vpop.f32.mrf.mxu0
    %3986 = vdwg.mxu0
    %3987 = vmatpush.bf16.msra.mxu0 %v3316
    %3988 = vmatpush.bf16.msra.mxu0 %v3312
    %3989 = vmatpush.bf16.msra.mxu0 %v3308
    %3990 = vmatpush.bf16.msra.mxu0 %v3304
    %3991 = vmatpush.bf16.msra.mxu0 %v3300
    %3992 = vmatpush.bf16.msra.mxu0 %v3296
    %3993 = vmatpush.bf16.msra.mxu0 %v3292
    %3994 = vmatpush.bf16.msra.mxu0 %v3288
    %3995 = vmatmul.bf16.gmra.mxu0 %v238
    %v3996 = vpop.f32.mrf.mxu0
    %v3997 = vadd.f32 %v3984, %v3996
    %v3998 = vpop.f32.mrf.mxu0
    %3999 = vdwg.mxu0
    %4000 = vmatpush.bf16.msra.mxu0 %v3348
    %4001 = vmatpush.bf16.msra.mxu0 %v3344
    %4002 = vmatpush.bf16.msra.mxu0 %v3340
    %4003 = vmatpush.bf16.msra.mxu0 %v3336
    %4004 = vmatpush.bf16.msra.mxu0 %v3332
    %4005 = vmatpush.bf16.msra.mxu0 %v3328
    %4006 = vmatpush.bf16.msra.mxu0 %v3324
    %4007 = vmatpush.bf16.msra.mxu0 %v3320
    %4008 = vmatmul.bf16.gmra.mxu0 %v239
    %v4009 = vpop.f32.mrf.mxu0
    %v4010 = vadd.f32 %v3997, %v4009
    %v4011 = vpop.f32.mrf.mxu0
    %4012 = vdwg.mxu0
    %4013 = vmatpush.bf16.msra.mxu0 %v3380
    %4014 = vmatpush.bf16.msra.mxu0 %v3376
    %4015 = vmatpush.bf16.msra.mxu0 %v3372
    %4016 = vmatpush.bf16.msra.mxu0 %v3368
    %4017 = vmatpush.bf16.msra.mxu0 %v3364
    %4018 = vmatpush.bf16.msra.mxu0 %v3360
    %4019 = vmatpush.bf16.msra.mxu0 %v3356
    %4020 = vmatpush.bf16.msra.mxu0 %v3352
    %4021 = vmatmul.bf16.gmra.mxu0 %v240
    %v4022 = vpop.f32.mrf.mxu0
    %v4023 = vadd.f32 %v4010, %v4022
    %v4024 = vpop.f32.mrf.mxu0
    %4025 = vdwg.mxu0
    %4026 = vmatpush.bf16.msra.mxu0 %v3412
    %4027 = vmatpush.bf16.msra.mxu0 %v3408
    %4028 = vmatpush.bf16.msra.mxu0 %v3404
    %4029 = vmatpush.bf16.msra.mxu0 %v3400
    %4030 = vmatpush.bf16.msra.mxu0 %v3396
    %4031 = vmatpush.bf16.msra.mxu0 %v3392
    %4032 = vmatpush.bf16.msra.mxu0 %v3388
    %4033 = vmatpush.bf16.msra.mxu0 %v3384
    %4034 = vmatmul.bf16.gmra.mxu0 %v241
    %v4035 = vpop.f32.mrf.mxu0
    %v4036 = vadd.f32 %v4023, %v4035
    %v4037 = vpop.f32.mrf.mxu0
    %4038 = vdwg.mxu0
    %4039 = vmatpush.bf16.msra.mxu0 %v3444
    %4040 = vmatpush.bf16.msra.mxu0 %v3440
    %4041 = vmatpush.bf16.msra.mxu0 %v3436
    %4042 = vmatpush.bf16.msra.mxu0 %v3432
    %4043 = vmatpush.bf16.msra.mxu0 %v3428
    %4044 = vmatpush.bf16.msra.mxu0 %v3424
    %4045 = vmatpush.bf16.msra.mxu0 %v3420
    %4046 = vmatpush.bf16.msra.mxu0 %v3416
    %4047 = vmatmul.bf16.gmra.mxu0 %v242
    %v4048 = vpop.f32.mrf.mxu0
    %v4049 = vadd.f32 %v4036, %v4048
    %v4050 = vpop.f32.mrf.mxu0
    %4051 = vdwg.mxu0
    %4052 = vmatpush.bf16.msra.mxu0 %v3476
    %4053 = vmatpush.bf16.msra.mxu0 %v3472
    %4054 = vmatpush.bf16.msra.mxu0 %v3468
    %4055 = vmatpush.bf16.msra.mxu0 %v3464
    %4056 = vmatpush.bf16.msra.mxu0 %v3460
    %4057 = vmatpush.bf16.msra.mxu0 %v3456
    %4058 = vmatpush.bf16.msra.mxu0 %v3452
    %4059 = vmatpush.bf16.msra.mxu0 %v3448
    %4060 = vmatmul.bf16.gmra.mxu0 %v243
    %v4061 = vpop.f32.mrf.mxu0
    %v4062 = vadd.f32 %v4049, %v4061
    %v4063 = vpop.f32.mrf.mxu0
    %4064 = vdwg.mxu0
    %4065 = vmatpush.bf16.msra.mxu0 %v3508
    %4066 = vmatpush.bf16.msra.mxu0 %v3504
    %4067 = vmatpush.bf16.msra.mxu0 %v3500
    %4068 = vmatpush.bf16.msra.mxu0 %v3496
    %4069 = vmatpush.bf16.msra.mxu0 %v3492
    %4070 = vmatpush.bf16.msra.mxu0 %v3488
    %4071 = vmatpush.bf16.msra.mxu0 %v3484
    %4072 = vmatpush.bf16.msra.mxu0 %v3480
    %4073 = vmatmul.bf16.gmra.mxu0 %v244
    %v4074 = vpop.f32.mrf.mxu0
    %v4075 = vadd.f32 %v4062, %v4074
    %v4076 = vpop.f32.mrf.mxu0
    %4077 = vdwg.mxu0
    %4078 = vmatpush.bf16.msra.mxu0 %v3285
    %4079 = vmatpush.bf16.msra.mxu0 %v3281
    %4080 = vmatpush.bf16.msra.mxu0 %v3277
    %4081 = vmatpush.bf16.msra.mxu0 %v3273
    %4082 = vmatpush.bf16.msra.mxu0 %v3269
    %4083 = vmatpush.bf16.msra.mxu0 %v3265
    %4084 = vmatpush.bf16.msra.mxu0 %v3261
    %4085 = vmatpush.bf16.msra.mxu0 %v3257
    %4086 = vmatmul.bf16.gmra.mxu0 %v237
    %v4087 = vpop.f32.mrf.mxu0
    %v4088 = vadd.f32 %v2483, %v4087
    %v4089 = vpop.f32.mrf.mxu0
    %4090 = vdwg.mxu0
    %4091 = vmatpush.bf16.msra.mxu0 %v3317
    %4092 = vmatpush.bf16.msra.mxu0 %v3313
    %4093 = vmatpush.bf16.msra.mxu0 %v3309
    %4094 = vmatpush.bf16.msra.mxu0 %v3305
    %4095 = vmatpush.bf16.msra.mxu0 %v3301
    %4096 = vmatpush.bf16.msra.mxu0 %v3297
    %4097 = vmatpush.bf16.msra.mxu0 %v3293
    %4098 = vmatpush.bf16.msra.mxu0 %v3289
    %4099 = vmatmul.bf16.gmra.mxu0 %v238
    %v4100 = vpop.f32.mrf.mxu0
    %v4101 = vadd.f32 %v4088, %v4100
    %v4102 = vpop.f32.mrf.mxu0
    %4103 = vdwg.mxu0
    %4104 = vmatpush.bf16.msra.mxu0 %v3349
    %4105 = vmatpush.bf16.msra.mxu0 %v3345
    %4106 = vmatpush.bf16.msra.mxu0 %v3341
    %4107 = vmatpush.bf16.msra.mxu0 %v3337
    %4108 = vmatpush.bf16.msra.mxu0 %v3333
    %4109 = vmatpush.bf16.msra.mxu0 %v3329
    %4110 = vmatpush.bf16.msra.mxu0 %v3325
    %4111 = vmatpush.bf16.msra.mxu0 %v3321
    %4112 = vmatmul.bf16.gmra.mxu0 %v239
    %v4113 = vpop.f32.mrf.mxu0
    %v4114 = vadd.f32 %v4101, %v4113
    %v4115 = vpop.f32.mrf.mxu0
    %4116 = vdwg.mxu0
    %4117 = vmatpush.bf16.msra.mxu0 %v3381
    %4118 = vmatpush.bf16.msra.mxu0 %v3377
    %4119 = vmatpush.bf16.msra.mxu0 %v3373
    %4120 = vmatpush.bf16.msra.mxu0 %v3369
    %4121 = vmatpush.bf16.msra.mxu0 %v3365
    %4122 = vmatpush.bf16.msra.mxu0 %v3361
    %4123 = vmatpush.bf16.msra.mxu0 %v3357
    %4124 = vmatpush.bf16.msra.mxu0 %v3353
    %4125 = vmatmul.bf16.gmra.mxu0 %v240
    %v4126 = vpop.f32.mrf.mxu0
    %v4127 = vadd.f32 %v4114, %v4126
    %v4128 = vpop.f32.mrf.mxu0
    %4129 = vdwg.mxu0
    %4130 = vmatpush.bf16.msra.mxu0 %v3413
    %4131 = vmatpush.bf16.msra.mxu0 %v3409
    %4132 = vmatpush.bf16.msra.mxu0 %v3405
    %4133 = vmatpush.bf16.msra.mxu0 %v3401
    %4134 = vmatpush.bf16.msra.mxu0 %v3397
    %4135 = vmatpush.bf16.msra.mxu0 %v3393
    %4136 = vmatpush.bf16.msra.mxu0 %v3389
    %4137 = vmatpush.bf16.msra.mxu0 %v3385
    %4138 = vmatmul.bf16.gmra.mxu0 %v241
    %v4139 = vpop.f32.mrf.mxu0
    %v4140 = vadd.f32 %v4127, %v4139
    %v4141 = vpop.f32.mrf.mxu0
    %4142 = vdwg.mxu0
    %4143 = vmatpush.bf16.msra.mxu0 %v3445
    %4144 = vmatpush.bf16.msra.mxu0 %v3441
    %4145 = vmatpush.bf16.msra.mxu0 %v3437
    %4146 = vmatpush.bf16.msra.mxu0 %v3433
    %4147 = vmatpush.bf16.msra.mxu0 %v3429
    %4148 = vmatpush.bf16.msra.mxu0 %v3425
    %4149 = vmatpush.bf16.msra.mxu0 %v3421
    %4150 = vmatpush.bf16.msra.mxu0 %v3417
    %4151 = vmatmul.bf16.gmra.mxu0 %v242
    %v4152 = vpop.f32.mrf.mxu0
    %v4153 = vadd.f32 %v4140, %v4152
    %v4154 = vpop.f32.mrf.mxu0
    %4155 = vdwg.mxu0
    %4156 = vmatpush.bf16.msra.mxu0 %v3477
    %4157 = vmatpush.bf16.msra.mxu0 %v3473
    %4158 = vmatpush.bf16.msra.mxu0 %v3469
    %4159 = vmatpush.bf16.msra.mxu0 %v3465
    %4160 = vmatpush.bf16.msra.mxu0 %v3461
    %4161 = vmatpush.bf16.msra.mxu0 %v3457
    %4162 = vmatpush.bf16.msra.mxu0 %v3453
    %4163 = vmatpush.bf16.msra.mxu0 %v3449
    %4164 = vmatmul.bf16.gmra.mxu0 %v243
    %v4165 = vpop.f32.mrf.mxu0
    %v4166 = vadd.f32 %v4153, %v4165
    %v4167 = vpop.f32.mrf.mxu0
    %4168 = vdwg.mxu0
    %4169 = vmatpush.bf16.msra.mxu0 %v3509
    %4170 = vmatpush.bf16.msra.mxu0 %v3505
    %4171 = vmatpush.bf16.msra.mxu0 %v3501
    %4172 = vmatpush.bf16.msra.mxu0 %v3497
    %4173 = vmatpush.bf16.msra.mxu0 %v3493
    %4174 = vmatpush.bf16.msra.mxu0 %v3489
    %4175 = vmatpush.bf16.msra.mxu0 %v3485
    %4176 = vmatpush.bf16.msra.mxu0 %v3481
    %4177 = vmatmul.bf16.gmra.mxu0 %v244
    %v4178 = vpop.f32.mrf.mxu0
    %v4179 = vadd.f32 %v4166, %v4178
    %v4180 = vpop.f32.mrf.mxu0
    %4181 = vdwg.mxu0
    %s4182 = scalar_lea.vmem [#allocation2], 32
    %v4183 = vld [vmem:[%s4182] sm:$0xff]
    %v4184 = vld [vmem:[%s4182 + $0x8] sm:$0xff]
    %4187 = vst [vmem:[#allocation1] ss:$4 sm:$0xff] %v4183
    %s4188 = scalar_lea.vmem [#allocation1], 32
    %4189 = vst [vmem:[%s4188] ss:$4 sm:$0xff] %v4184
    %v4190 = vld.sshfl [vmem:[#allocation1] sm:$0xff pattern:$0x73625140]
    %v4191 = vld.sshfl [vmem:[#allocation1 + $0x8] sm:$0xff pattern:$0x73625140]
    %v4192 = vld.sshfl [vmem:[#allocation1 + $0x10] sm:$0xff pattern:$0x73625140]
    %v4193 = vld.sshfl [vmem:[#allocation1 + $0x18] sm:$0xff pattern:$0x73625140]
    %v4194 = vld.sshfl [vmem:[#allocation1 + $0x20] sm:$0xff pattern:$0x73625140]
    %v4195 = vld.sshfl [vmem:[#allocation1 + $0x28] sm:$0xff pattern:$0x73625140]
    %v4196 = vld.sshfl [vmem:[#allocation1 + $0x30] sm:$0xff pattern:$0x73625140]
    %v4197 = vld.sshfl [vmem:[#allocation1 + $0x38] sm:$0xff pattern:$0x73625140]
    %v4206 = vpack.c.bf16 %v4190, %v4190
    %v4207 = vpack.c.bf16 %v4191, %v4191
    %v4208 = vpack.c.bf16 %v4192, %v4192
    %v4209 = vpack.c.bf16 %v4193, %v4193
    %v4210 = vpack.c.bf16 %v4194, %v4194
    %v4211 = vpack.c.bf16 %v4195, %v4195
    %v4212 = vpack.c.bf16 %v4196, %v4196
    %v4213 = vpack.c.bf16 %v4197, %v4197
    %s4214 = scalar_lea.vmem [#allocation6], 4096
    %v4215 = vld [vmem:[%s4214] sm:$0xff]
    %v4216 = vld [vmem:[%s4214 + $0x8] sm:$0xff]
    %v4217 = vld [vmem:[%s4214 + $0x10] sm:$0xff]
    %v4218 = vld [vmem:[%s4214 + $0x18] sm:$0xff]
    %v4219 = vld [vmem:[%s4214 + $0x20] sm:$0xff]
    %v4220 = vld [vmem:[%s4214 + $0x28] sm:$0xff]
    %v4221 = vld [vmem:[%s4214 + $0x30] sm:$0xff]
    %v4222 = vld [vmem:[%s4214 + $0x38] sm:$0xff]
    %v4223 = vld [vmem:[%s4214 + $0x40] sm:$0xff]
    %v4224 = vld [vmem:[%s4214 + $0x48] sm:$0xff]
    %v4225 = vld [vmem:[%s4214 + $0x50] sm:$0xff]
    %v4226 = vld [vmem:[%s4214 + $0x58] sm:$0xff]
    %v4227 = vld [vmem:[%s4214 + $0x60] sm:$0xff]
    %v4228 = vld [vmem:[%s4214 + $0x68] sm:$0xff]
    %v4229 = vld [vmem:[%s4214 + $0x70] sm:$0xff]
    %v4230 = vld [vmem:[%s4214 + $0x78] sm:$0xff]
    %v4231 = vld [vmem:[%s4214 + $0x80] sm:$0xff]
    %v4232 = vld [vmem:[%s4214 + $0x88] sm:$0xff]
    %v4233 = vld [vmem:[%s4214 + $0x90] sm:$0xff]
    %v4234 = vld [vmem:[%s4214 + $0x98] sm:$0xff]
    %v4235 = vld [vmem:[%s4214 + $0xa0] sm:$0xff]
    %v4236 = vld [vmem:[%s4214 + $0xa8] sm:$0xff]
    %v4237 = vld [vmem:[%s4214 + $0xb0] sm:$0xff]
    %v4238 = vld [vmem:[%s4214 + $0xb8] sm:$0xff]
    %v4239 = vld [vmem:[%s4214 + $0xc0] sm:$0xff]
    %v4240 = vld [vmem:[%s4214 + $0xc8] sm:$0xff]
    %v4241 = vld [vmem:[%s4214 + $0xd0] sm:$0xff]
    %v4242 = vld [vmem:[%s4214 + $0xd8] sm:$0xff]
    %v4243 = vld [vmem:[%s4214 + $0xe0] sm:$0xff]
    %v4244 = vld [vmem:[%s4214 + $0xe8] sm:$0xff]
    %v4245 = vld [vmem:[%s4214 + $0xf0] sm:$0xff]
    %v4246 = vld [vmem:[%s4214 + $0xf8] sm:$0xff]
    %v4247 = vld [vmem:[%s4214 + $0x100] sm:$0xff]
    %v4248 = vld [vmem:[%s4214 + $0x108] sm:$0xff]
    %v4249 = vld [vmem:[%s4214 + $0x110] sm:$0xff]
    %v4250 = vld [vmem:[%s4214 + $0x118] sm:$0xff]
    %v4251 = vld [vmem:[%s4214 + $0x120] sm:$0xff]
    %v4252 = vld [vmem:[%s4214 + $0x128] sm:$0xff]
    %v4253 = vld [vmem:[%s4214 + $0x130] sm:$0xff]
    %v4254 = vld [vmem:[%s4214 + $0x138] sm:$0xff]
    %v4255 = vld [vmem:[%s4214 + $0x140] sm:$0xff]
    %v4256 = vld [vmem:[%s4214 + $0x148] sm:$0xff]
    %v4257 = vld [vmem:[%s4214 + $0x150] sm:$0xff]
    %v4258 = vld [vmem:[%s4214 + $0x158] sm:$0xff]
    %v4259 = vld [vmem:[%s4214 + $0x160] sm:$0xff]
    %v4260 = vld [vmem:[%s4214 + $0x168] sm:$0xff]
    %v4261 = vld [vmem:[%s4214 + $0x170] sm:$0xff]
    %v4262 = vld [vmem:[%s4214 + $0x178] sm:$0xff]
    %v4263 = vld [vmem:[%s4214 + $0x180] sm:$0xff]
    %v4264 = vld [vmem:[%s4214 + $0x188] sm:$0xff]
    %v4265 = vld [vmem:[%s4214 + $0x190] sm:$0xff]
    %v4266 = vld [vmem:[%s4214 + $0x198] sm:$0xff]
    %v4267 = vld [vmem:[%s4214 + $0x1a0] sm:$0xff]
    %v4268 = vld [vmem:[%s4214 + $0x1a8] sm:$0xff]
    %v4269 = vld [vmem:[%s4214 + $0x1b0] sm:$0xff]
    %v4270 = vld [vmem:[%s4214 + $0x1b8] sm:$0xff]
    %v4271 = vld [vmem:[%s4214 + $0x1c0] sm:$0xff]
    %v4272 = vld [vmem:[%s4214 + $0x1c8] sm:$0xff]
    %v4273 = vld [vmem:[%s4214 + $0x1d0] sm:$0xff]
    %v4274 = vld [vmem:[%s4214 + $0x1d8] sm:$0xff]
    %v4275 = vld [vmem:[%s4214 + $0x1e0] sm:$0xff]
    %v4276 = vld [vmem:[%s4214 + $0x1e8] sm:$0xff]
    %v4277 = vld [vmem:[%s4214 + $0x1f0] sm:$0xff]
    %v4278 = vld [vmem:[%s4214 + $0x1f8] sm:$0xff]
    %v4279 = vld [vmem:[%s4214 + $0x200] sm:$0xff]
    %v4280 = vld [vmem:[%s4214 + $0x208] sm:$0xff]
    %v4281 = vld [vmem:[%s4214 + $0x210] sm:$0xff]
    %v4282 = vld [vmem:[%s4214 + $0x218] sm:$0xff]
    %v4283 = vld [vmem:[%s4214 + $0x220] sm:$0xff]
    %v4284 = vld [vmem:[%s4214 + $0x228] sm:$0xff]
    %v4285 = vld [vmem:[%s4214 + $0x230] sm:$0xff]
    %v4286 = vld [vmem:[%s4214 + $0x238] sm:$0xff]
    %v4287 = vld [vmem:[%s4214 + $0x240] sm:$0xff]
    %v4288 = vld [vmem:[%s4214 + $0x248] sm:$0xff]
    %v4289 = vld [vmem:[%s4214 + $0x250] sm:$0xff]
    %v4290 = vld [vmem:[%s4214 + $0x258] sm:$0xff]
    %v4291 = vld [vmem:[%s4214 + $0x260] sm:$0xff]
    %v4292 = vld [vmem:[%s4214 + $0x268] sm:$0xff]
    %v4293 = vld [vmem:[%s4214 + $0x270] sm:$0xff]
    %v4294 = vld [vmem:[%s4214 + $0x278] sm:$0xff]
    %v4295 = vld [vmem:[%s4214 + $0x280] sm:$0xff]
    %v4296 = vld [vmem:[%s4214 + $0x288] sm:$0xff]
    %v4297 = vld [vmem:[%s4214 + $0x290] sm:$0xff]
    %v4298 = vld [vmem:[%s4214 + $0x298] sm:$0xff]
    %v4299 = vld [vmem:[%s4214 + $0x2a0] sm:$0xff]
    %v4300 = vld [vmem:[%s4214 + $0x2a8] sm:$0xff]
    %v4301 = vld [vmem:[%s4214 + $0x2b0] sm:$0xff]
    %v4302 = vld [vmem:[%s4214 + $0x2b8] sm:$0xff]
    %v4303 = vld [vmem:[%s4214 + $0x2c0] sm:$0xff]
    %v4304 = vld [vmem:[%s4214 + $0x2c8] sm:$0xff]
    %v4305 = vld [vmem:[%s4214 + $0x2d0] sm:$0xff]
    %v4306 = vld [vmem:[%s4214 + $0x2d8] sm:$0xff]
    %v4307 = vld [vmem:[%s4214 + $0x2e0] sm:$0xff]
    %v4308 = vld [vmem:[%s4214 + $0x2e8] sm:$0xff]
    %v4309 = vld [vmem:[%s4214 + $0x2f0] sm:$0xff]
    %v4310 = vld [vmem:[%s4214 + $0x2f8] sm:$0xff]
    %v4311 = vld [vmem:[%s4214 + $0x300] sm:$0xff]
    %v4312 = vld [vmem:[%s4214 + $0x308] sm:$0xff]
    %v4313 = vld [vmem:[%s4214 + $0x310] sm:$0xff]
    %v4314 = vld [vmem:[%s4214 + $0x318] sm:$0xff]
    %v4315 = vld [vmem:[%s4214 + $0x320] sm:$0xff]
    %v4316 = vld [vmem:[%s4214 + $0x328] sm:$0xff]
    %v4317 = vld [vmem:[%s4214 + $0x330] sm:$0xff]
    %v4318 = vld [vmem:[%s4214 + $0x338] sm:$0xff]
    %v4319 = vld [vmem:[%s4214 + $0x340] sm:$0xff]
    %v4320 = vld [vmem:[%s4214 + $0x348] sm:$0xff]
    %v4321 = vld [vmem:[%s4214 + $0x350] sm:$0xff]
    %v4322 = vld [vmem:[%s4214 + $0x358] sm:$0xff]
    %v4323 = vld [vmem:[%s4214 + $0x360] sm:$0xff]
    %v4324 = vld [vmem:[%s4214 + $0x368] sm:$0xff]
    %v4325 = vld [vmem:[%s4214 + $0x370] sm:$0xff]
    %v4326 = vld [vmem:[%s4214 + $0x378] sm:$0xff]
    %v4327 = vld [vmem:[%s4214 + $0x380] sm:$0xff]
    %v4328 = vld [vmem:[%s4214 + $0x388] sm:$0xff]
    %v4329 = vld [vmem:[%s4214 + $0x390] sm:$0xff]
    %v4330 = vld [vmem:[%s4214 + $0x398] sm:$0xff]
    %v4331 = vld [vmem:[%s4214 + $0x3a0] sm:$0xff]
    %v4332 = vld [vmem:[%s4214 + $0x3a8] sm:$0xff]
    %v4333 = vld [vmem:[%s4214 + $0x3b0] sm:$0xff]
    %v4334 = vld [vmem:[%s4214 + $0x3b8] sm:$0xff]
    %v4335 = vld [vmem:[%s4214 + $0x3c0] sm:$0xff]
    %v4336 = vld [vmem:[%s4214 + $0x3c8] sm:$0xff]
    %v4337 = vld [vmem:[%s4214 + $0x3d0] sm:$0xff]
    %v4338 = vld [vmem:[%s4214 + $0x3d8] sm:$0xff]
    %v4339 = vld [vmem:[%s4214 + $0x3e0] sm:$0xff]
    %v4340 = vld [vmem:[%s4214 + $0x3e8] sm:$0xff]
    %v4341 = vld [vmem:[%s4214 + $0x3f0] sm:$0xff]
    %v4342 = vld [vmem:[%s4214 + $0x3f8] sm:$0xff]
    %v4343 = vld [vmem:[%s4214 + $0x400] sm:$0xff]
    %v4344 = vld [vmem:[%s4214 + $0x408] sm:$0xff]
    %v4345 = vld [vmem:[%s4214 + $0x410] sm:$0xff]
    %v4346 = vld [vmem:[%s4214 + $0x418] sm:$0xff]
    %v4347 = vld [vmem:[%s4214 + $0x420] sm:$0xff]
    %v4348 = vld [vmem:[%s4214 + $0x428] sm:$0xff]
    %v4349 = vld [vmem:[%s4214 + $0x430] sm:$0xff]
    %v4350 = vld [vmem:[%s4214 + $0x438] sm:$0xff]
    %v4351 = vld [vmem:[%s4214 + $0x440] sm:$0xff]
    %v4352 = vld [vmem:[%s4214 + $0x448] sm:$0xff]
    %v4353 = vld [vmem:[%s4214 + $0x450] sm:$0xff]
    %v4354 = vld [vmem:[%s4214 + $0x458] sm:$0xff]
    %v4355 = vld [vmem:[%s4214 + $0x460] sm:$0xff]
    %v4356 = vld [vmem:[%s4214 + $0x468] sm:$0xff]
    %v4357 = vld [vmem:[%s4214 + $0x470] sm:$0xff]
    %v4358 = vld [vmem:[%s4214 + $0x478] sm:$0xff]
    %v4359 = vld [vmem:[%s4214 + $0x480] sm:$0xff]
    %v4360 = vld [vmem:[%s4214 + $0x488] sm:$0xff]
    %v4361 = vld [vmem:[%s4214 + $0x490] sm:$0xff]
    %v4362 = vld [vmem:[%s4214 + $0x498] sm:$0xff]
    %v4363 = vld [vmem:[%s4214 + $0x4a0] sm:$0xff]
    %v4364 = vld [vmem:[%s4214 + $0x4a8] sm:$0xff]
    %v4365 = vld [vmem:[%s4214 + $0x4b0] sm:$0xff]
    %v4366 = vld [vmem:[%s4214 + $0x4b8] sm:$0xff]
    %v4367 = vld [vmem:[%s4214 + $0x4c0] sm:$0xff]
    %v4368 = vld [vmem:[%s4214 + $0x4c8] sm:$0xff]
    %v4369 = vld [vmem:[%s4214 + $0x4d0] sm:$0xff]
    %v4370 = vld [vmem:[%s4214 + $0x4d8] sm:$0xff]
    %v4371 = vld [vmem:[%s4214 + $0x4e0] sm:$0xff]
    %v4372 = vld [vmem:[%s4214 + $0x4e8] sm:$0xff]
    %v4373 = vld [vmem:[%s4214 + $0x4f0] sm:$0xff]
    %v4374 = vld [vmem:[%s4214 + $0x4f8] sm:$0xff]
    %v4375 = vld [vmem:[%s4214 + $0x500] sm:$0xff]
    %v4376 = vld [vmem:[%s4214 + $0x508] sm:$0xff]
    %v4377 = vld [vmem:[%s4214 + $0x510] sm:$0xff]
    %v4378 = vld [vmem:[%s4214 + $0x518] sm:$0xff]
    %v4379 = vld [vmem:[%s4214 + $0x520] sm:$0xff]
    %v4380 = vld [vmem:[%s4214 + $0x528] sm:$0xff]
    %v4381 = vld [vmem:[%s4214 + $0x530] sm:$0xff]
    %v4382 = vld [vmem:[%s4214 + $0x538] sm:$0xff]
    %v4383 = vld [vmem:[%s4214 + $0x540] sm:$0xff]
    %v4384 = vld [vmem:[%s4214 + $0x548] sm:$0xff]
    %v4385 = vld [vmem:[%s4214 + $0x550] sm:$0xff]
    %v4386 = vld [vmem:[%s4214 + $0x558] sm:$0xff]
    %v4387 = vld [vmem:[%s4214 + $0x560] sm:$0xff]
    %v4388 = vld [vmem:[%s4214 + $0x568] sm:$0xff]
    %v4389 = vld [vmem:[%s4214 + $0x570] sm:$0xff]
    %v4390 = vld [vmem:[%s4214 + $0x578] sm:$0xff]
    %v4391 = vld [vmem:[%s4214 + $0x580] sm:$0xff]
    %v4392 = vld [vmem:[%s4214 + $0x588] sm:$0xff]
    %v4393 = vld [vmem:[%s4214 + $0x590] sm:$0xff]
    %v4394 = vld [vmem:[%s4214 + $0x598] sm:$0xff]
    %v4395 = vld [vmem:[%s4214 + $0x5a0] sm:$0xff]
    %v4396 = vld [vmem:[%s4214 + $0x5a8] sm:$0xff]
    %v4397 = vld [vmem:[%s4214 + $0x5b0] sm:$0xff]
    %v4398 = vld [vmem:[%s4214 + $0x5b8] sm:$0xff]
    %v4399 = vld [vmem:[%s4214 + $0x5c0] sm:$0xff]
    %v4400 = vld [vmem:[%s4214 + $0x5c8] sm:$0xff]
    %v4401 = vld [vmem:[%s4214 + $0x5d0] sm:$0xff]
    %v4402 = vld [vmem:[%s4214 + $0x5d8] sm:$0xff]
    %v4403 = vld [vmem:[%s4214 + $0x5e0] sm:$0xff]
    %v4404 = vld [vmem:[%s4214 + $0x5e8] sm:$0xff]
    %v4405 = vld [vmem:[%s4214 + $0x5f0] sm:$0xff]
    %v4406 = vld [vmem:[%s4214 + $0x5f8] sm:$0xff]
    %v4407 = vld [vmem:[%s4214 + $0x600] sm:$0xff]
    %v4408 = vld [vmem:[%s4214 + $0x608] sm:$0xff]
    %v4409 = vld [vmem:[%s4214 + $0x610] sm:$0xff]
    %v4410 = vld [vmem:[%s4214 + $0x618] sm:$0xff]
    %v4411 = vld [vmem:[%s4214 + $0x620] sm:$0xff]
    %v4412 = vld [vmem:[%s4214 + $0x628] sm:$0xff]
    %v4413 = vld [vmem:[%s4214 + $0x630] sm:$0xff]
    %v4414 = vld [vmem:[%s4214 + $0x638] sm:$0xff]
    %v4415 = vld [vmem:[%s4214 + $0x640] sm:$0xff]
    %v4416 = vld [vmem:[%s4214 + $0x648] sm:$0xff]
    %v4417 = vld [vmem:[%s4214 + $0x650] sm:$0xff]
    %v4418 = vld [vmem:[%s4214 + $0x658] sm:$0xff]
    %v4419 = vld [vmem:[%s4214 + $0x660] sm:$0xff]
    %v4420 = vld [vmem:[%s4214 + $0x668] sm:$0xff]
    %v4421 = vld [vmem:[%s4214 + $0x670] sm:$0xff]
    %v4422 = vld [vmem:[%s4214 + $0x678] sm:$0xff]
    %v4423 = vld [vmem:[%s4214 + $0x680] sm:$0xff]
    %v4424 = vld [vmem:[%s4214 + $0x688] sm:$0xff]
    %v4425 = vld [vmem:[%s4214 + $0x690] sm:$0xff]
    %v4426 = vld [vmem:[%s4214 + $0x698] sm:$0xff]
    %v4427 = vld [vmem:[%s4214 + $0x6a0] sm:$0xff]
    %v4428 = vld [vmem:[%s4214 + $0x6a8] sm:$0xff]
    %v4429 = vld [vmem:[%s4214 + $0x6b0] sm:$0xff]
    %v4430 = vld [vmem:[%s4214 + $0x6b8] sm:$0xff]
    %v4431 = vld [vmem:[%s4214 + $0x6c0] sm:$0xff]
    %v4432 = vld [vmem:[%s4214 + $0x6c8] sm:$0xff]
    %v4433 = vld [vmem:[%s4214 + $0x6d0] sm:$0xff]
    %v4434 = vld [vmem:[%s4214 + $0x6d8] sm:$0xff]
    %v4435 = vld [vmem:[%s4214 + $0x6e0] sm:$0xff]
    %v4436 = vld [vmem:[%s4214 + $0x6e8] sm:$0xff]
    %v4437 = vld [vmem:[%s4214 + $0x6f0] sm:$0xff]
    %v4438 = vld [vmem:[%s4214 + $0x6f8] sm:$0xff]
    %v4439 = vld [vmem:[%s4214 + $0x700] sm:$0xff]
    %v4440 = vld [vmem:[%s4214 + $0x708] sm:$0xff]
    %v4441 = vld [vmem:[%s4214 + $0x710] sm:$0xff]
    %v4442 = vld [vmem:[%s4214 + $0x718] sm:$0xff]
    %v4443 = vld [vmem:[%s4214 + $0x720] sm:$0xff]
    %v4444 = vld [vmem:[%s4214 + $0x728] sm:$0xff]
    %v4445 = vld [vmem:[%s4214 + $0x730] sm:$0xff]
    %v4446 = vld [vmem:[%s4214 + $0x738] sm:$0xff]
    %v4447 = vld [vmem:[%s4214 + $0x740] sm:$0xff]
    %v4448 = vld [vmem:[%s4214 + $0x748] sm:$0xff]
    %v4449 = vld [vmem:[%s4214 + $0x750] sm:$0xff]
    %v4450 = vld [vmem:[%s4214 + $0x758] sm:$0xff]
    %v4451 = vld [vmem:[%s4214 + $0x760] sm:$0xff]
    %v4452 = vld [vmem:[%s4214 + $0x768] sm:$0xff]
    %v4453 = vld [vmem:[%s4214 + $0x770] sm:$0xff]
    %v4454 = vld [vmem:[%s4214 + $0x778] sm:$0xff]
    %v4455 = vld [vmem:[%s4214 + $0x780] sm:$0xff]
    %v4456 = vld [vmem:[%s4214 + $0x788] sm:$0xff]
    %v4457 = vld [vmem:[%s4214 + $0x790] sm:$0xff]
    %v4458 = vld [vmem:[%s4214 + $0x798] sm:$0xff]
    %v4459 = vld [vmem:[%s4214 + $0x7a0] sm:$0xff]
    %v4460 = vld [vmem:[%s4214 + $0x7a8] sm:$0xff]
    %v4461 = vld [vmem:[%s4214 + $0x7b0] sm:$0xff]
    %v4462 = vld [vmem:[%s4214 + $0x7b8] sm:$0xff]
    %v4463 = vld [vmem:[%s4214 + $0x7c0] sm:$0xff]
    %v4464 = vld [vmem:[%s4214 + $0x7c8] sm:$0xff]
    %v4465 = vld [vmem:[%s4214 + $0x7d0] sm:$0xff]
    %v4466 = vld [vmem:[%s4214 + $0x7d8] sm:$0xff]
    %v4467 = vld [vmem:[%s4214 + $0x7e0] sm:$0xff]
    %v4468 = vld [vmem:[%s4214 + $0x7e8] sm:$0xff]
    %v4469 = vld [vmem:[%s4214 + $0x7f0] sm:$0xff]
    %v4470 = vld [vmem:[%s4214 + $0x7f8] sm:$0xff]
    %v4727 = vunpack.c.l.b16 %v4215
    %v4728 = vunpack.c.h.b16 %v4215
    %v4729 = vunpack.c.l.b16 %v4216
    %v4730 = vunpack.c.h.b16 %v4216
    %v4731 = vunpack.c.l.b16 %v4217
    %v4732 = vunpack.c.h.b16 %v4217
    %v4733 = vunpack.c.l.b16 %v4218
    %v4734 = vunpack.c.h.b16 %v4218
    %v4735 = vunpack.c.l.b16 %v4219
    %v4736 = vunpack.c.h.b16 %v4219
    %v4737 = vunpack.c.l.b16 %v4220
    %v4738 = vunpack.c.h.b16 %v4220
    %v4739 = vunpack.c.l.b16 %v4221
    %v4740 = vunpack.c.h.b16 %v4221
    %v4741 = vunpack.c.l.b16 %v4222
    %v4742 = vunpack.c.h.b16 %v4222
    %v4743 = vunpack.c.l.b16 %v4223
    %v4744 = vunpack.c.h.b16 %v4223
    %v4745 = vunpack.c.l.b16 %v4224
    %v4746 = vunpack.c.h.b16 %v4224
    %v4747 = vunpack.c.l.b16 %v4225
    %v4748 = vunpack.c.h.b16 %v4225
    %v4749 = vunpack.c.l.b16 %v4226
    %v4750 = vunpack.c.h.b16 %v4226
    %v4751 = vunpack.c.l.b16 %v4227
    %v4752 = vunpack.c.h.b16 %v4227
    %v4753 = vunpack.c.l.b16 %v4228
    %v4754 = vunpack.c.h.b16 %v4228
    %v4755 = vunpack.c.l.b16 %v4229
    %v4756 = vunpack.c.h.b16 %v4229
    %v4757 = vunpack.c.l.b16 %v4230
    %v4758 = vunpack.c.h.b16 %v4230
    %v4759 = vunpack.c.l.b16 %v4231
    %v4760 = vunpack.c.h.b16 %v4231
    %v4761 = vunpack.c.l.b16 %v4232
    %v4762 = vunpack.c.h.b16 %v4232
    %v4763 = vunpack.c.l.b16 %v4233
    %v4764 = vunpack.c.h.b16 %v4233
    %v4765 = vunpack.c.l.b16 %v4234
    %v4766 = vunpack.c.h.b16 %v4234
    %v4767 = vunpack.c.l.b16 %v4235
    %v4768 = vunpack.c.h.b16 %v4235
    %v4769 = vunpack.c.l.b16 %v4236
    %v4770 = vunpack.c.h.b16 %v4236
    %v4771 = vunpack.c.l.b16 %v4237
    %v4772 = vunpack.c.h.b16 %v4237
    %v4773 = vunpack.c.l.b16 %v4238
    %v4774 = vunpack.c.h.b16 %v4238
    %v4775 = vunpack.c.l.b16 %v4239
    %v4776 = vunpack.c.h.b16 %v4239
    %v4777 = vunpack.c.l.b16 %v4240
    %v4778 = vunpack.c.h.b16 %v4240
    %v4779 = vunpack.c.l.b16 %v4241
    %v4780 = vunpack.c.h.b16 %v4241
    %v4781 = vunpack.c.l.b16 %v4242
    %v4782 = vunpack.c.h.b16 %v4242
    %v4783 = vunpack.c.l.b16 %v4243
    %v4784 = vunpack.c.h.b16 %v4243
    %v4785 = vunpack.c.l.b16 %v4244
    %v4786 = vunpack.c.h.b16 %v4244
    %v4787 = vunpack.c.l.b16 %v4245
    %v4788 = vunpack.c.h.b16 %v4245
    %v4789 = vunpack.c.l.b16 %v4246
    %v4790 = vunpack.c.h.b16 %v4246
    %v4791 = vunpack.c.l.b16 %v4247
    %v4792 = vunpack.c.h.b16 %v4247
    %v4793 = vunpack.c.l.b16 %v4248
    %v4794 = vunpack.c.h.b16 %v4248
    %v4795 = vunpack.c.l.b16 %v4249
    %v4796 = vunpack.c.h.b16 %v4249
    %v4797 = vunpack.c.l.b16 %v4250
    %v4798 = vunpack.c.h.b16 %v4250
    %v4799 = vunpack.c.l.b16 %v4251
    %v4800 = vunpack.c.h.b16 %v4251
    %v4801 = vunpack.c.l.b16 %v4252
    %v4802 = vunpack.c.h.b16 %v4252
    %v4803 = vunpack.c.l.b16 %v4253
    %v4804 = vunpack.c.h.b16 %v4253
    %v4805 = vunpack.c.l.b16 %v4254
    %v4806 = vunpack.c.h.b16 %v4254
    %v4807 = vunpack.c.l.b16 %v4255
    %v4808 = vunpack.c.h.b16 %v4255
    %v4809 = vunpack.c.l.b16 %v4256
    %v4810 = vunpack.c.h.b16 %v4256
    %v4811 = vunpack.c.l.b16 %v4257
    %v4812 = vunpack.c.h.b16 %v4257
    %v4813 = vunpack.c.l.b16 %v4258
    %v4814 = vunpack.c.h.b16 %v4258
    %v4815 = vunpack.c.l.b16 %v4259
    %v4816 = vunpack.c.h.b16 %v4259
    %v4817 = vunpack.c.l.b16 %v4260
    %v4818 = vunpack.c.h.b16 %v4260
    %v4819 = vunpack.c.l.b16 %v4261
    %v4820 = vunpack.c.h.b16 %v4261
    %v4821 = vunpack.c.l.b16 %v4262
    %v4822 = vunpack.c.h.b16 %v4262
    %v4823 = vunpack.c.l.b16 %v4263
    %v4824 = vunpack.c.h.b16 %v4263
    %v4825 = vunpack.c.l.b16 %v4264
    %v4826 = vunpack.c.h.b16 %v4264
    %v4827 = vunpack.c.l.b16 %v4265
    %v4828 = vunpack.c.h.b16 %v4265
    %v4829 = vunpack.c.l.b16 %v4266
    %v4830 = vunpack.c.h.b16 %v4266
    %v4831 = vunpack.c.l.b16 %v4267
    %v4832 = vunpack.c.h.b16 %v4267
    %v4833 = vunpack.c.l.b16 %v4268
    %v4834 = vunpack.c.h.b16 %v4268
    %v4835 = vunpack.c.l.b16 %v4269
    %v4836 = vunpack.c.h.b16 %v4269
    %v4837 = vunpack.c.l.b16 %v4270
    %v4838 = vunpack.c.h.b16 %v4270
    %v4839 = vunpack.c.l.b16 %v4271
    %v4840 = vunpack.c.h.b16 %v4271
    %v4841 = vunpack.c.l.b16 %v4272
    %v4842 = vunpack.c.h.b16 %v4272
    %v4843 = vunpack.c.l.b16 %v4273
    %v4844 = vunpack.c.h.b16 %v4273
    %v4845 = vunpack.c.l.b16 %v4274
    %v4846 = vunpack.c.h.b16 %v4274
    %v4847 = vunpack.c.l.b16 %v4275
    %v4848 = vunpack.c.h.b16 %v4275
    %v4849 = vunpack.c.l.b16 %v4276
    %v4850 = vunpack.c.h.b16 %v4276
    %v4851 = vunpack.c.l.b16 %v4277
    %v4852 = vunpack.c.h.b16 %v4277
    %v4853 = vunpack.c.l.b16 %v4278
    %v4854 = vunpack.c.h.b16 %v4278
    %v4855 = vunpack.c.l.b16 %v4279
    %v4856 = vunpack.c.h.b16 %v4279
    %v4857 = vunpack.c.l.b16 %v4280
    %v4858 = vunpack.c.h.b16 %v4280
    %v4859 = vunpack.c.l.b16 %v4281
    %v4860 = vunpack.c.h.b16 %v4281
    %v4861 = vunpack.c.l.b16 %v4282
    %v4862 = vunpack.c.h.b16 %v4282
    %v4863 = vunpack.c.l.b16 %v4283
    %v4864 = vunpack.c.h.b16 %v4283
    %v4865 = vunpack.c.l.b16 %v4284
    %v4866 = vunpack.c.h.b16 %v4284
    %v4867 = vunpack.c.l.b16 %v4285
    %v4868 = vunpack.c.h.b16 %v4285
    %v4869 = vunpack.c.l.b16 %v4286
    %v4870 = vunpack.c.h.b16 %v4286
    %v4871 = vunpack.c.l.b16 %v4287
    %v4872 = vunpack.c.h.b16 %v4287
    %v4873 = vunpack.c.l.b16 %v4288
    %v4874 = vunpack.c.h.b16 %v4288
    %v4875 = vunpack.c.l.b16 %v4289
    %v4876 = vunpack.c.h.b16 %v4289
    %v4877 = vunpack.c.l.b16 %v4290
    %v4878 = vunpack.c.h.b16 %v4290
    %v4879 = vunpack.c.l.b16 %v4291
    %v4880 = vunpack.c.h.b16 %v4291
    %v4881 = vunpack.c.l.b16 %v4292
    %v4882 = vunpack.c.h.b16 %v4292
    %v4883 = vunpack.c.l.b16 %v4293
    %v4884 = vunpack.c.h.b16 %v4293
    %v4885 = vunpack.c.l.b16 %v4294
    %v4886 = vunpack.c.h.b16 %v4294
    %v4887 = vunpack.c.l.b16 %v4295
    %v4888 = vunpack.c.h.b16 %v4295
    %v4889 = vunpack.c.l.b16 %v4296
    %v4890 = vunpack.c.h.b16 %v4296
    %v4891 = vunpack.c.l.b16 %v4297
    %v4892 = vunpack.c.h.b16 %v4297
    %v4893 = vunpack.c.l.b16 %v4298
    %v4894 = vunpack.c.h.b16 %v4298
    %v4895 = vunpack.c.l.b16 %v4299
    %v4896 = vunpack.c.h.b16 %v4299
    %v4897 = vunpack.c.l.b16 %v4300
    %v4898 = vunpack.c.h.b16 %v4300
    %v4899 = vunpack.c.l.b16 %v4301
    %v4900 = vunpack.c.h.b16 %v4301
    %v4901 = vunpack.c.l.b16 %v4302
    %v4902 = vunpack.c.h.b16 %v4302
    %v4903 = vunpack.c.l.b16 %v4303
    %v4904 = vunpack.c.h.b16 %v4303
    %v4905 = vunpack.c.l.b16 %v4304
    %v4906 = vunpack.c.h.b16 %v4304
    %v4907 = vunpack.c.l.b16 %v4305
    %v4908 = vunpack.c.h.b16 %v4305
    %v4909 = vunpack.c.l.b16 %v4306
    %v4910 = vunpack.c.h.b16 %v4306
    %v4911 = vunpack.c.l.b16 %v4307
    %v4912 = vunpack.c.h.b16 %v4307
    %v4913 = vunpack.c.l.b16 %v4308
    %v4914 = vunpack.c.h.b16 %v4308
    %v4915 = vunpack.c.l.b16 %v4309
    %v4916 = vunpack.c.h.b16 %v4309
    %v4917 = vunpack.c.l.b16 %v4310
    %v4918 = vunpack.c.h.b16 %v4310
    %v4919 = vunpack.c.l.b16 %v4311
    %v4920 = vunpack.c.h.b16 %v4311
    %v4921 = vunpack.c.l.b16 %v4312
    %v4922 = vunpack.c.h.b16 %v4312
    %v4923 = vunpack.c.l.b16 %v4313
    %v4924 = vunpack.c.h.b16 %v4313
    %v4925 = vunpack.c.l.b16 %v4314
    %v4926 = vunpack.c.h.b16 %v4314
    %v4927 = vunpack.c.l.b16 %v4315
    %v4928 = vunpack.c.h.b16 %v4315
    %v4929 = vunpack.c.l.b16 %v4316
    %v4930 = vunpack.c.h.b16 %v4316
    %v4931 = vunpack.c.l.b16 %v4317
    %v4932 = vunpack.c.h.b16 %v4317
    %v4933 = vunpack.c.l.b16 %v4318
    %v4934 = vunpack.c.h.b16 %v4318
    %v4935 = vunpack.c.l.b16 %v4319
    %v4936 = vunpack.c.h.b16 %v4319
    %v4937 = vunpack.c.l.b16 %v4320
    %v4938 = vunpack.c.h.b16 %v4320
    %v4939 = vunpack.c.l.b16 %v4321
    %v4940 = vunpack.c.h.b16 %v4321
    %v4941 = vunpack.c.l.b16 %v4322
    %v4942 = vunpack.c.h.b16 %v4322
    %v4943 = vunpack.c.l.b16 %v4323
    %v4944 = vunpack.c.h.b16 %v4323
    %v4945 = vunpack.c.l.b16 %v4324
    %v4946 = vunpack.c.h.b16 %v4324
    %v4947 = vunpack.c.l.b16 %v4325
    %v4948 = vunpack.c.h.b16 %v4325
    %v4949 = vunpack.c.l.b16 %v4326
    %v4950 = vunpack.c.h.b16 %v4326
    %v4951 = vunpack.c.l.b16 %v4327
    %v4952 = vunpack.c.h.b16 %v4327
    %v4953 = vunpack.c.l.b16 %v4328
    %v4954 = vunpack.c.h.b16 %v4328
    %v4955 = vunpack.c.l.b16 %v4329
    %v4956 = vunpack.c.h.b16 %v4329
    %v4957 = vunpack.c.l.b16 %v4330
    %v4958 = vunpack.c.h.b16 %v4330
    %v4959 = vunpack.c.l.b16 %v4331
    %v4960 = vunpack.c.h.b16 %v4331
    %v4961 = vunpack.c.l.b16 %v4332
    %v4962 = vunpack.c.h.b16 %v4332
    %v4963 = vunpack.c.l.b16 %v4333
    %v4964 = vunpack.c.h.b16 %v4333
    %v4965 = vunpack.c.l.b16 %v4334
    %v4966 = vunpack.c.h.b16 %v4334
    %v4967 = vunpack.c.l.b16 %v4335
    %v4968 = vunpack.c.h.b16 %v4335
    %v4969 = vunpack.c.l.b16 %v4336
    %v4970 = vunpack.c.h.b16 %v4336
    %v4971 = vunpack.c.l.b16 %v4337
    %v4972 = vunpack.c.h.b16 %v4337
    %v4973 = vunpack.c.l.b16 %v4338
    %v4974 = vunpack.c.h.b16 %v4338
    %v4975 = vunpack.c.l.b16 %v4339
    %v4976 = vunpack.c.h.b16 %v4339
    %v4977 = vunpack.c.l.b16 %v4340
    %v4978 = vunpack.c.h.b16 %v4340
    %v4979 = vunpack.c.l.b16 %v4341
    %v4980 = vunpack.c.h.b16 %v4341
    %v4981 = vunpack.c.l.b16 %v4342
    %v4982 = vunpack.c.h.b16 %v4342
    %v4983 = vunpack.c.l.b16 %v4343
    %v4984 = vunpack.c.h.b16 %v4343
    %v4985 = vunpack.c.l.b16 %v4344
    %v4986 = vunpack.c.h.b16 %v4344
    %v4987 = vunpack.c.l.b16 %v4345
    %v4988 = vunpack.c.h.b16 %v4345
    %v4989 = vunpack.c.l.b16 %v4346
    %v4990 = vunpack.c.h.b16 %v4346
    %v4991 = vunpack.c.l.b16 %v4347
    %v4992 = vunpack.c.h.b16 %v4347
    %v4993 = vunpack.c.l.b16 %v4348
    %v4994 = vunpack.c.h.b16 %v4348
    %v4995 = vunpack.c.l.b16 %v4349
    %v4996 = vunpack.c.h.b16 %v4349
    %v4997 = vunpack.c.l.b16 %v4350
    %v4998 = vunpack.c.h.b16 %v4350
    %v4999 = vunpack.c.l.b16 %v4351
    %v5000 = vunpack.c.h.b16 %v4351
    %v5001 = vunpack.c.l.b16 %v4352
    %v5002 = vunpack.c.h.b16 %v4352
    %v5003 = vunpack.c.l.b16 %v4353
    %v5004 = vunpack.c.h.b16 %v4353
    %v5005 = vunpack.c.l.b16 %v4354
    %v5006 = vunpack.c.h.b16 %v4354
    %v5007 = vunpack.c.l.b16 %v4355
    %v5008 = vunpack.c.h.b16 %v4355
    %v5009 = vunpack.c.l.b16 %v4356
    %v5010 = vunpack.c.h.b16 %v4356
    %v5011 = vunpack.c.l.b16 %v4357
    %v5012 = vunpack.c.h.b16 %v4357
    %v5013 = vunpack.c.l.b16 %v4358
    %v5014 = vunpack.c.h.b16 %v4358
    %v5015 = vunpack.c.l.b16 %v4359
    %v5016 = vunpack.c.h.b16 %v4359
    %v5017 = vunpack.c.l.b16 %v4360
    %v5018 = vunpack.c.h.b16 %v4360
    %v5019 = vunpack.c.l.b16 %v4361
    %v5020 = vunpack.c.h.b16 %v4361
    %v5021 = vunpack.c.l.b16 %v4362
    %v5022 = vunpack.c.h.b16 %v4362
    %v5023 = vunpack.c.l.b16 %v4363
    %v5024 = vunpack.c.h.b16 %v4363
    %v5025 = vunpack.c.l.b16 %v4364
    %v5026 = vunpack.c.h.b16 %v4364
    %v5027 = vunpack.c.l.b16 %v4365
    %v5028 = vunpack.c.h.b16 %v4365
    %v5029 = vunpack.c.l.b16 %v4366
    %v5030 = vunpack.c.h.b16 %v4366
    %v5031 = vunpack.c.l.b16 %v4367
    %v5032 = vunpack.c.h.b16 %v4367
    %v5033 = vunpack.c.l.b16 %v4368
    %v5034 = vunpack.c.h.b16 %v4368
    %v5035 = vunpack.c.l.b16 %v4369
    %v5036 = vunpack.c.h.b16 %v4369
    %v5037 = vunpack.c.l.b16 %v4370
    %v5038 = vunpack.c.h.b16 %v4370
    %v5039 = vunpack.c.l.b16 %v4371
    %v5040 = vunpack.c.h.b16 %v4371
    %v5041 = vunpack.c.l.b16 %v4372
    %v5042 = vunpack.c.h.b16 %v4372
    %v5043 = vunpack.c.l.b16 %v4373
    %v5044 = vunpack.c.h.b16 %v4373
    %v5045 = vunpack.c.l.b16 %v4374
    %v5046 = vunpack.c.h.b16 %v4374
    %v5047 = vunpack.c.l.b16 %v4375
    %v5048 = vunpack.c.h.b16 %v4375
    %v5049 = vunpack.c.l.b16 %v4376
    %v5050 = vunpack.c.h.b16 %v4376
    %v5051 = vunpack.c.l.b16 %v4377
    %v5052 = vunpack.c.h.b16 %v4377
    %v5053 = vunpack.c.l.b16 %v4378
    %v5054 = vunpack.c.h.b16 %v4378
    %v5055 = vunpack.c.l.b16 %v4379
    %v5056 = vunpack.c.h.b16 %v4379
    %v5057 = vunpack.c.l.b16 %v4380
    %v5058 = vunpack.c.h.b16 %v4380
    %v5059 = vunpack.c.l.b16 %v4381
    %v5060 = vunpack.c.h.b16 %v4381
    %v5061 = vunpack.c.l.b16 %v4382
    %v5062 = vunpack.c.h.b16 %v4382
    %v5063 = vunpack.c.l.b16 %v4383
    %v5064 = vunpack.c.h.b16 %v4383
    %v5065 = vunpack.c.l.b16 %v4384
    %v5066 = vunpack.c.h.b16 %v4384
    %v5067 = vunpack.c.l.b16 %v4385
    %v5068 = vunpack.c.h.b16 %v4385
    %v5069 = vunpack.c.l.b16 %v4386
    %v5070 = vunpack.c.h.b16 %v4386
    %v5071 = vunpack.c.l.b16 %v4387
    %v5072 = vunpack.c.h.b16 %v4387
    %v5073 = vunpack.c.l.b16 %v4388
    %v5074 = vunpack.c.h.b16 %v4388
    %v5075 = vunpack.c.l.b16 %v4389
    %v5076 = vunpack.c.h.b16 %v4389
    %v5077 = vunpack.c.l.b16 %v4390
    %v5078 = vunpack.c.h.b16 %v4390
    %v5079 = vunpack.c.l.b16 %v4391
    %v5080 = vunpack.c.h.b16 %v4391
    %v5081 = vunpack.c.l.b16 %v4392
    %v5082 = vunpack.c.h.b16 %v4392
    %v5083 = vunpack.c.l.b16 %v4393
    %v5084 = vunpack.c.h.b16 %v4393
    %v5085 = vunpack.c.l.b16 %v4394
    %v5086 = vunpack.c.h.b16 %v4394
    %v5087 = vunpack.c.l.b16 %v4395
    %v5088 = vunpack.c.h.b16 %v4395
    %v5089 = vunpack.c.l.b16 %v4396
    %v5090 = vunpack.c.h.b16 %v4396
    %v5091 = vunpack.c.l.b16 %v4397
    %v5092 = vunpack.c.h.b16 %v4397
    %v5093 = vunpack.c.l.b16 %v4398
    %v5094 = vunpack.c.h.b16 %v4398
    %v5095 = vunpack.c.l.b16 %v4399
    %v5096 = vunpack.c.h.b16 %v4399
    %v5097 = vunpack.c.l.b16 %v4400
    %v5098 = vunpack.c.h.b16 %v4400
    %v5099 = vunpack.c.l.b16 %v4401
    %v5100 = vunpack.c.h.b16 %v4401
    %v5101 = vunpack.c.l.b16 %v4402
    %v5102 = vunpack.c.h.b16 %v4402
    %v5103 = vunpack.c.l.b16 %v4403
    %v5104 = vunpack.c.h.b16 %v4403
    %v5105 = vunpack.c.l.b16 %v4404
    %v5106 = vunpack.c.h.b16 %v4404
    %v5107 = vunpack.c.l.b16 %v4405
    %v5108 = vunpack.c.h.b16 %v4405
    %v5109 = vunpack.c.l.b16 %v4406
    %v5110 = vunpack.c.h.b16 %v4406
    %v5111 = vunpack.c.l.b16 %v4407
    %v5112 = vunpack.c.h.b16 %v4407
    %v5113 = vunpack.c.l.b16 %v4408
    %v5114 = vunpack.c.h.b16 %v4408
    %v5115 = vunpack.c.l.b16 %v4409
    %v5116 = vunpack.c.h.b16 %v4409
    %v5117 = vunpack.c.l.b16 %v4410
    %v5118 = vunpack.c.h.b16 %v4410
    %v5119 = vunpack.c.l.b16 %v4411
    %v5120 = vunpack.c.h.b16 %v4411
    %v5121 = vunpack.c.l.b16 %v4412
    %v5122 = vunpack.c.h.b16 %v4412
    %v5123 = vunpack.c.l.b16 %v4413
    %v5124 = vunpack.c.h.b16 %v4413
    %v5125 = vunpack.c.l.b16 %v4414
    %v5126 = vunpack.c.h.b16 %v4414
    %v5127 = vunpack.c.l.b16 %v4415
    %v5128 = vunpack.c.h.b16 %v4415
    %v5129 = vunpack.c.l.b16 %v4416
    %v5130 = vunpack.c.h.b16 %v4416
    %v5131 = vunpack.c.l.b16 %v4417
    %v5132 = vunpack.c.h.b16 %v4417
    %v5133 = vunpack.c.l.b16 %v4418
    %v5134 = vunpack.c.h.b16 %v4418
    %v5135 = vunpack.c.l.b16 %v4419
    %v5136 = vunpack.c.h.b16 %v4419
    %v5137 = vunpack.c.l.b16 %v4420
    %v5138 = vunpack.c.h.b16 %v4420
    %v5139 = vunpack.c.l.b16 %v4421
    %v5140 = vunpack.c.h.b16 %v4421
    %v5141 = vunpack.c.l.b16 %v4422
    %v5142 = vunpack.c.h.b16 %v4422
    %v5143 = vunpack.c.l.b16 %v4423
    %v5144 = vunpack.c.h.b16 %v4423
    %v5145 = vunpack.c.l.b16 %v4424
    %v5146 = vunpack.c.h.b16 %v4424
    %v5147 = vunpack.c.l.b16 %v4425
    %v5148 = vunpack.c.h.b16 %v4425
    %v5149 = vunpack.c.l.b16 %v4426
    %v5150 = vunpack.c.h.b16 %v4426
    %v5151 = vunpack.c.l.b16 %v4427
    %v5152 = vunpack.c.h.b16 %v4427
    %v5153 = vunpack.c.l.b16 %v4428
    %v5154 = vunpack.c.h.b16 %v4428
    %v5155 = vunpack.c.l.b16 %v4429
    %v5156 = vunpack.c.h.b16 %v4429
    %v5157 = vunpack.c.l.b16 %v4430
    %v5158 = vunpack.c.h.b16 %v4430
    %v5159 = vunpack.c.l.b16 %v4431
    %v5160 = vunpack.c.h.b16 %v4431
    %v5161 = vunpack.c.l.b16 %v4432
    %v5162 = vunpack.c.h.b16 %v4432
    %v5163 = vunpack.c.l.b16 %v4433
    %v5164 = vunpack.c.h.b16 %v4433
    %v5165 = vunpack.c.l.b16 %v4434
    %v5166 = vunpack.c.h.b16 %v4434
    %v5167 = vunpack.c.l.b16 %v4435
    %v5168 = vunpack.c.h.b16 %v4435
    %v5169 = vunpack.c.l.b16 %v4436
    %v5170 = vunpack.c.h.b16 %v4436
    %v5171 = vunpack.c.l.b16 %v4437
    %v5172 = vunpack.c.h.b16 %v4437
    %v5173 = vunpack.c.l.b16 %v4438
    %v5174 = vunpack.c.h.b16 %v4438
    %v5175 = vunpack.c.l.b16 %v4439
    %v5176 = vunpack.c.h.b16 %v4439
    %v5177 = vunpack.c.l.b16 %v4440
    %v5178 = vunpack.c.h.b16 %v4440
    %v5179 = vunpack.c.l.b16 %v4441
    %v5180 = vunpack.c.h.b16 %v4441
    %v5181 = vunpack.c.l.b16 %v4442
    %v5182 = vunpack.c.h.b16 %v4442
    %v5183 = vunpack.c.l.b16 %v4443
    %v5184 = vunpack.c.h.b16 %v4443
    %v5185 = vunpack.c.l.b16 %v4444
    %v5186 = vunpack.c.h.b16 %v4444
    %v5187 = vunpack.c.l.b16 %v4445
    %v5188 = vunpack.c.h.b16 %v4445
    %v5189 = vunpack.c.l.b16 %v4446
    %v5190 = vunpack.c.h.b16 %v4446
    %v5191 = vunpack.c.l.b16 %v4447
    %v5192 = vunpack.c.h.b16 %v4447
    %v5193 = vunpack.c.l.b16 %v4448
    %v5194 = vunpack.c.h.b16 %v4448
    %v5195 = vunpack.c.l.b16 %v4449
    %v5196 = vunpack.c.h.b16 %v4449
    %v5197 = vunpack.c.l.b16 %v4450
    %v5198 = vunpack.c.h.b16 %v4450
    %v5199 = vunpack.c.l.b16 %v4451
    %v5200 = vunpack.c.h.b16 %v4451
    %v5201 = vunpack.c.l.b16 %v4452
    %v5202 = vunpack.c.h.b16 %v4452
    %v5203 = vunpack.c.l.b16 %v4453
    %v5204 = vunpack.c.h.b16 %v4453
    %v5205 = vunpack.c.l.b16 %v4454
    %v5206 = vunpack.c.h.b16 %v4454
    %v5207 = vunpack.c.l.b16 %v4455
    %v5208 = vunpack.c.h.b16 %v4455
    %v5209 = vunpack.c.l.b16 %v4456
    %v5210 = vunpack.c.h.b16 %v4456
    %v5211 = vunpack.c.l.b16 %v4457
    %v5212 = vunpack.c.h.b16 %v4457
    %v5213 = vunpack.c.l.b16 %v4458
    %v5214 = vunpack.c.h.b16 %v4458
    %v5215 = vunpack.c.l.b16 %v4459
    %v5216 = vunpack.c.h.b16 %v4459
    %v5217 = vunpack.c.l.b16 %v4460
    %v5218 = vunpack.c.h.b16 %v4460
    %v5219 = vunpack.c.l.b16 %v4461
    %v5220 = vunpack.c.h.b16 %v4461
    %v5221 = vunpack.c.l.b16 %v4462
    %v5222 = vunpack.c.h.b16 %v4462
    %v5223 = vunpack.c.l.b16 %v4463
    %v5224 = vunpack.c.h.b16 %v4463
    %v5225 = vunpack.c.l.b16 %v4464
    %v5226 = vunpack.c.h.b16 %v4464
    %v5227 = vunpack.c.l.b16 %v4465
    %v5228 = vunpack.c.h.b16 %v4465
    %v5229 = vunpack.c.l.b16 %v4466
    %v5230 = vunpack.c.h.b16 %v4466
    %v5231 = vunpack.c.l.b16 %v4467
    %v5232 = vunpack.c.h.b16 %v4467
    %v5233 = vunpack.c.l.b16 %v4468
    %v5234 = vunpack.c.h.b16 %v4468
    %v5235 = vunpack.c.l.b16 %v4469
    %v5236 = vunpack.c.h.b16 %v4469
    %v5237 = vunpack.c.l.b16 %v4470
    %v5238 = vunpack.c.h.b16 %v4470
    %v5239 = vpack.c.b16 %v4731, %v4727
    %v5240 = vpack.c.b16 %v4732, %v4728
    %v5241 = vpack.c.b16 %v4733, %v4729
    %v5242 = vpack.c.b16 %v4734, %v4730
    %v5243 = vpack.c.b16 %v4739, %v4735
    %v5244 = vpack.c.b16 %v4740, %v4736
    %v5245 = vpack.c.b16 %v4741, %v4737
    %v5246 = vpack.c.b16 %v4742, %v4738
    %v5247 = vpack.c.b16 %v4747, %v4743
    %v5248 = vpack.c.b16 %v4748, %v4744
    %v5249 = vpack.c.b16 %v4749, %v4745
    %v5250 = vpack.c.b16 %v4750, %v4746
    %v5251 = vpack.c.b16 %v4755, %v4751
    %v5252 = vpack.c.b16 %v4756, %v4752
    %v5253 = vpack.c.b16 %v4757, %v4753
    %v5254 = vpack.c.b16 %v4758, %v4754
    %v5255 = vpack.c.b16 %v4763, %v4759
    %v5256 = vpack.c.b16 %v4764, %v4760
    %v5257 = vpack.c.b16 %v4765, %v4761
    %v5258 = vpack.c.b16 %v4766, %v4762
    %v5259 = vpack.c.b16 %v4771, %v4767
    %v5260 = vpack.c.b16 %v4772, %v4768
    %v5261 = vpack.c.b16 %v4773, %v4769
    %v5262 = vpack.c.b16 %v4774, %v4770
    %v5263 = vpack.c.b16 %v4779, %v4775
    %v5264 = vpack.c.b16 %v4780, %v4776
    %v5265 = vpack.c.b16 %v4781, %v4777
    %v5266 = vpack.c.b16 %v4782, %v4778
    %v5267 = vpack.c.b16 %v4787, %v4783
    %v5268 = vpack.c.b16 %v4788, %v4784
    %v5269 = vpack.c.b16 %v4789, %v4785
    %v5270 = vpack.c.b16 %v4790, %v4786
    %v5271 = vpack.c.b16 %v4795, %v4791
    %v5272 = vpack.c.b16 %v4796, %v4792
    %v5273 = vpack.c.b16 %v4797, %v4793
    %v5274 = vpack.c.b16 %v4798, %v4794
    %v5275 = vpack.c.b16 %v4803, %v4799
    %v5276 = vpack.c.b16 %v4804, %v4800
    %v5277 = vpack.c.b16 %v4805, %v4801
    %v5278 = vpack.c.b16 %v4806, %v4802
    %v5279 = vpack.c.b16 %v4811, %v4807
    %v5280 = vpack.c.b16 %v4812, %v4808
    %v5281 = vpack.c.b16 %v4813, %v4809
    %v5282 = vpack.c.b16 %v4814, %v4810
    %v5283 = vpack.c.b16 %v4819, %v4815
    %v5284 = vpack.c.b16 %v4820, %v4816
    %v5285 = vpack.c.b16 %v4821, %v4817
    %v5286 = vpack.c.b16 %v4822, %v4818
    %v5287 = vpack.c.b16 %v4827, %v4823
    %v5288 = vpack.c.b16 %v4828, %v4824
    %v5289 = vpack.c.b16 %v4829, %v4825
    %v5290 = vpack.c.b16 %v4830, %v4826
    %v5291 = vpack.c.b16 %v4835, %v4831
    %v5292 = vpack.c.b16 %v4836, %v4832
    %v5293 = vpack.c.b16 %v4837, %v4833
    %v5294 = vpack.c.b16 %v4838, %v4834
    %v5295 = vpack.c.b16 %v4843, %v4839
    %v5296 = vpack.c.b16 %v4844, %v4840
    %v5297 = vpack.c.b16 %v4845, %v4841
    %v5298 = vpack.c.b16 %v4846, %v4842
    %v5299 = vpack.c.b16 %v4851, %v4847
    %v5300 = vpack.c.b16 %v4852, %v4848
    %v5301 = vpack.c.b16 %v4853, %v4849
    %v5302 = vpack.c.b16 %v4854, %v4850
    %v5303 = vpack.c.b16 %v4859, %v4855
    %v5304 = vpack.c.b16 %v4860, %v4856
    %v5305 = vpack.c.b16 %v4861, %v4857
    %v5306 = vpack.c.b16 %v4862, %v4858
    %v5307 = vpack.c.b16 %v4867, %v4863
    %v5308 = vpack.c.b16 %v4868, %v4864
    %v5309 = vpack.c.b16 %v4869, %v4865
    %v5310 = vpack.c.b16 %v4870, %v4866
    %v5311 = vpack.c.b16 %v4875, %v4871
    %v5312 = vpack.c.b16 %v4876, %v4872
    %v5313 = vpack.c.b16 %v4877, %v4873
    %v5314 = vpack.c.b16 %v4878, %v4874
    %v5315 = vpack.c.b16 %v4883, %v4879
    %v5316 = vpack.c.b16 %v4884, %v4880
    %v5317 = vpack.c.b16 %v4885, %v4881
    %v5318 = vpack.c.b16 %v4886, %v4882
    %v5319 = vpack.c.b16 %v4891, %v4887
    %v5320 = vpack.c.b16 %v4892, %v4888
    %v5321 = vpack.c.b16 %v4893, %v4889
    %v5322 = vpack.c.b16 %v4894, %v4890
    %v5323 = vpack.c.b16 %v4899, %v4895
    %v5324 = vpack.c.b16 %v4900, %v4896
    %v5325 = vpack.c.b16 %v4901, %v4897
    %v5326 = vpack.c.b16 %v4902, %v4898
    %v5327 = vpack.c.b16 %v4907, %v4903
    %v5328 = vpack.c.b16 %v4908, %v4904
    %v5329 = vpack.c.b16 %v4909, %v4905
    %v5330 = vpack.c.b16 %v4910, %v4906
    %v5331 = vpack.c.b16 %v4915, %v4911
    %v5332 = vpack.c.b16 %v4916, %v4912
    %v5333 = vpack.c.b16 %v4917, %v4913
    %v5334 = vpack.c.b16 %v4918, %v4914
    %v5335 = vpack.c.b16 %v4923, %v4919
    %v5336 = vpack.c.b16 %v4924, %v4920
    %v5337 = vpack.c.b16 %v4925, %v4921
    %v5338 = vpack.c.b16 %v4926, %v4922
    %v5339 = vpack.c.b16 %v4931, %v4927
    %v5340 = vpack.c.b16 %v4932, %v4928
    %v5341 = vpack.c.b16 %v4933, %v4929
    %v5342 = vpack.c.b16 %v4934, %v4930
    %v5343 = vpack.c.b16 %v4939, %v4935
    %v5344 = vpack.c.b16 %v4940, %v4936
    %v5345 = vpack.c.b16 %v4941, %v4937
    %v5346 = vpack.c.b16 %v4942, %v4938
    %v5347 = vpack.c.b16 %v4947, %v4943
    %v5348 = vpack.c.b16 %v4948, %v4944
    %v5349 = vpack.c.b16 %v4949, %v4945
    %v5350 = vpack.c.b16 %v4950, %v4946
    %v5351 = vpack.c.b16 %v4955, %v4951
    %v5352 = vpack.c.b16 %v4956, %v4952
    %v5353 = vpack.c.b16 %v4957, %v4953
    %v5354 = vpack.c.b16 %v4958, %v4954
    %v5355 = vpack.c.b16 %v4963, %v4959
    %v5356 = vpack.c.b16 %v4964, %v4960
    %v5357 = vpack.c.b16 %v4965, %v4961
    %v5358 = vpack.c.b16 %v4966, %v4962
    %v5359 = vpack.c.b16 %v4971, %v4967
    %v5360 = vpack.c.b16 %v4972, %v4968
    %v5361 = vpack.c.b16 %v4973, %v4969
    %v5362 = vpack.c.b16 %v4974, %v4970
    %v5363 = vpack.c.b16 %v4979, %v4975
    %v5364 = vpack.c.b16 %v4980, %v4976
    %v5365 = vpack.c.b16 %v4981, %v4977
    %v5366 = vpack.c.b16 %v4982, %v4978
    %v5367 = vpack.c.b16 %v4987, %v4983
    %v5368 = vpack.c.b16 %v4988, %v4984
    %v5369 = vpack.c.b16 %v4989, %v4985
    %v5370 = vpack.c.b16 %v4990, %v4986
    %v5371 = vpack.c.b16 %v4995, %v4991
    %v5372 = vpack.c.b16 %v4996, %v4992
    %v5373 = vpack.c.b16 %v4997, %v4993
    %v5374 = vpack.c.b16 %v4998, %v4994
    %v5375 = vpack.c.b16 %v5003, %v4999
    %v5376 = vpack.c.b16 %v5004, %v5000
    %v5377 = vpack.c.b16 %v5005, %v5001
    %v5378 = vpack.c.b16 %v5006, %v5002
    %v5379 = vpack.c.b16 %v5011, %v5007
    %v5380 = vpack.c.b16 %v5012, %v5008
    %v5381 = vpack.c.b16 %v5013, %v5009
    %v5382 = vpack.c.b16 %v5014, %v5010
    %v5383 = vpack.c.b16 %v5019, %v5015
    %v5384 = vpack.c.b16 %v5020, %v5016
    %v5385 = vpack.c.b16 %v5021, %v5017
    %v5386 = vpack.c.b16 %v5022, %v5018
    %v5387 = vpack.c.b16 %v5027, %v5023
    %v5388 = vpack.c.b16 %v5028, %v5024
    %v5389 = vpack.c.b16 %v5029, %v5025
    %v5390 = vpack.c.b16 %v5030, %v5026
    %v5391 = vpack.c.b16 %v5035, %v5031
    %v5392 = vpack.c.b16 %v5036, %v5032
    %v5393 = vpack.c.b16 %v5037, %v5033
    %v5394 = vpack.c.b16 %v5038, %v5034
    %v5395 = vpack.c.b16 %v5043, %v5039
    %v5396 = vpack.c.b16 %v5044, %v5040
    %v5397 = vpack.c.b16 %v5045, %v5041
    %v5398 = vpack.c.b16 %v5046, %v5042
    %v5399 = vpack.c.b16 %v5051, %v5047
    %v5400 = vpack.c.b16 %v5052, %v5048
    %v5401 = vpack.c.b16 %v5053, %v5049
    %v5402 = vpack.c.b16 %v5054, %v5050
    %v5403 = vpack.c.b16 %v5059, %v5055
    %v5404 = vpack.c.b16 %v5060, %v5056
    %v5405 = vpack.c.b16 %v5061, %v5057
    %v5406 = vpack.c.b16 %v5062, %v5058
    %v5407 = vpack.c.b16 %v5067, %v5063
    %v5408 = vpack.c.b16 %v5068, %v5064
    %v5409 = vpack.c.b16 %v5069, %v5065
    %v5410 = vpack.c.b16 %v5070, %v5066
    %v5411 = vpack.c.b16 %v5075, %v5071
    %v5412 = vpack.c.b16 %v5076, %v5072
    %v5413 = vpack.c.b16 %v5077, %v5073
    %v5414 = vpack.c.b16 %v5078, %v5074
    %v5415 = vpack.c.b16 %v5083, %v5079
    %v5416 = vpack.c.b16 %v5084, %v5080
    %v5417 = vpack.c.b16 %v5085, %v5081
    %v5418 = vpack.c.b16 %v5086, %v5082
    %v5419 = vpack.c.b16 %v5091, %v5087
    %v5420 = vpack.c.b16 %v5092, %v5088
    %v5421 = vpack.c.b16 %v5093, %v5089
    %v5422 = vpack.c.b16 %v5094, %v5090
    %v5423 = vpack.c.b16 %v5099, %v5095
    %v5424 = vpack.c.b16 %v5100, %v5096
    %v5425 = vpack.c.b16 %v5101, %v5097
    %v5426 = vpack.c.b16 %v5102, %v5098
    %v5427 = vpack.c.b16 %v5107, %v5103
    %v5428 = vpack.c.b16 %v5108, %v5104
    %v5429 = vpack.c.b16 %v5109, %v5105
    %v5430 = vpack.c.b16 %v5110, %v5106
    %v5431 = vpack.c.b16 %v5115, %v5111
    %v5432 = vpack.c.b16 %v5116, %v5112
    %v5433 = vpack.c.b16 %v5117, %v5113
    %v5434 = vpack.c.b16 %v5118, %v5114
    %v5435 = vpack.c.b16 %v5123, %v5119
    %v5436 = vpack.c.b16 %v5124, %v5120
    %v5437 = vpack.c.b16 %v5125, %v5121
    %v5438 = vpack.c.b16 %v5126, %v5122
    %v5439 = vpack.c.b16 %v5131, %v5127
    %v5440 = vpack.c.b16 %v5132, %v5128
    %v5441 = vpack.c.b16 %v5133, %v5129
    %v5442 = vpack.c.b16 %v5134, %v5130
    %v5443 = vpack.c.b16 %v5139, %v5135
    %v5444 = vpack.c.b16 %v5140, %v5136
    %v5445 = vpack.c.b16 %v5141, %v5137
    %v5446 = vpack.c.b16 %v5142, %v5138
    %v5447 = vpack.c.b16 %v5147, %v5143
    %v5448 = vpack.c.b16 %v5148, %v5144
    %v5449 = vpack.c.b16 %v5149, %v5145
    %v5450 = vpack.c.b16 %v5150, %v5146
    %v5451 = vpack.c.b16 %v5155, %v5151
    %v5452 = vpack.c.b16 %v5156, %v5152
    %v5453 = vpack.c.b16 %v5157, %v5153
    %v5454 = vpack.c.b16 %v5158, %v5154
    %v5455 = vpack.c.b16 %v5163, %v5159
    %v5456 = vpack.c.b16 %v5164, %v5160
    %v5457 = vpack.c.b16 %v5165, %v5161
    %v5458 = vpack.c.b16 %v5166, %v5162
    %v5459 = vpack.c.b16 %v5171, %v5167
    %v5460 = vpack.c.b16 %v5172, %v5168
    %v5461 = vpack.c.b16 %v5173, %v5169
    %v5462 = vpack.c.b16 %v5174, %v5170
    %v5463 = vpack.c.b16 %v5179, %v5175
    %v5464 = vpack.c.b16 %v5180, %v5176
    %v5465 = vpack.c.b16 %v5181, %v5177
    %v5466 = vpack.c.b16 %v5182, %v5178
    %v5467 = vpack.c.b16 %v5187, %v5183
    %v5468 = vpack.c.b16 %v5188, %v5184
    %v5469 = vpack.c.b16 %v5189, %v5185
    %v5470 = vpack.c.b16 %v5190, %v5186
    %v5471 = vpack.c.b16 %v5195, %v5191
    %v5472 = vpack.c.b16 %v5196, %v5192
    %v5473 = vpack.c.b16 %v5197, %v5193
    %v5474 = vpack.c.b16 %v5198, %v5194
    %v5475 = vpack.c.b16 %v5203, %v5199
    %v5476 = vpack.c.b16 %v5204, %v5200
    %v5477 = vpack.c.b16 %v5205, %v5201
    %v5478 = vpack.c.b16 %v5206, %v5202
    %v5479 = vpack.c.b16 %v5211, %v5207
    %v5480 = vpack.c.b16 %v5212, %v5208
    %v5481 = vpack.c.b16 %v5213, %v5209
    %v5482 = vpack.c.b16 %v5214, %v5210
    %v5483 = vpack.c.b16 %v5219, %v5215
    %v5484 = vpack.c.b16 %v5220, %v5216
    %v5485 = vpack.c.b16 %v5221, %v5217
    %v5486 = vpack.c.b16 %v5222, %v5218
    %v5487 = vpack.c.b16 %v5227, %v5223
    %v5488 = vpack.c.b16 %v5228, %v5224
    %v5489 = vpack.c.b16 %v5229, %v5225
    %v5490 = vpack.c.b16 %v5230, %v5226
    %v5491 = vpack.c.b16 %v5235, %v5231
    %v5492 = vpack.c.b16 %v5236, %v5232
    %v5493 = vpack.c.b16 %v5237, %v5233
    %v5494 = vpack.c.b16 %v5238, %v5234
    %5751 = vmatpush.bf16.msra.mxu0 %v5267
    %5752 = vmatpush.bf16.msra.mxu0 %v5263
    %5753 = vmatpush.bf16.msra.mxu0 %v5259
    %5754 = vmatpush.bf16.msra.mxu0 %v5255
    %5755 = vmatpush.bf16.msra.mxu0 %v5251
    %5756 = vmatpush.bf16.msra.mxu0 %v5247
    %5757 = vmatpush.bf16.msra.mxu0 %v5243
    %5758 = vmatpush.bf16.msra.mxu0 %v5239
    %5759 = vmatmul.bf16.gmra.mxu0 %v4206
    %v5760 = vpop.f32.mrf.mxu0
    %v5761 = vadd.f32 0.0, %v5760
    %v5762 = vpop.f32.mrf.mxu0
    %5763 = vdwg.mxu0
    %5764 = vmatpush.bf16.msra.mxu0 %v5299
    %5765 = vmatpush.bf16.msra.mxu0 %v5295
    %5766 = vmatpush.bf16.msra.mxu0 %v5291
    %5767 = vmatpush.bf16.msra.mxu0 %v5287
    %5768 = vmatpush.bf16.msra.mxu0 %v5283
    %5769 = vmatpush.bf16.msra.mxu0 %v5279
    %5770 = vmatpush.bf16.msra.mxu0 %v5275
    %5771 = vmatpush.bf16.msra.mxu0 %v5271
    %5772 = vmatmul.bf16.gmra.mxu0 %v4207
    %v5773 = vpop.f32.mrf.mxu0
    %v5774 = vadd.f32 %v5761, %v5773
    %v5775 = vpop.f32.mrf.mxu0
    %5776 = vdwg.mxu0
    %5777 = vmatpush.bf16.msra.mxu0 %v5331
    %5778 = vmatpush.bf16.msra.mxu0 %v5327
    %5779 = vmatpush.bf16.msra.mxu0 %v5323
    %5780 = vmatpush.bf16.msra.mxu0 %v5319
    %5781 = vmatpush.bf16.msra.mxu0 %v5315
    %5782 = vmatpush.bf16.msra.mxu0 %v5311
    %5783 = vmatpush.bf16.msra.mxu0 %v5307
    %5784 = vmatpush.bf16.msra.mxu0 %v5303
    %5785 = vmatmul.bf16.gmra.mxu0 %v4208
    %v5786 = vpop.f32.mrf.mxu0
    %v5787 = vadd.f32 %v5774, %v5786
    %v5788 = vpop.f32.mrf.mxu0
    %5789 = vdwg.mxu0
    %5790 = vmatpush.bf16.msra.mxu0 %v5363
    %5791 = vmatpush.bf16.msra.mxu0 %v5359
    %5792 = vmatpush.bf16.msra.mxu0 %v5355
    %5793 = vmatpush.bf16.msra.mxu0 %v5351
    %5794 = vmatpush.bf16.msra.mxu0 %v5347
    %5795 = vmatpush.bf16.msra.mxu0 %v5343
    %5796 = vmatpush.bf16.msra.mxu0 %v5339
    %5797 = vmatpush.bf16.msra.mxu0 %v5335
    %5798 = vmatmul.bf16.gmra.mxu0 %v4209
    %v5799 = vpop.f32.mrf.mxu0
    %v5800 = vadd.f32 %v5787, %v5799
    %v5801 = vpop.f32.mrf.mxu0
    %5802 = vdwg.mxu0
    %5803 = vmatpush.bf16.msra.mxu0 %v5395
    %5804 = vmatpush.bf16.msra.mxu0 %v5391
    %5805 = vmatpush.bf16.msra.mxu0 %v5387
    %5806 = vmatpush.bf16.msra.mxu0 %v5383
    %5807 = vmatpush.bf16.msra.mxu0 %v5379
    %5808 = vmatpush.bf16.msra.mxu0 %v5375
    %5809 = vmatpush.bf16.msra.mxu0 %v5371
    %5810 = vmatpush.bf16.msra.mxu0 %v5367
    %5811 = vmatmul.bf16.gmra.mxu0 %v4210
    %v5812 = vpop.f32.mrf.mxu0
    %v5813 = vadd.f32 %v5800, %v5812
    %v5814 = vpop.f32.mrf.mxu0
    %5815 = vdwg.mxu0
    %5816 = vmatpush.bf16.msra.mxu0 %v5427
    %5817 = vmatpush.bf16.msra.mxu0 %v5423
    %5818 = vmatpush.bf16.msra.mxu0 %v5419
    %5819 = vmatpush.bf16.msra.mxu0 %v5415
    %5820 = vmatpush.bf16.msra.mxu0 %v5411
    %5821 = vmatpush.bf16.msra.mxu0 %v5407
    %5822 = vmatpush.bf16.msra.mxu0 %v5403
    %5823 = vmatpush.bf16.msra.mxu0 %v5399
    %5824 = vmatmul.bf16.gmra.mxu0 %v4211
    %v5825 = vpop.f32.mrf.mxu0
    %v5826 = vadd.f32 %v5813, %v5825
    %v5827 = vpop.f32.mrf.mxu0
    %5828 = vdwg.mxu0
    %5829 = vmatpush.bf16.msra.mxu0 %v5459
    %5830 = vmatpush.bf16.msra.mxu0 %v5455
    %5831 = vmatpush.bf16.msra.mxu0 %v5451
    %5832 = vmatpush.bf16.msra.mxu0 %v5447
    %5833 = vmatpush.bf16.msra.mxu0 %v5443
    %5834 = vmatpush.bf16.msra.mxu0 %v5439
    %5835 = vmatpush.bf16.msra.mxu0 %v5435
    %5836 = vmatpush.bf16.msra.mxu0 %v5431
    %5837 = vmatmul.bf16.gmra.mxu0 %v4212
    %v5838 = vpop.f32.mrf.mxu0
    %v5839 = vadd.f32 %v5826, %v5838
    %v5840 = vpop.f32.mrf.mxu0
    %5841 = vdwg.mxu0
    %5842 = vmatpush.bf16.msra.mxu0 %v5491
    %5843 = vmatpush.bf16.msra.mxu0 %v5487
    %5844 = vmatpush.bf16.msra.mxu0 %v5483
    %5845 = vmatpush.bf16.msra.mxu0 %v5479
    %5846 = vmatpush.bf16.msra.mxu0 %v5475
    %5847 = vmatpush.bf16.msra.mxu0 %v5471
    %5848 = vmatpush.bf16.msra.mxu0 %v5467
    %5849 = vmatpush.bf16.msra.mxu0 %v5463
    %5850 = vmatmul.bf16.gmra.mxu0 %v4213
    %v5851 = vpop.f32.mrf.mxu0
    %v5852 = vadd.f32 %v5839, %v5851
    %v5853 = vpop.f32.mrf.mxu0
    %5854 = vdwg.mxu0
    %5855 = vmatpush.bf16.msra.mxu0 %v5268
    %5856 = vmatpush.bf16.msra.mxu0 %v5264
    %5857 = vmatpush.bf16.msra.mxu0 %v5260
    %5858 = vmatpush.bf16.msra.mxu0 %v5256
    %5859 = vmatpush.bf16.msra.mxu0 %v5252
    %5860 = vmatpush.bf16.msra.mxu0 %v5248
    %5861 = vmatpush.bf16.msra.mxu0 %v5244
    %5862 = vmatpush.bf16.msra.mxu0 %v5240
    %5863 = vmatmul.bf16.gmra.mxu0 %v4206
    %v5864 = vpop.f32.mrf.mxu0
    %v5865 = vadd.f32 0.0, %v5864
    %v5866 = vpop.f32.mrf.mxu0
    %5867 = vdwg.mxu0
    %5868 = vmatpush.bf16.msra.mxu0 %v5300
    %5869 = vmatpush.bf16.msra.mxu0 %v5296
    %5870 = vmatpush.bf16.msra.mxu0 %v5292
    %5871 = vmatpush.bf16.msra.mxu0 %v5288
    %5872 = vmatpush.bf16.msra.mxu0 %v5284
    %5873 = vmatpush.bf16.msra.mxu0 %v5280
    %5874 = vmatpush.bf16.msra.mxu0 %v5276
    %5875 = vmatpush.bf16.msra.mxu0 %v5272
    %5876 = vmatmul.bf16.gmra.mxu0 %v4207
    %v5877 = vpop.f32.mrf.mxu0
    %v5878 = vadd.f32 %v5865, %v5877
    %v5879 = vpop.f32.mrf.mxu0
    %5880 = vdwg.mxu0
    %5881 = vmatpush.bf16.msra.mxu0 %v5332
    %5882 = vmatpush.bf16.msra.mxu0 %v5328
    %5883 = vmatpush.bf16.msra.mxu0 %v5324
    %5884 = vmatpush.bf16.msra.mxu0 %v5320
    %5885 = vmatpush.bf16.msra.mxu0 %v5316
    %5886 = vmatpush.bf16.msra.mxu0 %v5312
    %5887 = vmatpush.bf16.msra.mxu0 %v5308
    %5888 = vmatpush.bf16.msra.mxu0 %v5304
    %5889 = vmatmul.bf16.gmra.mxu0 %v4208
    %v5890 = vpop.f32.mrf.mxu0
    %v5891 = vadd.f32 %v5878, %v5890
    %v5892 = vpop.f32.mrf.mxu0
    %5893 = vdwg.mxu0
    %5894 = vmatpush.bf16.msra.mxu0 %v5364
    %5895 = vmatpush.bf16.msra.mxu0 %v5360
    %5896 = vmatpush.bf16.msra.mxu0 %v5356
    %5897 = vmatpush.bf16.msra.mxu0 %v5352
    %5898 = vmatpush.bf16.msra.mxu0 %v5348
    %5899 = vmatpush.bf16.msra.mxu0 %v5344
    %5900 = vmatpush.bf16.msra.mxu0 %v5340
    %5901 = vmatpush.bf16.msra.mxu0 %v5336
    %5902 = vmatmul.bf16.gmra.mxu0 %v4209
    %v5903 = vpop.f32.mrf.mxu0
    %v5904 = vadd.f32 %v5891, %v5903
    %v5905 = vpop.f32.mrf.mxu0
    %5906 = vdwg.mxu0
    %5907 = vmatpush.bf16.msra.mxu0 %v5396
    %5908 = vmatpush.bf16.msra.mxu0 %v5392
    %5909 = vmatpush.bf16.msra.mxu0 %v5388
    %5910 = vmatpush.bf16.msra.mxu0 %v5384
    %5911 = vmatpush.bf16.msra.mxu0 %v5380
    %5912 = vmatpush.bf16.msra.mxu0 %v5376
    %5913 = vmatpush.bf16.msra.mxu0 %v5372
    %5914 = vmatpush.bf16.msra.mxu0 %v5368
    %5915 = vmatmul.bf16.gmra.mxu0 %v4210
    %v5916 = vpop.f32.mrf.mxu0
    %v5917 = vadd.f32 %v5904, %v5916
    %v5918 = vpop.f32.mrf.mxu0
    %5919 = vdwg.mxu0
    %5920 = vmatpush.bf16.msra.mxu0 %v5428
    %5921 = vmatpush.bf16.msra.mxu0 %v5424
    %5922 = vmatpush.bf16.msra.mxu0 %v5420
    %5923 = vmatpush.bf16.msra.mxu0 %v5416
    %5924 = vmatpush.bf16.msra.mxu0 %v5412
    %5925 = vmatpush.bf16.msra.mxu0 %v5408
    %5926 = vmatpush.bf16.msra.mxu0 %v5404
    %5927 = vmatpush.bf16.msra.mxu0 %v5400
    %5928 = vmatmul.bf16.gmra.mxu0 %v4211
    %v5929 = vpop.f32.mrf.mxu0
    %v5930 = vadd.f32 %v5917, %v5929
    %v5931 = vpop.f32.mrf.mxu0
    %5932 = vdwg.mxu0
    %5933 = vmatpush.bf16.msra.mxu0 %v5460
    %5934 = vmatpush.bf16.msra.mxu0 %v5456
    %5935 = vmatpush.bf16.msra.mxu0 %v5452
    %5936 = vmatpush.bf16.msra.mxu0 %v5448
    %5937 = vmatpush.bf16.msra.mxu0 %v5444
    %5938 = vmatpush.bf16.msra.mxu0 %v5440
    %5939 = vmatpush.bf16.msra.mxu0 %v5436
    %5940 = vmatpush.bf16.msra.mxu0 %v5432
    %5941 = vmatmul.bf16.gmra.mxu0 %v4212
    %v5942 = vpop.f32.mrf.mxu0
    %v5943 = vadd.f32 %v5930, %v5942
    %v5944 = vpop.f32.mrf.mxu0
    %5945 = vdwg.mxu0
    %5946 = vmatpush.bf16.msra.mxu0 %v5492
    %5947 = vmatpush.bf16.msra.mxu0 %v5488
    %5948 = vmatpush.bf16.msra.mxu0 %v5484
    %5949 = vmatpush.bf16.msra.mxu0 %v5480
    %5950 = vmatpush.bf16.msra.mxu0 %v5476
    %5951 = vmatpush.bf16.msra.mxu0 %v5472
    %5952 = vmatpush.bf16.msra.mxu0 %v5468
    %5953 = vmatpush.bf16.msra.mxu0 %v5464
    %5954 = vmatmul.bf16.gmra.mxu0 %v4213
    %v5955 = vpop.f32.mrf.mxu0
    %v5956 = vadd.f32 %v5943, %v5955
    %v5957 = vpop.f32.mrf.mxu0
    %5958 = vdwg.mxu0
    %5959 = vmatpush.bf16.msra.mxu0 %v5269
    %5960 = vmatpush.bf16.msra.mxu0 %v5265
    %5961 = vmatpush.bf16.msra.mxu0 %v5261
    %5962 = vmatpush.bf16.msra.mxu0 %v5257
    %5963 = vmatpush.bf16.msra.mxu0 %v5253
    %5964 = vmatpush.bf16.msra.mxu0 %v5249
    %5965 = vmatpush.bf16.msra.mxu0 %v5245
    %5966 = vmatpush.bf16.msra.mxu0 %v5241
    %5967 = vmatmul.bf16.gmra.mxu0 %v4206
    %v5968 = vpop.f32.mrf.mxu0
    %v5969 = vadd.f32 0.0, %v5968
    %v5970 = vpop.f32.mrf.mxu0
    %5971 = vdwg.mxu0
    %5972 = vmatpush.bf16.msra.mxu0 %v5301
    %5973 = vmatpush.bf16.msra.mxu0 %v5297
    %5974 = vmatpush.bf16.msra.mxu0 %v5293
    %5975 = vmatpush.bf16.msra.mxu0 %v5289
    %5976 = vmatpush.bf16.msra.mxu0 %v5285
    %5977 = vmatpush.bf16.msra.mxu0 %v5281
    %5978 = vmatpush.bf16.msra.mxu0 %v5277
    %5979 = vmatpush.bf16.msra.mxu0 %v5273
    %5980 = vmatmul.bf16.gmra.mxu0 %v4207
    %v5981 = vpop.f32.mrf.mxu0
    %v5982 = vadd.f32 %v5969, %v5981
    %v5983 = vpop.f32.mrf.mxu0
    %5984 = vdwg.mxu0
    %5985 = vmatpush.bf16.msra.mxu0 %v5333
    %5986 = vmatpush.bf16.msra.mxu0 %v5329
    %5987 = vmatpush.bf16.msra.mxu0 %v5325
    %5988 = vmatpush.bf16.msra.mxu0 %v5321
    %5989 = vmatpush.bf16.msra.mxu0 %v5317
    %5990 = vmatpush.bf16.msra.mxu0 %v5313
    %5991 = vmatpush.bf16.msra.mxu0 %v5309
    %5992 = vmatpush.bf16.msra.mxu0 %v5305
    %5993 = vmatmul.bf16.gmra.mxu0 %v4208
    %v5994 = vpop.f32.mrf.mxu0
    %v5995 = vadd.f32 %v5982, %v5994
    %v5996 = vpop.f32.mrf.mxu0
    %5997 = vdwg.mxu0
    %5998 = vmatpush.bf16.msra.mxu0 %v5365
    %5999 = vmatpush.bf16.msra.mxu0 %v5361
    %6000 = vmatpush.bf16.msra.mxu0 %v5357
    %6001 = vmatpush.bf16.msra.mxu0 %v5353
    %6002 = vmatpush.bf16.msra.mxu0 %v5349
    %6003 = vmatpush.bf16.msra.mxu0 %v5345
    %6004 = vmatpush.bf16.msra.mxu0 %v5341
    %6005 = vmatpush.bf16.msra.mxu0 %v5337
    %6006 = vmatmul.bf16.gmra.mxu0 %v4209
    %v6007 = vpop.f32.mrf.mxu0
    %v6008 = vadd.f32 %v5995, %v6007
    %v6009 = vpop.f32.mrf.mxu0
    %6010 = vdwg.mxu0
    %6011 = vmatpush.bf16.msra.mxu0 %v5397
    %6012 = vmatpush.bf16.msra.mxu0 %v5393
    %6013 = vmatpush.bf16.msra.mxu0 %v5389
    %6014 = vmatpush.bf16.msra.mxu0 %v5385
    %6015 = vmatpush.bf16.msra.mxu0 %v5381
    %6016 = vmatpush.bf16.msra.mxu0 %v5377
    %6017 = vmatpush.bf16.msra.mxu0 %v5373
    %6018 = vmatpush.bf16.msra.mxu0 %v5369
    %6019 = vmatmul.bf16.gmra.mxu0 %v4210
    %v6020 = vpop.f32.mrf.mxu0
    %v6021 = vadd.f32 %v6008, %v6020
    %v6022 = vpop.f32.mrf.mxu0
    %6023 = vdwg.mxu0
    %6024 = vmatpush.bf16.msra.mxu0 %v5429
    %6025 = vmatpush.bf16.msra.mxu0 %v5425
    %6026 = vmatpush.bf16.msra.mxu0 %v5421
    %6027 = vmatpush.bf16.msra.mxu0 %v5417
    %6028 = vmatpush.bf16.msra.mxu0 %v5413
    %6029 = vmatpush.bf16.msra.mxu0 %v5409
    %6030 = vmatpush.bf16.msra.mxu0 %v5405
    %6031 = vmatpush.bf16.msra.mxu0 %v5401
    %6032 = vmatmul.bf16.gmra.mxu0 %v4211
    %v6033 = vpop.f32.mrf.mxu0
    %v6034 = vadd.f32 %v6021, %v6033
    %v6035 = vpop.f32.mrf.mxu0
    %6036 = vdwg.mxu0
    %6037 = vmatpush.bf16.msra.mxu0 %v5461
    %6038 = vmatpush.bf16.msra.mxu0 %v5457
    %6039 = vmatpush.bf16.msra.mxu0 %v5453
    %6040 = vmatpush.bf16.msra.mxu0 %v5449
    %6041 = vmatpush.bf16.msra.mxu0 %v5445
    %6042 = vmatpush.bf16.msra.mxu0 %v5441
    %6043 = vmatpush.bf16.msra.mxu0 %v5437
    %6044 = vmatpush.bf16.msra.mxu0 %v5433
    %6045 = vmatmul.bf16.gmra.mxu0 %v4212
    %v6046 = vpop.f32.mrf.mxu0
    %v6047 = vadd.f32 %v6034, %v6046
    %v6048 = vpop.f32.mrf.mxu0
    %6049 = vdwg.mxu0
    %6050 = vmatpush.bf16.msra.mxu0 %v5493
    %6051 = vmatpush.bf16.msra.mxu0 %v5489
    %6052 = vmatpush.bf16.msra.mxu0 %v5485
    %6053 = vmatpush.bf16.msra.mxu0 %v5481
    %6054 = vmatpush.bf16.msra.mxu0 %v5477
    %6055 = vmatpush.bf16.msra.mxu0 %v5473
    %6056 = vmatpush.bf16.msra.mxu0 %v5469
    %6057 = vmatpush.bf16.msra.mxu0 %v5465
    %6058 = vmatmul.bf16.gmra.mxu0 %v4213
    %v6059 = vpop.f32.mrf.mxu0
    %v6060 = vadd.f32 %v6047, %v6059
    %v6061 = vpop.f32.mrf.mxu0
    %6062 = vdwg.mxu0
    %6063 = vmatpush.bf16.msra.mxu0 %v5270
    %6064 = vmatpush.bf16.msra.mxu0 %v5266
    %6065 = vmatpush.bf16.msra.mxu0 %v5262
    %6066 = vmatpush.bf16.msra.mxu0 %v5258
    %6067 = vmatpush.bf16.msra.mxu0 %v5254
    %6068 = vmatpush.bf16.msra.mxu0 %v5250
    %6069 = vmatpush.bf16.msra.mxu0 %v5246
    %6070 = vmatpush.bf16.msra.mxu0 %v5242
    %6071 = vmatmul.bf16.gmra.mxu0 %v4206
    %v6072 = vpop.f32.mrf.mxu0
    %v6073 = vadd.f32 0.0, %v6072
    %v6074 = vpop.f32.mrf.mxu0
    %6075 = vdwg.mxu0
    %6076 = vmatpush.bf16.msra.mxu0 %v5302
    %6077 = vmatpush.bf16.msra.mxu0 %v5298
    %6078 = vmatpush.bf16.msra.mxu0 %v5294
    %6079 = vmatpush.bf16.msra.mxu0 %v5290
    %6080 = vmatpush.bf16.msra.mxu0 %v5286
    %6081 = vmatpush.bf16.msra.mxu0 %v5282
    %6082 = vmatpush.bf16.msra.mxu0 %v5278
    %6083 = vmatpush.bf16.msra.mxu0 %v5274
    %6084 = vmatmul.bf16.gmra.mxu0 %v4207
    %v6085 = vpop.f32.mrf.mxu0
    %v6086 = vadd.f32 %v6073, %v6085
    %v6087 = vpop.f32.mrf.mxu0
    %6088 = vdwg.mxu0
    %6089 = vmatpush.bf16.msra.mxu0 %v5334
    %6090 = vmatpush.bf16.msra.mxu0 %v5330
    %6091 = vmatpush.bf16.msra.mxu0 %v5326
    %6092 = vmatpush.bf16.msra.mxu0 %v5322
    %6093 = vmatpush.bf16.msra.mxu0 %v5318
    %6094 = vmatpush.bf16.msra.mxu0 %v5314
    %6095 = vmatpush.bf16.msra.mxu0 %v5310
    %6096 = vmatpush.bf16.msra.mxu0 %v5306
    %6097 = vmatmul.bf16.gmra.mxu0 %v4208
    %v6098 = vpop.f32.mrf.mxu0
    %v6099 = vadd.f32 %v6086, %v6098
    %v6100 = vpop.f32.mrf.mxu0
    %6101 = vdwg.mxu0
    %6102 = vmatpush.bf16.msra.mxu0 %v5366
    %6103 = vmatpush.bf16.msra.mxu0 %v5362
    %6104 = vmatpush.bf16.msra.mxu0 %v5358
    %6105 = vmatpush.bf16.msra.mxu0 %v5354
    %6106 = vmatpush.bf16.msra.mxu0 %v5350
    %6107 = vmatpush.bf16.msra.mxu0 %v5346
    %6108 = vmatpush.bf16.msra.mxu0 %v5342
    %6109 = vmatpush.bf16.msra.mxu0 %v5338
    %6110 = vmatmul.bf16.gmra.mxu0 %v4209
    %v6111 = vpop.f32.mrf.mxu0
    %v6112 = vadd.f32 %v6099, %v6111
    %v6113 = vpop.f32.mrf.mxu0
    %6114 = vdwg.mxu0
    %6115 = vmatpush.bf16.msra.mxu0 %v5398
    %6116 = vmatpush.bf16.msra.mxu0 %v5394
    %6117 = vmatpush.bf16.msra.mxu0 %v5390
    %6118 = vmatpush.bf16.msra.mxu0 %v5386
    %6119 = vmatpush.bf16.msra.mxu0 %v5382
    %6120 = vmatpush.bf16.msra.mxu0 %v5378
    %6121 = vmatpush.bf16.msra.mxu0 %v5374
    %6122 = vmatpush.bf16.msra.mxu0 %v5370
    %6123 = vmatmul.bf16.gmra.mxu0 %v4210
    %v6124 = vpop.f32.mrf.mxu0
    %v6125 = vadd.f32 %v6112, %v6124
    %v6126 = vpop.f32.mrf.mxu0
    %6127 = vdwg.mxu0
    %6128 = vmatpush.bf16.msra.mxu0 %v5430
    %6129 = vmatpush.bf16.msra.mxu0 %v5426
    %6130 = vmatpush.bf16.msra.mxu0 %v5422
    %6131 = vmatpush.bf16.msra.mxu0 %v5418
    %6132 = vmatpush.bf16.msra.mxu0 %v5414
    %6133 = vmatpush.bf16.msra.mxu0 %v5410
    %6134 = vmatpush.bf16.msra.mxu0 %v5406
    %6135 = vmatpush.bf16.msra.mxu0 %v5402
    %6136 = vmatmul.bf16.gmra.mxu0 %v4211
    %v6137 = vpop.f32.mrf.mxu0
    %v6138 = vadd.f32 %v6125, %v6137
    %v6139 = vpop.f32.mrf.mxu0
    %6140 = vdwg.mxu0
    %6141 = vmatpush.bf16.msra.mxu0 %v5462
    %6142 = vmatpush.bf16.msra.mxu0 %v5458
    %6143 = vmatpush.bf16.msra.mxu0 %v5454
    %6144 = vmatpush.bf16.msra.mxu0 %v5450
    %6145 = vmatpush.bf16.msra.mxu0 %v5446
    %6146 = vmatpush.bf16.msra.mxu0 %v5442
    %6147 = vmatpush.bf16.msra.mxu0 %v5438
    %6148 = vmatpush.bf16.msra.mxu0 %v5434
    %6149 = vmatmul.bf16.gmra.mxu0 %v4212
    %v6150 = vpop.f32.mrf.mxu0
    %v6151 = vadd.f32 %v6138, %v6150
    %v6152 = vpop.f32.mrf.mxu0
    %6153 = vdwg.mxu0
    %6154 = vmatpush.bf16.msra.mxu0 %v5494
    %6155 = vmatpush.bf16.msra.mxu0 %v5490
    %6156 = vmatpush.bf16.msra.mxu0 %v5486
    %6157 = vmatpush.bf16.msra.mxu0 %v5482
    %6158 = vmatpush.bf16.msra.mxu0 %v5478
    %6159 = vmatpush.bf16.msra.mxu0 %v5474
    %6160 = vmatpush.bf16.msra.mxu0 %v5470
    %6161 = vmatpush.bf16.msra.mxu0 %v5466
    %6162 = vmatmul.bf16.gmra.mxu0 %v4213
    %v6163 = vpop.f32.mrf.mxu0
    %v6164 = vadd.f32 %v6151, %v6163
    %v6165 = vpop.f32.mrf.mxu0
    %6166 = vdwg.mxu0
    %v6167 = vadd.f32 %v3867, %v5852
    %v6168 = vadd.f32 %v3971, %v5956
    %v6169 = vadd.f32 %v4075, %v6060
    %v6170 = vadd.f32 %v4179, %v6164
    %v6171 = vld [vmem:[#allocation9] sm:$0xf]
    %v6173 = vperm.slane %v6171, 0
    %v6174 = vperm.slane %v6171, 1
    %v6175 = vperm.slane %v6171, 2
    %v6176 = vperm.slane %v6171, 3
    %v6181 = vadd.f32 %v6167, %v6173
    %v6182 = vadd.f32 %v6168, %v6174
    %v6183 = vadd.f32 %v6169, %v6175
    %v6184 = vadd.f32 %v6170, %v6176
    %v6185 = vmax.f32 %v6181, 0.0
    %v6186 = vmax.f32 %v6182, 0.0
    %v6187 = vmax.f32 %v6183, 0.0
    %v6188 = vmax.f32 %v6184, 0.0
    %v6189 = vld [vmem:[#allocation11] sm:$0xff]
    %v6190 = vld [vmem:[#allocation11 + $0x8] sm:$0xff]
    %v6191 = vld [vmem:[#allocation11 + $0x10] sm:$0xff]
    %v6192 = vld [vmem:[#allocation11 + $0x18] sm:$0xff]
    %v6193 = vld [vmem:[#allocation11 + $0x20] sm:$0xff]
    %v6194 = vld [vmem:[#allocation11 + $0x28] sm:$0xff]
    %v6195 = vld [vmem:[#allocation11 + $0x30] sm:$0xff]
    %v6196 = vld [vmem:[#allocation11 + $0x38] sm:$0xff]
    %v6197 = vld [vmem:[#allocation11 + $0x40] sm:$0xff]
    %v6198 = vld [vmem:[#allocation11 + $0x48] sm:$0xff]
    %v6199 = vld [vmem:[#allocation11 + $0x50] sm:$0xff]
    %v6200 = vld [vmem:[#allocation11 + $0x58] sm:$0xff]
    %v6201 = vld [vmem:[#allocation11 + $0x60] sm:$0xff]
    %v6202 = vld [vmem:[#allocation11 + $0x68] sm:$0xff]
    %v6203 = vld [vmem:[#allocation11 + $0x70] sm:$0xff]
    %v6204 = vld [vmem:[#allocation11 + $0x78] sm:$0xff]
    %v6205 = vld [vmem:[#allocation11 + $0x80] sm:$0xff]
    %v6206 = vld [vmem:[#allocation11 + $0x88] sm:$0xff]
    %v6207 = vld [vmem:[#allocation11 + $0x90] sm:$0xff]
    %v6208 = vld [vmem:[#allocation11 + $0x98] sm:$0xff]
    %v6209 = vld [vmem:[#allocation11 + $0xa0] sm:$0xff]
    %v6210 = vld [vmem:[#allocation11 + $0xa8] sm:$0xff]
    %v6211 = vld [vmem:[#allocation11 + $0xb0] sm:$0xff]
    %v6212 = vld [vmem:[#allocation11 + $0xb8] sm:$0xff]
    %v6213 = vld [vmem:[#allocation11 + $0xc0] sm:$0xff]
    %v6214 = vld [vmem:[#allocation11 + $0xc8] sm:$0xff]
    %v6215 = vld [vmem:[#allocation11 + $0xd0] sm:$0xff]
    %v6216 = vld [vmem:[#allocation11 + $0xd8] sm:$0xff]
    %v6217 = vld [vmem:[#allocation11 + $0xe0] sm:$0xff]
    %v6218 = vld [vmem:[#allocation11 + $0xe8] sm:$0xff]
    %v6219 = vld [vmem:[#allocation11 + $0xf0] sm:$0xff]
    %v6220 = vld [vmem:[#allocation11 + $0xf8] sm:$0xff]
    %v6221 = vld [vmem:[#allocation11 + $0x100] sm:$0xff]
    %v6222 = vld [vmem:[#allocation11 + $0x108] sm:$0xff]
    %v6223 = vld [vmem:[#allocation11 + $0x110] sm:$0xff]
    %v6224 = vld [vmem:[#allocation11 + $0x118] sm:$0xff]
    %v6225 = vld [vmem:[#allocation11 + $0x120] sm:$0xff]
    %v6226 = vld [vmem:[#allocation11 + $0x128] sm:$0xff]
    %v6227 = vld [vmem:[#allocation11 + $0x130] sm:$0xff]
    %v6228 = vld [vmem:[#allocation11 + $0x138] sm:$0xff]
    %v6229 = vld [vmem:[#allocation11 + $0x140] sm:$0xff]
    %v6230 = vld [vmem:[#allocation11 + $0x148] sm:$0xff]
    %v6231 = vld [vmem:[#allocation11 + $0x150] sm:$0xff]
    %v6232 = vld [vmem:[#allocation11 + $0x158] sm:$0xff]
    %v6233 = vld [vmem:[#allocation11 + $0x160] sm:$0xff]
    %v6234 = vld [vmem:[#allocation11 + $0x168] sm:$0xff]
    %v6235 = vld [vmem:[#allocation11 + $0x170] sm:$0xff]
    %v6236 = vld [vmem:[#allocation11 + $0x178] sm:$0xff]
    %v6237 = vld [vmem:[#allocation11 + $0x180] sm:$0xff]
    %v6238 = vld [vmem:[#allocation11 + $0x188] sm:$0xff]
    %v6239 = vld [vmem:[#allocation11 + $0x190] sm:$0xff]
    %v6240 = vld [vmem:[#allocation11 + $0x198] sm:$0xff]
    %v6241 = vld [vmem:[#allocation11 + $0x1a0] sm:$0xff]
    %v6242 = vld [vmem:[#allocation11 + $0x1a8] sm:$0xff]
    %v6243 = vld [vmem:[#allocation11 + $0x1b0] sm:$0xff]
    %v6244 = vld [vmem:[#allocation11 + $0x1b8] sm:$0xff]
    %v6245 = vld [vmem:[#allocation11 + $0x1c0] sm:$0xff]
    %v6246 = vld [vmem:[#allocation11 + $0x1c8] sm:$0xff]
    %v6247 = vld [vmem:[#allocation11 + $0x1d0] sm:$0xff]
    %v6248 = vld [vmem:[#allocation11 + $0x1d8] sm:$0xff]
    %v6249 = vld [vmem:[#allocation11 + $0x1e0] sm:$0xff]
    %v6250 = vld [vmem:[#allocation11 + $0x1e8] sm:$0xff]
    %v6251 = vld [vmem:[#allocation11 + $0x1f0] sm:$0xff]
    %v6252 = vld [vmem:[#allocation11 + $0x1f8] sm:$0xff]
    %v6253 = vld [vmem:[#allocation12] sm:$0x1]
    %v6255 = vperm.slane %v6253, 0
    %6257 = vmatpush.msra.mxu0 %v6204
    %6258 = vmatpush.msra.mxu0 %v6203
    %6259 = vmatpush.msra.mxu0 %v6202
    %6260 = vmatpush.msra.mxu0 %v6201
    %6261 = vmatpush.msra.mxu0 %v6200
    %6262 = vmatpush.msra.mxu0 %v6199
    %6263 = vmatpush.msra.mxu0 %v6198
    %6264 = vmatpush.msra.mxu0 %v6197
    %6265 = vmatpush.msra.mxu0 %v6196
    %6266 = vmatpush.msra.mxu0 %v6195
    %6267 = vmatpush.msra.mxu0 %v6194
    %6268 = vmatpush.msra.mxu0 %v6193
    %6269 = vmatpush.msra.mxu0 %v6192
    %6270 = vmatpush.msra.mxu0 %v6191
    %6271 = vmatpush.msra.mxu0 %v6190
    %6272 = vmatpush.msra.mxu0 %v6189
    %6273 = vmatmul.f32.gmra.mxu0 %v6185
    %v6274 = vpop.f32.mrf.mxu0
    %v6275 = vadd.f32 %v6255, %v6274
    %6276 = vdwg.mxu0
    %6277 = vmatpush.msra.mxu0 %v6220
    %6278 = vmatpush.msra.mxu0 %v6219
    %6279 = vmatpush.msra.mxu0 %v6218
    %6280 = vmatpush.msra.mxu0 %v6217
    %6281 = vmatpush.msra.mxu0 %v6216
    %6282 = vmatpush.msra.mxu0 %v6215
    %6283 = vmatpush.msra.mxu0 %v6214
    %6284 = vmatpush.msra.mxu0 %v6213
    %6285 = vmatpush.msra.mxu0 %v6212
    %6286 = vmatpush.msra.mxu0 %v6211
    %6287 = vmatpush.msra.mxu0 %v6210
    %6288 = vmatpush.msra.mxu0 %v6209
    %6289 = vmatpush.msra.mxu0 %v6208
    %6290 = vmatpush.msra.mxu0 %v6207
    %6291 = vmatpush.msra.mxu0 %v6206
    %6292 = vmatpush.msra.mxu0 %v6205
    %6293 = vmatmul.f32.gmra.mxu0 %v6186
    %v6294 = vpop.f32.mrf.mxu0
    %v6295 = vadd.f32 %v6275, %v6294
    %6296 = vdwg.mxu0
    %6297 = vmatpush.msra.mxu0 %v6236
    %6298 = vmatpush.msra.mxu0 %v6235
    %6299 = vmatpush.msra.mxu0 %v6234
    %6300 = vmatpush.msra.mxu0 %v6233
    %6301 = vmatpush.msra.mxu0 %v6232
    %6302 = vmatpush.msra.mxu0 %v6231
    %6303 = vmatpush.msra.mxu0 %v6230
    %6304 = vmatpush.msra.mxu0 %v6229
    %6305 = vmatpush.msra.mxu0 %v6228
    %6306 = vmatpush.msra.mxu0 %v6227
    %6307 = vmatpush.msra.mxu0 %v6226
    %6308 = vmatpush.msra.mxu0 %v6225
    %6309 = vmatpush.msra.mxu0 %v6224
    %6310 = vmatpush.msra.mxu0 %v6223
    %6311 = vmatpush.msra.mxu0 %v6222
    %6312 = vmatpush.msra.mxu0 %v6221
    %6313 = vmatmul.f32.gmra.mxu0 %v6187
    %v6314 = vpop.f32.mrf.mxu0
    %v6315 = vadd.f32 %v6295, %v6314
    %6316 = vdwg.mxu0
    %6317 = vmatpush.msra.mxu0 %v6252
    %6318 = vmatpush.msra.mxu0 %v6251
    %6319 = vmatpush.msra.mxu0 %v6250
    %6320 = vmatpush.msra.mxu0 %v6249
    %6321 = vmatpush.msra.mxu0 %v6248
    %6322 = vmatpush.msra.mxu0 %v6247
    %6323 = vmatpush.msra.mxu0 %v6246
    %6324 = vmatpush.msra.mxu0 %v6245
    %6325 = vmatpush.msra.mxu0 %v6244
    %6326 = vmatpush.msra.mxu0 %v6243
    %6327 = vmatpush.msra.mxu0 %v6242
    %6328 = vmatpush.msra.mxu0 %v6241
    %6329 = vmatpush.msra.mxu0 %v6240
    %6330 = vmatpush.msra.mxu0 %v6239
    %6331 = vmatpush.msra.mxu0 %v6238
    %6332 = vmatpush.msra.mxu0 %v6237
    %6333 = vmatmul.f32.gmra.mxu0 %v6188
    %v6334 = vpop.f32.mrf.mxu0
    %v6335 = vadd.f32 %v6315, %v6334
    %6336 = vdwg.mxu0
    %6337 = vst [vmem:[#allocation14] sm:$0x3] %v6335
    // Predicated region
    $region34: #{gap_head_forward.1} parent=1 // pred_check
      _
    $region35: #{gap_head_forward.1} parent=1 // pred_check_branch
      %6339 = sbr.rel (0) target = $region37
    $region36: #{gap_head_forward.1} parent=1 // pred_region
      %6341 = vsyncadd [#allocation8], 0
      %s6343 = sshll.u32 [#allocation14], 4
      %s6344 = int_to_ptr.vmem [resolvable:$true] %s6343
      %s6345 = sshll.u32 %s6, 4
      %s6346 = int_to_ptr.hbm [resolvable:$true] %s6345
      %6348 = dma.vmem_to_hbm [thread:$0]  %s6344, 32, %s6346, [#allocation8]
    $region37: #{gap_head_forward.1} parent=1 // pred_fallthru
      _
    // Predicated region
    $region38: #{gap_head_forward.1} parent=1 // pred_check
      _
    $region39: #{gap_head_forward.1} parent=1 // pred_check_branch
      %6350 = sbr.rel (0) target = $region41
    $region40: #{gap_head_forward.1} parent=1 // pred_region
      %6352 = dma.done [#allocation8], 32
    $region41: #{gap_head_forward.1} parent=1 // pred_fallthru
      _
    %6353 = vsyncpa [#allocation7], 1
    %6354 = vsyncpa [#allocation10], 1
    %6355 = vsyncpa [#allocation13], 1
    %6356 = vsyncpa [#allocation8], 1
  %6357 = vsyncmov [#allocation3]
  %s6358 = vpop.sfrf %6357
  %p6359 = scmp.eq.s32.totalorder %s6358, 0
  %p6360 = pneg %p6359
  %6362 = shalt.err (%p6360)
  %s6363 = scalar_lea.sflag [#allocation3], 1
  %6364 = vsyncmov %s6363
  %s6365 = vpop.sfrf %6364
  %p6366 = scmp.eq.s32.totalorder %s6365, 0
  %p6367 = pneg %p6366
  %6369 = shalt.err (%p6367)
  %s6370 = scalar_lea.sflag [#allocation3], 2
  %6371 = vsyncmov %s6370
  %s6372 = vpop.sfrf %6371
  %p6373 = scmp.eq.s32.totalorder %s6372, 0
  %p6374 = pneg %p6373
  %6376 = shalt.err (%p6374)
  %s6377 = scalar_lea.sflag [#allocation3], 3
  %6378 = vsyncmov %s6377
  %s6379 = vpop.sfrf %6378
  %p6380 = scmp.eq.s32.totalorder %s6379, 0
  %p6381 = pneg %p6380
  %6383 = shalt.err (%p6381)
  %s6384 = scalar_lea.sflag [#allocation3], 4
  %6385 = vsyncmov %s6384
  %s6386 = vpop.sfrf %6385
  %p6387 = scmp.eq.s32.totalorder %s6386, 0
  %p6388 = pneg %p6387
  %6390 = shalt.err (%p6388)
  %s6391 = scalar_lea.sflag [#allocation3], 5
  %6392 = vsyncmov %s6391
  %s6393 = vpop.sfrf %6392
  %p6394 = scmp.eq.s32.totalorder %s6393, 0
  %p6395 = pneg %p6394
  %6397 = shalt.err (%p6395)

</llo_original>
